<compile_context>
chip_gen: v6e
topology: v6e:2x2x1
jax: 0.10.0
libtpu: 0.0.40
codegen_flags: <defaults>
</compile_context>

<pallas_src>
import functools
import math

import jax
import jax.numpy as jnp
from jax import lax
from jax.experimental import pallas as pl
from jax.experimental.pallas import tpu as pltpu


# ----------------------------------------------------------------------------
# Generation-aware VMEM budget and tile selection
# ----------------------------------------------------------------------------
def _vmem_limit_bytes():
    """~75% of physical VMEM: v5e/v6e 128MiB -> 96MiB, v7x 64MiB -> 48MiB."""
    try:
        phys = int(pltpu.get_tpu_info().vmem_capacity_bytes)
    except Exception:
        phys = 64 * 1024 * 1024  # conservative (v7x-sized) fallback
    return (phys * 3) // 4


def _choose_divisor_tile(n, per_item_bytes, budget_bytes):
    """Largest divisor of n fitting the VMEM budget, preferring >=2 grid steps
    (so dimension_semantics=("parallel",) can shard across both v7x
    TensorCores; on 1-TC v5e/v6e the extra step costs ~0.35us)."""
    divisors = [d for d in range(1, n + 1) if n % d == 0]
    fits = [d for d in divisors if d * per_item_bytes <= budget_bytes] or [1]
    multi = [d for d in fits if d < n]
    if n >= 2 and multi:
        return max(multi)
    return max(fits)


# ----------------------------------------------------------------------------
# Kernel 1: fused CNN stage (conv GEMM + bias + ReLU + global avg pool + proj)
# ----------------------------------------------------------------------------
def _cnn_stage_kernel(rows_ref, cw_ref, cb_ref, pw_ref, pb_ref, o_ref, *,
                      n_tile):
    w = cw_ref[...]                       # (F, K) bf16, resident for the block
    cb = cb_ref[...]                      # (F, 1) f32
    cols = []
    for i in range(n_tile):               # static unroll over images in tile
        xi = rows_ref[i]                  # (K, HW) bf16, H*W lane-dense
        yi = jnp.dot(w, xi, preferred_element_type=jnp.float32)   # (F, HW)
        yi = jnp.maximum(yi + cb, 0.0)                            # bias + ReLU
        cols.append(jnp.mean(yi, axis=-1, keepdims=True))         # GAP -> (F,1)
    pooled = jnp.concatenate(cols, axis=-1)                       # (F, n_tile)
    # proj fused: contract F (dim 0 of pooled) against proj_w (F, E) -> (n_tile, E)
    z = lax.dot_general(pooled.astype(jnp.bfloat16), pw_ref[...],
                        (((0,), (0,)), ((), ())),
                        preferred_element_type=jnp.float32) + pb_ref[...]
    o_ref[0] = z.astype(o_ref.dtype)


def cnn_proj_stage(rows, conv_w, conv_b, proj_w, proj_b):
    """rows: (N, K, HW) bf16 im2col slab (HW lane-dense). Returns (N, E) f32."""
    N, K, HW = rows.shape
    F = conv_w.shape[0]
    E = proj_w.shape[1]

    vmem_limit = _vmem_limit_bytes()
    per_image = 2 * K * HW * 2            # double-buffered bf16 input block
    n_tile = _choose_divisor_tile(N, per_image, vmem_limit // 2)
    steps = N // n_tile

    flops = 2 * N * HW * K * F + 2 * N * F * E
    bytes_accessed = (N * K * HW * 2 + (K * F + F * E) * 2
                      + (F + E) * 4 + N * E * 4)

    kernel = functools.partial(_cnn_stage_kernel, n_tile=n_tile)
    out = pl.pallas_call(
        kernel,
        # 3-D output (block covers full last-two dims) sidesteps the (8,128)
        # block constraint for arbitrary n_tile.
        out_shape=jax.ShapeDtypeStruct((steps, n_tile, E), jnp.float32),
        grid=(steps,),
        in_specs=[
            pl.BlockSpec((n_tile, K, HW), lambda i: (i, 0, 0)),
            pl.BlockSpec((F, K), lambda i: (0, 0)),
            pl.BlockSpec((F, 1), lambda i: (0, 0)),
            pl.BlockSpec((F, E), lambda i: (0, 0)),
            pl.BlockSpec((1, E), lambda i: (0, 0)),
        ],
        out_specs=pl.BlockSpec((1, n_tile, E), lambda i: (i, 0, 0)),
        compiler_params=pltpu.CompilerParams(
            dimension_semantics=("parallel",),
            vmem_limit_bytes=vmem_limit),
        cost_estimate=pl.CostEstimate(
            flops=flops, transcendentals=0, bytes_accessed=bytes_accessed),
    )(rows, conv_w, conv_b, proj_w, proj_b)
    return out.reshape(N, E)


# ----------------------------------------------------------------------------
# Kernel 2: fused transformer encoder block + patch pooling + final fc
# ----------------------------------------------------------------------------
def _transformer_fc_kernel(z_ref, ln1g_ref, ln1b_ref,
                           wq_ref, wk_ref, wv_ref, bq_ref, bk_ref, bv_ref,
                           aw_ref, ab_ref, ln2g_ref, ln2b_ref,
                           w1_ref, b1_ref, w2_ref, b2_ref,
                           fcw_ref, fcb_ref, o_ref, attn_buf,
                           *, b_tile, num_heads, eps):
    def layernorm(x, g_ref, b_ref):
        mu = jnp.mean(x, axis=-1, keepdims=True)
        xc = x - mu
        var = jnp.mean(xc * xc, axis=-1, keepdims=True)
        return xc * lax.rsqrt(var + eps) * g_ref[...] + b_ref[...]

    def dense(x, w_ref, b_ref):            # weights are pre-cast bf16
        return jnp.dot(x.astype(jnp.bfloat16), w_ref[...],
                       preferred_element_type=jnp.float32) + b_ref[...]

    _, P, E = z_ref.shape
    T = b_tile * P
    dh = E // num_heads
    scale = 1.0 / math.sqrt(dh)

    # Token activations for the whole batch-tile stay resident in VMEM.
    tok = z_ref[...].reshape(T, E)                        # (T, E) f32

    # --- pre-norm multi-head self-attention (GEMMs over all T tokens) ---
    xn = layernorm(tok, ln1g_ref, ln1b_ref)
    q = dense(xn, wq_ref, bq_ref)
    k = dense(xn, wk_ref, bk_ref)
    v = dense(xn, wv_ref, bv_ref)

    # Per-(batch, head) attention; never mixes tokens across batch elements.
    # Head outputs go straight into a preallocated VMEM scratch slab.
    # TODO(synk): for large b_tile*num_heads switch this static unroll to a
    #             batched dot_general / fori_loop to bound code size.
    for b in range(b_tile):
        r = b * P
        for h in range(num_heads):
            c = h * dh
            qh = q[r:r + P, c:c + dh]
            kh = k[r:r + P, c:c + dh]
            vh = v[r:r + P, c:c + dh]
            s = lax.dot_general(qh, kh, (((1,), (1,)), ((), ())),
                                preferred_element_type=jnp.float32) * scale
            s = s - jnp.max(s, axis=-1, keepdims=True)
            p = jnp.exp(s)
            p = p * pl.reciprocal(jnp.sum(p, axis=-1, keepdims=True),
                                  approx=True)
            attn_buf[r:r + P, c:c + dh] = jnp.dot(
                p, vh, preferred_element_type=jnp.float32)

    tok = tok + dense(attn_buf[...], aw_ref, ab_ref)

    # --- pre-norm MLP ---
    m = dense(layernorm(tok, ln2g_ref, ln2b_ref), w1_ref, b1_ref)
    m = jax.nn.gelu(m, approximate=True)
    tok = tok + dense(m, w2_ref, b2_ref)

    # --- per-batch-element mean pool over patches + final fc ---
    pooled = jnp.mean(tok.reshape(b_tile, P, E), axis=1)  # (b_tile, E)
    o_ref[0] = dense(pooled, fcw_ref, fcb_ref).astype(o_ref.dtype)


def transformer_fc_stage(z, params, *, num_heads, eps=1e-5):
    bs, P, E = z.shape
    Hm = params["mlp_w1"].shape[1]
    O = params["fc_w"].shape[1]
    assert E % num_heads == 0
    dh = E // num_heads

    f32, bf16 = jnp.float32, jnp.bfloat16
    qkv_w, qkv_b = params["qkv_w"], params["qkv_b"]
    weights = (
        params["ln1_g"].reshape(1, E).astype(f32),
        params["ln1_b"].reshape(1, E).astype(f32),
        qkv_w[:, :E].astype(bf16),                 # wq
        qkv_w[:, E:2 * E].astype(bf16),            # wk
        qkv_w[:, 2 * E:].astype(bf16),             # wv
        qkv_b[:E].reshape(1, E).astype(f32),
        qkv_b[E:2 * E].reshape(1, E).astype(f32),
        qkv_b[2 * E:].reshape(1, E).astype(f32),
        params["attn_proj_w"].astype(bf16),
        params["attn_proj_b"].reshape(1, E).astype(f32),
        params["ln2_g"].reshape(1, E).astype(f32),
        params["ln2_b"].reshape(1, E).astype(f32),
        params["mlp_w1"].astype(bf16),
        params["mlp_b1"].reshape(1, Hm).astype(f32),
        params["mlp_w2"].astype(bf16),
        params["mlp_b2"].reshape(1, E).astype(f32),
        params["fc_w"].astype(bf16),
        params["fc_b"].reshape(1, O).astype(f32),
    )

    vmem_limit = _vmem_limit_bytes()
    per_batch = P * (6 * E + Hm) * 4 + 2 * P * E * 4       # live acts + z block
    b_tile = _choose_divisor_tile(bs, per_batch, vmem_limit // 2)
    steps = bs // b_tile

    T = bs * P
    flops = (2 * T * E * 3 * E + 4 * bs * num_heads * P * P * dh
             + 2 * T * E * E + 4 * T * E * Hm + 2 * bs * E * O)
    transcendentals = bs * num_heads * P * P + T * Hm
    w_bytes = sum(int(w.size) * w.dtype.itemsize for w in weights)
    bytes_accessed = T * E * 4 + bs * O * 4 + w_bytes

    kernel = functools.partial(_transformer_fc_kernel, b_tile=b_tile,
                               num_heads=num_heads, eps=eps)
    out = pl.pallas_call(
        kernel,
        out_shape=jax.ShapeDtypeStruct((steps, b_tile, O), jnp.float32),
        grid=(steps,),
        in_specs=([pl.BlockSpec((b_tile, P, E), lambda i: (i, 0, 0))]
                  + [pl.BlockSpec(w.shape, lambda i: (0, 0)) for w in weights]),
        out_specs=pl.BlockSpec((1, b_tile, O), lambda i: (i, 0, 0)),
        scratch_shapes=[pltpu.VMEM((b_tile * P, E), jnp.float32)],
        compiler_params=pltpu.CompilerParams(
            dimension_semantics=("parallel",),
            vmem_limit_bytes=vmem_limit),
        cost_estimate=pl.CostEstimate(
            flops=flops, transcendentals=transcendentals,
            bytes_accessed=bytes_accessed),
    )(z, *weights)
    return out.reshape(bs, O)


# ----------------------------------------------------------------------------
# Model: parameters + forward
# ----------------------------------------------------------------------------
def init_params(key, in_c, cnn_feat, embed_dim, output_dim, mlp_hidden):
    ks = jax.random.split(key, 8)

    def dense_init(k, fan_in, shape):
        return jax.random.normal(k, shape, jnp.float32) / jnp.sqrt(float(fan_in))

    return dict(
        conv_w=dense_init(ks[0], in_c * 9, (in_c * 9, cnn_feat)),
        conv_b=jnp.zeros((cnn_feat,), jnp.float32),
        proj_w=dense_init(ks[1], cnn_feat, (cnn_feat, embed_dim)),
        proj_b=jnp.zeros((embed_dim,), jnp.float32),
        ln1_g=jnp.ones((embed_dim,), jnp.float32),
        ln1_b=jnp.zeros((embed_dim,), jnp.float32),
        qkv_w=dense_init(ks[2], embed_dim, (embed_dim, 3 * embed_dim)),
        qkv_b=jnp.zeros((3 * embed_dim,), jnp.float32),
        attn_proj_w=dense_init(ks[3], embed_dim, (embed_dim, embed_dim)),
        attn_proj_b=jnp.zeros((embed_dim,), jnp.float32),
        ln2_g=jnp.ones((embed_dim,), jnp.float32),
        ln2_b=jnp.zeros((embed_dim,), jnp.float32),
        mlp_w1=dense_init(ks[4], embed_dim, (embed_dim, mlp_hidden)),
        mlp_b1=jnp.zeros((mlp_hidden,), jnp.float32),
        mlp_w2=dense_init(ks[5], mlp_hidden, (mlp_hidden, embed_dim)),
        mlp_b2=jnp.zeros((embed_dim,), jnp.float32),
        fc_w=dense_init(ks[6], embed_dim, (embed_dim, output_dim)),
        fc_b=jnp.zeros((output_dim,), jnp.float32),
    )


def cnn_transformer_forward(x, params, *, num_heads):
    bs, num_patch, num_c, H, W = x.shape
    embed_dim = params["proj_w"].shape[1]
    N = bs * num_patch

    # --- CNN backbone stand-in (conv3x3 + ReLU + global avg pool; fc=Identity)
    # im2col is emitted directly in the (N, K, H*W) orientation the kernel
    # consumes (H*W lane-dense): no transpose pass over the 9x slab, and the
    # bf16 cast fuses into patch extraction.
    xi = x.reshape(N, num_c, H, W)
    patches = lax.conv_general_dilated_patches(
        xi, filter_shape=(3, 3), window_strides=(1, 1), padding="SAME")
    rows = patches.reshape(N, num_c * 9, H * W).astype(jnp.bfloat16)

    conv_w = params["conv_w"].T.astype(jnp.bfloat16)        # (F, K) bf16
    conv_b = params["conv_b"].reshape(-1, 1)                 # (F, 1) f32
    proj_w = params["proj_w"].astype(jnp.bfloat16)           # (F, E) bf16
    proj_b = params["proj_b"].reshape(1, -1)                 # (1, E) f32
    z = cnn_proj_stage(rows, conv_w, conv_b, proj_w, proj_b)
    z = z.reshape(bs, num_patch, embed_dim)

    # --- TemporalTransformer stand-in + final fc, fully fused in one kernel ---
    # NOTE: pl.reciprocal(approx=True) softmax, tanh-GELU and bf16 matmul
    # operands (f32 accumulation) are small, documented deviations from an
    # exact f32 PyTorch reference.
    return transformer_fc_stage(z, params, num_heads=num_heads)


if __name__ == "__main__":
    bs, num_patch, num_c, H, W = 2, 8, 4, 16, 16
    embed_dim, output_dim, num_heads = 32, 10, 4
    cnn_feat, mlp_hidden = 16, 128

    key = jax.random.PRNGKey(0)
    kx, kp = jax.random.split(key)
    x = jax.random.normal(kx, (bs, num_patch, num_c, H, W), jnp.float32)
    params = init_params(kp, num_c, cnn_feat, embed_dim, output_dim, mlp_hidden)

    fwd = jax.jit(functools.partial(cnn_transformer_forward, num_heads=num_heads))
    out = fwd(x, params)
    out = jax.block_until_ready(out)
    assert out.shape == (bs, output_dim), out.shape
    assert bool(jnp.all(jnp.isfinite(out)))
    print("KERNEL_OK")
</pallas_src>

<mosaic_0001>
module attributes {stable_mosaic.version = 11 : i64} {
  func.func @_cnn_stage_kernel(%arg0: i32, %arg1: memref<8x36x256xbf16, #tpu.memory_space<vmem>>, %arg2: memref<16x36xbf16, #tpu.memory_space<vmem>>, %arg3: memref<16x1xf32, #tpu.memory_space<vmem>>, %arg4: memref<16x32xbf16, #tpu.memory_space<vmem>>, %arg5: memref<1x32xf32, #tpu.memory_space<vmem>>, %arg6: memref<1x8x32xf32, #tpu.memory_space<vmem>>) attributes {dimension_semantics = [#tpu.dimension_semantics<parallel>], iteration_bounds = array<i64: 2>, scalar_prefetch = 0 : i64, scratch_operands = 0 : i64, tpu.core_type = #tpu.core_type<tc>, window_params = [{transform_indices = @transform_0, window_bounds = array<i64: 8, 36, 256>}, {pipeline_mode = #tpu.pipeline_mode<synchronous>, transform_indices = @transform_1, window_bounds = array<i64: 16, 36>}, {pipeline_mode = #tpu.pipeline_mode<synchronous>, transform_indices = @transform_2, window_bounds = array<i64: 16, 1>}, {pipeline_mode = #tpu.pipeline_mode<synchronous>, transform_indices = @transform_3, window_bounds = array<i64: 16, 32>}, {pipeline_mode = #tpu.pipeline_mode<synchronous>, transform_indices = @transform_4, window_bounds = array<i64: 1, 32>}, {transform_indices = @transform_5, window_bounds = array<i64: 1, 8, 32>}]} {
    %c0 = arith.constant 0 : index
    %c0_0 = arith.constant 0 : index
    %0 = vector.load %arg2[%c0, %c0_0] : memref<16x36xbf16, #tpu.memory_space<vmem>>, vector<16x36xbf16>
    %c0_1 = arith.constant 0 : index
    %c0_2 = arith.constant 0 : index
    %1 = vector.load %arg3[%c0_1, %c0_2] : memref<16x1xf32, #tpu.memory_space<vmem>>, vector<16x1xf32>
    %c0_3 = arith.constant 0 : index
    %c0_4 = arith.constant 0 : index
    %c0_5 = arith.constant 0 : index
    %2 = vector.load %arg1[%c0_3, %c0_4, %c0_5] : memref<8x36x256xbf16, #tpu.memory_space<vmem>>, vector<1x36x256xbf16>
    %3 = vector.shape_cast %2 : vector<1x36x256xbf16> to vector<36x256xbf16>
    %cst = arith.constant dense<0.000000e+00> : vector<16x256xf32>
    %4 = tpu.matmul %0, %3, %cst {dimension_numbers = #tpu.dot_dimension_numbers<[1], [0], [0], [1], [0, 0, 1, 1], [], []>} : vector<16x36xbf16>, vector<36x256xbf16>, vector<16x256xf32> -> vector<16x256xf32>
    %5 = vector.broadcast %1 : vector<16x1xf32> to vector<16x256xf32>
    %6 = arith.addf %4, %5 : vector<16x256xf32>
    %cst_6 = arith.constant 0.000000e+00 : f32
    %7 = vector.broadcast %cst_6 : f32 to vector<16x256xf32>
    %8 = arith.maximumf %6, %7 : vector<16x256xf32>
    %cst_7 = arith.constant dense<0.000000e+00> : vector<16xf32>
    %9 = vector.multi_reduction <add>, %8, %cst_7 [1] : vector<16x256xf32> to vector<16xf32>
    %10 = vector.shape_cast %9 : vector<16xf32> to vector<16x1xf32>
    %cst_8 = arith.constant 2.560000e+02 : f32
    %11 = vector.broadcast %cst_8 : f32 to vector<16x1xf32>
    %12 = arith.divf %10, %11 : vector<16x1xf32>
    %c1 = arith.constant 1 : index
    %c0_9 = arith.constant 0 : index
    %c0_10 = arith.constant 0 : index
    %13 = vector.load %arg1[%c1, %c0_9, %c0_10] : memref<8x36x256xbf16, #tpu.memory_space<vmem>>, vector<1x36x256xbf16>
    %14 = vector.shape_cast %13 : vector<1x36x256xbf16> to vector<36x256xbf16>
    %cst_11 = arith.constant dense<0.000000e+00> : vector<16x256xf32>
    %15 = tpu.matmul %0, %14, %cst_11 {dimension_numbers = #tpu.dot_dimension_numbers<[1], [0], [0], [1], [0, 0, 1, 1], [], []>} : vector<16x36xbf16>, vector<36x256xbf16>, vector<16x256xf32> -> vector<16x256xf32>
    %16 = vector.broadcast %1 : vector<16x1xf32> to vector<16x256xf32>
    %17 = arith.addf %15, %16 : vector<16x256xf32>
    %cst_12 = arith.constant 0.000000e+00 : f32
    %18 = vector.broadcast %cst_12 : f32 to vector<16x256xf32>
    %19 = arith.maximumf %17, %18 : vector<16x256xf32>
    %cst_13 = arith.constant dense<0.000000e+00> : vector<16xf32>
    %20 = vector.multi_reduction <add>, %19, %cst_13 [1] : vector<16x256xf32> to vector<16xf32>
    %21 = vector.shape_cast %20 : vector<16xf32> to vector<16x1xf32>
    %cst_14 = arith.constant 2.560000e+02 : f32
    %22 = vector.broadcast %cst_14 : f32 to vector<16x1xf32>
    %23 = arith.divf %21, %22 : vector<16x1xf32>
    %c2 = arith.constant 2 : index
    %c0_15 = arith.constant 0 : index
    %c0_16 = arith.constant 0 : index
    %24 = vector.load %arg1[%c2, %c0_15, %c0_16] : memref<8x36x256xbf16, #tpu.memory_space<vmem>>, vector<1x36x256xbf16>
    %25 = vector.shape_cast %24 : vector<1x36x256xbf16> to vector<36x256xbf16>
    %cst_17 = arith.constant dense<0.000000e+00> : vector<16x256xf32>
    %26 = tpu.matmul %0, %25, %cst_17 {dimension_numbers = #tpu.dot_dimension_numbers<[1], [0], [0], [1], [0, 0, 1, 1], [], []>} : vector<16x36xbf16>, vector<36x256xbf16>, vector<16x256xf32> -> vector<16x256xf32>
    %27 = vector.broadcast %1 : vector<16x1xf32> to vector<16x256xf32>
    %28 = arith.addf %26, %27 : vector<16x256xf32>
    %cst_18 = arith.constant 0.000000e+00 : f32
    %29 = vector.broadcast %cst_18 : f32 to vector<16x256xf32>
    %30 = arith.maximumf %28, %29 : vector<16x256xf32>
    %cst_19 = arith.constant dense<0.000000e+00> : vector<16xf32>
    %31 = vector.multi_reduction <add>, %30, %cst_19 [1] : vector<16x256xf32> to vector<16xf32>
    %32 = vector.shape_cast %31 : vector<16xf32> to vector<16x1xf32>
    %cst_20 = arith.constant 2.560000e+02 : f32
    %33 = vector.broadcast %cst_20 : f32 to vector<16x1xf32>
    %34 = arith.divf %32, %33 : vector<16x1xf32>
    %c3 = arith.constant 3 : index
    %c0_21 = arith.constant 0 : index
    %c0_22 = arith.constant 0 : index
    %35 = vector.load %arg1[%c3, %c0_21, %c0_22] : memref<8x36x256xbf16, #tpu.memory_space<vmem>>, vector<1x36x256xbf16>
    %36 = vector.shape_cast %35 : vector<1x36x256xbf16> to vector<36x256xbf16>
    %cst_23 = arith.constant dense<0.000000e+00> : vector<16x256xf32>
    %37 = tpu.matmul %0, %36, %cst_23 {dimension_numbers = #tpu.dot_dimension_numbers<[1], [0], [0], [1], [0, 0, 1, 1], [], []>} : vector<16x36xbf16>, vector<36x256xbf16>, vector<16x256xf32> -> vector<16x256xf32>
    %38 = vector.broadcast %1 : vector<16x1xf32> to vector<16x256xf32>
    %39 = arith.addf %37, %38 : vector<16x256xf32>
    %cst_24 = arith.constant 0.000000e+00 : f32
    %40 = vector.broadcast %cst_24 : f32 to vector<16x256xf32>
    %41 = arith.maximumf %39, %40 : vector<16x256xf32>
    %cst_25 = arith.constant dense<0.000000e+00> : vector<16xf32>
    %42 = vector.multi_reduction <add>, %41, %cst_25 [1] : vector<16x256xf32> to vector<16xf32>
    %43 = vector.shape_cast %42 : vector<16xf32> to vector<16x1xf32>
    %cst_26 = arith.constant 2.560000e+02 : f32
    %44 = vector.broadcast %cst_26 : f32 to vector<16x1xf32>
    %45 = arith.divf %43, %44 : vector<16x1xf32>
    %c4 = arith.constant 4 : index
    %c0_27 = arith.constant 0 : index
    %c0_28 = arith.constant 0 : index
    %46 = vector.load %arg1[%c4, %c0_27, %c0_28] : memref<8x36x256xbf16, #tpu.memory_space<vmem>>, vector<1x36x256xbf16>
    %47 = vector.shape_cast %46 : vector<1x36x256xbf16> to vector<36x256xbf16>
    %cst_29 = arith.constant dense<0.000000e+00> : vector<16x256xf32>
    %48 = tpu.matmul %0, %47, %cst_29 {dimension_numbers = #tpu.dot_dimension_numbers<[1], [0], [0], [1], [0, 0, 1, 1], [], []>} : vector<16x36xbf16>, vector<36x256xbf16>, vector<16x256xf32> -> vector<16x256xf32>
    %49 = vector.broadcast %1 : vector<16x1xf32> to vector<16x256xf32>
    %50 = arith.addf %48, %49 : vector<16x256xf32>
    %cst_30 = arith.constant 0.000000e+00 : f32
    %51 = vector.broadcast %cst_30 : f32 to vector<16x256xf32>
    %52 = arith.maximumf %50, %51 : vector<16x256xf32>
    %cst_31 = arith.constant dense<0.000000e+00> : vector<16xf32>
    %53 = vector.multi_reduction <add>, %52, %cst_31 [1] : vector<16x256xf32> to vector<16xf32>
    %54 = vector.shape_cast %53 : vector<16xf32> to vector<16x1xf32>
    %cst_32 = arith.constant 2.560000e+02 : f32
    %55 = vector.broadcast %cst_32 : f32 to vector<16x1xf32>
    %56 = arith.divf %54, %55 : vector<16x1xf32>
    %c5 = arith.constant 5 : index
    %c0_33 = arith.constant 0 : index
    %c0_34 = arith.constant 0 : index
    %57 = vector.load %arg1[%c5, %c0_33, %c0_34] : memref<8x36x256xbf16, #tpu.memory_space<vmem>>, vector<1x36x256xbf16>
    %58 = vector.shape_cast %57 : vector<1x36x256xbf16> to vector<36x256xbf16>
    %cst_35 = arith.constant dense<0.000000e+00> : vector<16x256xf32>
    %59 = tpu.matmul %0, %58, %cst_35 {dimension_numbers = #tpu.dot_dimension_numbers<[1], [0], [0], [1], [0, 0, 1, 1], [], []>} : vector<16x36xbf16>, vector<36x256xbf16>, vector<16x256xf32> -> vector<16x256xf32>
    %60 = vector.broadcast %1 : vector<16x1xf32> to vector<16x256xf32>
    %61 = arith.addf %59, %60 : vector<16x256xf32>
    %cst_36 = arith.constant 0.000000e+00 : f32
    %62 = vector.broadcast %cst_36 : f32 to vector<16x256xf32>
    %63 = arith.maximumf %61, %62 : vector<16x256xf32>
    %cst_37 = arith.constant dense<0.000000e+00> : vector<16xf32>
    %64 = vector.multi_reduction <add>, %63, %cst_37 [1] : vector<16x256xf32> to vector<16xf32>
    %65 = vector.shape_cast %64 : vector<16xf32> to vector<16x1xf32>
    %cst_38 = arith.constant 2.560000e+02 : f32
    %66 = vector.broadcast %cst_38 : f32 to vector<16x1xf32>
    %67 = arith.divf %65, %66 : vector<16x1xf32>
    %c6 = arith.constant 6 : index
    %c0_39 = arith.constant 0 : index
    %c0_40 = arith.constant 0 : index
    %68 = vector.load %arg1[%c6, %c0_39, %c0_40] : memref<8x36x256xbf16, #tpu.memory_space<vmem>>, vector<1x36x256xbf16>
    %69 = vector.shape_cast %68 : vector<1x36x256xbf16> to vector<36x256xbf16>
    %cst_41 = arith.constant dense<0.000000e+00> : vector<16x256xf32>
    %70 = tpu.matmul %0, %69, %cst_41 {dimension_numbers = #tpu.dot_dimension_numbers<[1], [0], [0], [1], [0, 0, 1, 1], [], []>} : vector<16x36xbf16>, vector<36x256xbf16>, vector<16x256xf32> -> vector<16x256xf32>
    %71 = vector.broadcast %1 : vector<16x1xf32> to vector<16x256xf32>
    %72 = arith.addf %70, %71 : vector<16x256xf32>
    %cst_42 = arith.constant 0.000000e+00 : f32
    %73 = vector.broadcast %cst_42 : f32 to vector<16x256xf32>
    %74 = arith.maximumf %72, %73 : vector<16x256xf32>
    %cst_43 = arith.constant dense<0.000000e+00> : vector<16xf32>
    %75 = vector.multi_reduction <add>, %74, %cst_43 [1] : vector<16x256xf32> to vector<16xf32>
    %76 = vector.shape_cast %75 : vector<16xf32> to vector<16x1xf32>
    %cst_44 = arith.constant 2.560000e+02 : f32
    %77 = vector.broadcast %cst_44 : f32 to vector<16x1xf32>
    %78 = arith.divf %76, %77 : vector<16x1xf32>
    %c7 = arith.constant 7 : index
    %c0_45 = arith.constant 0 : index
    %c0_46 = arith.constant 0 : index
    %79 = vector.load %arg1[%c7, %c0_45, %c0_46] : memref<8x36x256xbf16, #tpu.memory_space<vmem>>, vector<1x36x256xbf16>
    %80 = vector.shape_cast %79 : vector<1x36x256xbf16> to vector<36x256xbf16>
    %cst_47 = arith.constant dense<0.000000e+00> : vector<16x256xf32>
    %81 = tpu.matmul %0, %80, %cst_47 {dimension_numbers = #tpu.dot_dimension_numbers<[1], [0], [0], [1], [0, 0, 1, 1], [], []>} : vector<16x36xbf16>, vector<36x256xbf16>, vector<16x256xf32> -> vector<16x256xf32>
    %82 = vector.broadcast %1 : vector<16x1xf32> to vector<16x256xf32>
    %83 = arith.addf %81, %82 : vector<16x256xf32>
    %cst_48 = arith.constant 0.000000e+00 : f32
    %84 = vector.broadcast %cst_48 : f32 to vector<16x256xf32>
    %85 = arith.maximumf %83, %84 : vector<16x256xf32>
    %cst_49 = arith.constant dense<0.000000e+00> : vector<16xf32>
    %86 = vector.multi_reduction <add>, %85, %cst_49 [1] : vector<16x256xf32> to vector<16xf32>
    %87 = vector.shape_cast %86 : vector<16xf32> to vector<16x1xf32>
    %cst_50 = arith.constant 2.560000e+02 : f32
    %88 = vector.broadcast %cst_50 : f32 to vector<16x1xf32>
    %89 = arith.divf %87, %88 : vector<16x1xf32>
    %90 = tpu.concatenate %12, %23, %34, %45, %56, %67, %78, %89 in 1 : vector<16x1xf32>, vector<16x1xf32>, vector<16x1xf32>, vector<16x1xf32>, vector<16x1xf32>, vector<16x1xf32>, vector<16x1xf32>, vector<16x1xf32> -> vector<16x8xf32>
    %91 = arith.truncf %90 : vector<16x8xf32> to vector<16x8xbf16>
    %c0_51 = arith.constant 0 : index
    %c0_52 = arith.constant 0 : index
    %92 = vector.load %arg4[%c0_51, %c0_52] : memref<16x32xbf16, #tpu.memory_space<vmem>>, vector<16x32xbf16>
    %cst_53 = arith.constant dense<0.000000e+00> : vector<8x32xf32>
    %93 = tpu.matmul %91, %92, %cst_53 {dimension_numbers = #tpu.dot_dimension_numbers<[0], [0], [1], [1], [0, 1, 1, 1], [], []>} : vector<16x8xbf16>, vector<16x32xbf16>, vector<8x32xf32> -> vector<8x32xf32>
    %c0_54 = arith.constant 0 : index
    %c0_55 = arith.constant 0 : index
    %94 = vector.load %arg5[%c0_54, %c0_55] : memref<1x32xf32, #tpu.memory_space<vmem>>, vector<1x32xf32>
    %95 = vector.broadcast %94 : vector<1x32xf32> to vector<8x32xf32>
    %96 = arith.addf %93, %95 : vector<8x32xf32>
    %c0_56 = arith.constant 0 : index
    %c0_57 = arith.constant 0 : index
    %c0_58 = arith.constant 0 : index
    %97 = vector.load %arg6[%c0_56, %c0_57, %c0_58] : memref<1x8x32xf32, #tpu.memory_space<vmem>>, vector<1x8x32xf32>
    %98 = vector.shape_cast %97 : vector<1x8x32xf32> to vector<8x32xf32>
    %99 = vector.shape_cast %96 : vector<8x32xf32> to vector<1x8x32xf32>
    tpu.vector_store %arg6[%c0_56, %c0_57, %c0_58], %99 {strides = array<i32>} : memref<1x8x32xf32, #tpu.memory_space<vmem>>, vector<1x8x32xf32>,
    return
  }
  func.func @transform_0(%arg0: i32) -> (i32, i32, i32) {
    %c0_i32 = arith.constant 0 : i32
    %c0_i32_0 = arith.constant 0 : i32
    %c0_i32_1 = arith.constant 0 : i32
    return %arg0, %c0_i32, %c0_i32_0 : i32, i32, i32
  }
  func.func @transform_1(%arg0: i32) -> (i32, i32) {
    %c0_i32 = arith.constant 0 : i32
    %c0_i32_0 = arith.constant 0 : i32
    %c0_i32_1 = arith.constant 0 : i32
    return %c0_i32, %c0_i32_0 : i32, i32
  }
  func.func @transform_2(%arg0: i32) -> (i32, i32) {
    %c0_i32 = arith.constant 0 : i32
    %c0_i32_0 = arith.constant 0 : i32
    %c0_i32_1 = arith.constant 0 : i32
    return %c0_i32, %c0_i32_0 : i32, i32
  }
  func.func @transform_3(%arg0: i32) -> (i32, i32) {
    %c0_i32 = arith.constant 0 : i32
    %c0_i32_0 = arith.constant 0 : i32
    %c0_i32_1 = arith.constant 0 : i32
    return %c0_i32, %c0_i32_0 : i32, i32
  }
  func.func @transform_4(%arg0: i32) -> (i32, i32) {
    %c0_i32 = arith.constant 0 : i32
    %c0_i32_0 = arith.constant 0 : i32
    %c0_i32_1 = arith.constant 0 : i32
    return %c0_i32, %c0_i32_0 : i32, i32
  }
  func.func @transform_5(%arg0: i32) -> (i32, i32, i32) {
    %c0_i32 = arith.constant 0 : i32
    %c0_i32_0 = arith.constant 0 : i32
    %c0_i32_1 = arith.constant 0 : i32
    return %arg0, %c0_i32, %c0_i32_0 : i32, i32, i32
  }
}

module attributes {stable_mosaic.version = 11 : i64} {
  func.func @_transformer_fc_kernel(%arg0: i32, %arg1: memref<1x8x32xf32, #tpu.memory_space<vmem>>, %arg2: memref<1x32xf32, #tpu.memory_space<vmem>>, %arg3: memref<1x32xf32, #tpu.memory_space<vmem>>, %arg4: memref<32x32xbf16, #tpu.memory_space<vmem>>, %arg5: memref<32x32xbf16, #tpu.memory_space<vmem>>, %arg6: memref<32x32xbf16, #tpu.memory_space<vmem>>, %arg7: memref<1x32xf32, #tpu.memory_space<vmem>>, %arg8: memref<1x32xf32, #tpu.memory_space<vmem>>, %arg9: memref<1x32xf32, #tpu.memory_space<vmem>>, %arg10: memref<32x32xbf16, #tpu.memory_space<vmem>>, %arg11: memref<1x32xf32, #tpu.memory_space<vmem>>, %arg12: memref<1x32xf32, #tpu.memory_space<vmem>>, %arg13: memref<1x32xf32, #tpu.memory_space<vmem>>, %arg14: memref<32x128xbf16, #tpu.memory_space<vmem>>, %arg15: memref<1x128xf32, #tpu.memory_space<vmem>>, %arg16: memref<128x32xbf16, #tpu.memory_space<vmem>>, %arg17: memref<1x32xf32, #tpu.memory_space<vmem>>, %arg18: memref<32x10xbf16, #tpu.memory_space<vmem>>, %arg19: memref<1x10xf32, #tpu.memory_space<vmem>>, %arg20: memref<1x1x10xf32, #tpu.memory_space<vmem>>, %arg21: memref<8x32xf32, #tpu.memory_space<vmem>>) attributes {dimension_semantics = [#tpu.dimension_semantics<parallel>], iteration_bounds = array<i64: 2>, scalar_prefetch = 0 : i64, scratch_operands = 1 : i64, tpu.core_type = #tpu.core_type<tc>, window_params = [{transform_indices = @transform_0, window_bounds = array<i64: 1, 8, 32>}, {pipeline_mode = #tpu.pipeline_mode<synchronous>, transform_indices = @transform_1, window_bounds = array<i64: 1, 32>}, {pipeline_mode = #tpu.pipeline_mode<synchronous>, transform_indices = @transform_2, window_bounds = array<i64: 1, 32>}, {pipeline_mode = #tpu.pipeline_mode<synchronous>, transform_indices = @transform_3, window_bounds = array<i64: 32, 32>}, {pipeline_mode = #tpu.pipeline_mode<synchronous>, transform_indices = @transform_4, window_bounds = array<i64: 32, 32>}, {pipeline_mode = #tpu.pipeline_mode<synchronous>, transform_indices = @transform_5, window_bounds = array<i64: 32, 32>}, {pipeline_mode = #tpu.pipeline_mode<synchronous>, transform_indices = @transform_6, window_bounds = array<i64: 1, 32>}, {pipeline_mode = #tpu.pipeline_mode<synchronous>, transform_indices = @transform_7, window_bounds = array<i64: 1, 32>}, {pipeline_mode = #tpu.pipeline_mode<synchronous>, transform_indices = @transform_8, window_bounds = array<i64: 1, 32>}, {pipeline_mode = #tpu.pipeline_mode<synchronous>, transform_indices = @transform_9, window_bounds = array<i64: 32, 32>}, {pipeline_mode = #tpu.pipeline_mode<synchronous>, transform_indices = @transform_10, window_bounds = array<i64: 1, 32>}, {pipeline_mode = #tpu.pipeline_mode<synchronous>, transform_indices = @transform_11, window_bounds = array<i64: 1, 32>}, {pipeline_mode = #tpu.pipeline_mode<synchronous>, transform_indices = @transform_12, window_bounds = array<i64: 1, 32>}, {pipeline_mode = #tpu.pipeline_mode<synchronous>, transform_indices = @transform_13, window_bounds = array<i64: 32, 128>}, {pipeline_mode = #tpu.pipeline_mode<synchronous>, transform_indices = @transform_14, window_bounds = array<i64: 1, 128>}, {pipeline_mode = #tpu.pipeline_mode<synchronous>, transform_indices = @transform_15, window_bounds = array<i64: 128, 32>}, {pipeline_mode = #tpu.pipeline_mode<synchronous>, transform_indices = @transform_16, window_bounds = array<i64: 1, 32>}, {pipeline_mode = #tpu.pipeline_mode<synchronous>, transform_indices = @transform_17, window_bounds = array<i64: 32, 10>}, {pipeline_mode = #tpu.pipeline_mode<synchronous>, transform_indices = @transform_18, window_bounds = array<i64: 1, 10>}, {transform_indices = @transform_19, window_bounds = array<i64: 1, 1, 10>}]} {
    %c0 = arith.constant 0 : index
    %c0_0 = arith.constant 0 : index
    %c0_1 = arith.constant 0 : index
    %0 = vector.load %arg1[%c0, %c0_0, %c0_1] : memref<1x8x32xf32, #tpu.memory_space<vmem>>, vector<1x8x32xf32>
    %1 = vector.shape_cast %0 : vector<1x8x32xf32> to vector<8x32xf32>
    %cst = arith.constant dense<0.000000e+00> : vector<8xf32>
    %2 = vector.multi_reduction <add>, %1, %cst [1] : vector<8x32xf32> to vector<8xf32>
    %3 = vector.shape_cast %2 : vector<8xf32> to vector<8x1xf32>
    %cst_2 = arith.constant 3.200000e+01 : f32
    %4 = vector.broadcast %cst_2 : f32 to vector<8x1xf32>
    %5 = arith.divf %3, %4 : vector<8x1xf32>
    %6 = vector.broadcast %5 : vector<8x1xf32> to vector<8x32xf32>
    %7 = arith.subf %1, %6 : vector<8x32xf32>
    %8 = arith.mulf %7, %7 : vector<8x32xf32>
    %cst_3 = arith.constant dense<0.000000e+00> : vector<8xf32>
    %9 = vector.multi_reduction <add>, %8, %cst_3 [1] : vector<8x32xf32> to vector<8xf32>
    %10 = vector.shape_cast %9 : vector<8xf32> to vector<8x1xf32>
    %cst_4 = arith.constant 3.200000e+01 : f32
    %11 = vector.broadcast %cst_4 : f32 to vector<8x1xf32>
    %12 = arith.divf %10, %11 : vector<8x1xf32>
    %cst_5 = arith.constant 9.99999974E-6 : f32
    %13 = vector.broadcast %cst_5 : f32 to vector<8x1xf32>
    %14 = arith.addf %12, %13 : vector<8x1xf32>
    %15 = math.rsqrt %14 : vector<8x1xf32>
    %16 = vector.broadcast %15 : vector<8x1xf32> to vector<8x32xf32>
    %17 = arith.mulf %7, %16 : vector<8x32xf32>
    %c0_6 = arith.constant 0 : index
    %c0_7 = arith.constant 0 : index
    %18 = vector.load %arg2[%c0_6, %c0_7] : memref<1x32xf32, #tpu.memory_space<vmem>>, vector<1x32xf32>
    %19 = vector.broadcast %18 : vector<1x32xf32> to vector<8x32xf32>
    %20 = arith.mulf %17, %19 : vector<8x32xf32>
    %c0_8 = arith.constant 0 : index
    %c0_9 = arith.constant 0 : index
    %21 = vector.load %arg3[%c0_8, %c0_9] : memref<1x32xf32, #tpu.memory_space<vmem>>, vector<1x32xf32>
    %22 = vector.broadcast %21 : vector<1x32xf32> to vector<8x32xf32>
    %23 = arith.addf %20, %22 : vector<8x32xf32>
    %24 = arith.truncf %23 : vector<8x32xf32> to vector<8x32xbf16>
    %c0_10 = arith.constant 0 : index
    %c0_11 = arith.constant 0 : index
    %25 = vector.load %arg4[%c0_10, %c0_11] : memref<32x32xbf16, #tpu.memory_space<vmem>>, vector<32x32xbf16>
    %cst_12 = arith.constant dense<0.000000e+00> : vector<8x32xf32>
    %26 = tpu.matmul %24, %25, %cst_12 {dimension_numbers = #tpu.dot_dimension_numbers<[1], [0], [0], [1], [0, 0, 1, 1], [], []>} : vector<8x32xbf16>, vector<32x32xbf16>, vector<8x32xf32> -> vector<8x32xf32>
    %c0_13 = arith.constant 0 : index
    %c0_14 = arith.constant 0 : index
    %27 = vector.load %arg7[%c0_13, %c0_14] : memref<1x32xf32, #tpu.memory_space<vmem>>, vector<1x32xf32>
    %28 = vector.broadcast %27 : vector<1x32xf32> to vector<8x32xf32>
    %29 = arith.addf %26, %28 : vector<8x32xf32>
    %30 = arith.truncf %23 : vector<8x32xf32> to vector<8x32xbf16>
    %c0_15 = arith.constant 0 : index
    %c0_16 = arith.constant 0 : index
    %31 = vector.load %arg5[%c0_15, %c0_16] : memref<32x32xbf16, #tpu.memory_space<vmem>>, vector<32x32xbf16>
    %cst_17 = arith.constant dense<0.000000e+00> : vector<8x32xf32>
    %32 = tpu.matmul %30, %31, %cst_17 {dimension_numbers = #tpu.dot_dimension_numbers<[1], [0], [0], [1], [0, 0, 1, 1], [], []>} : vector<8x32xbf16>, vector<32x32xbf16>, vector<8x32xf32> -> vector<8x32xf32>
    %c0_18 = arith.constant 0 : index
    %c0_19 = arith.constant 0 : index
    %33 = vector.load %arg8[%c0_18, %c0_19] : memref<1x32xf32, #tpu.memory_space<vmem>>, vector<1x32xf32>
    %34 = vector.broadcast %33 : vector<1x32xf32> to vector<8x32xf32>
    %35 = arith.addf %32, %34 : vector<8x32xf32>
    %36 = arith.truncf %23 : vector<8x32xf32> to vector<8x32xbf16>
    %c0_20 = arith.constant 0 : index
    %c0_21 = arith.constant 0 : index
    %37 = vector.load %arg6[%c0_20, %c0_21] : memref<32x32xbf16, #tpu.memory_space<vmem>>, vector<32x32xbf16>
    %cst_22 = arith.constant dense<0.000000e+00> : vector<8x32xf32>
    %38 = tpu.matmul %36, %37, %cst_22 {dimension_numbers = #tpu.dot_dimension_numbers<[1], [0], [0], [1], [0, 0, 1, 1], [], []>} : vector<8x32xbf16>, vector<32x32xbf16>, vector<8x32xf32> -> vector<8x32xf32>
    %c0_23 = arith.constant 0 : index
    %c0_24 = arith.constant 0 : index
    %39 = vector.load %arg9[%c0_23, %c0_24] : memref<1x32xf32, #tpu.memory_space<vmem>>, vector<1x32xf32>
    %40 = vector.broadcast %39 : vector<1x32xf32> to vector<8x32xf32>
    %41 = arith.addf %38, %40 : vector<8x32xf32>
    %42 = vector.extract_strided_slice %29 {offsets = [0, 0], sizes = [8, 8], strides = [1, 1]} : vector<8x32xf32> to vector<8x8xf32>
    %43 = vector.extract_strided_slice %35 {offsets = [0, 0], sizes = [8, 8], strides = [1, 1]} : vector<8x32xf32> to vector<8x8xf32>
    %44 = vector.extract_strided_slice %41 {offsets = [0, 0], sizes = [8, 8], strides = [1, 1]} : vector<8x32xf32> to vector<8x8xf32>
    %cst_25 = arith.constant dense<0.000000e+00> : vector<8x8xf32>
    %45 = tpu.matmul %42, %43, %cst_25 {dimension_numbers = #tpu.dot_dimension_numbers<[1], [1], [0], [0], [0, 0, 1, 0], [], []>} : vector<8x8xf32>, vector<8x8xf32>, vector<8x8xf32> -> vector<8x8xf32>
    %cst_26 = arith.constant 0.353553385 : f32
    %46 = vector.broadcast %cst_26 : f32 to vector<8x8xf32>
    %47 = arith.mulf %45, %46 : vector<8x8xf32>
    %cst_27 = arith.constant dense<0xFF800000> : vector<8xf32>
    %48 = vector.multi_reduction <maximumf>, %47, %cst_27 [1] : vector<8x8xf32> to vector<8xf32>
    %49 = vector.shape_cast %48 : vector<8xf32> to vector<8x1xf32>
    %50 = vector.broadcast %49 : vector<8x1xf32> to vector<8x8xf32>
    %51 = arith.subf %47, %50 : vector<8x8xf32>
    %52 = math.exp %51 : vector<8x8xf32>
    %cst_28 = arith.constant dense<0.000000e+00> : vector<8xf32>
    %53 = vector.multi_reduction <add>, %52, %cst_28 [1] : vector<8x8xf32> to vector<8xf32>
    %54 = vector.shape_cast %53 : vector<8xf32> to vector<8x1xf32>
    %55 = tpu.reciprocal %54 {approx = true} : vector<8x1xf32> -> vector<8x1xf32>
    %56 = vector.broadcast %55 : vector<8x1xf32> to vector<8x8xf32>
    %57 = arith.mulf %52, %56 : vector<8x8xf32>
    %cst_29 = arith.constant dense<0.000000e+00> : vector<8x8xf32>
    %58 = tpu.matmul %57, %44, %cst_29 {dimension_numbers = #tpu.dot_dimension_numbers<[1], [0], [0], [1], [0, 0, 1, 1], [], []>} : vector<8x8xf32>, vector<8x8xf32>, vector<8x8xf32> -> vector<8x8xf32>
    %c0_30 = arith.constant 0 : index
    %c0_31 = arith.constant 0 : index
    %59 = vector.load %arg21[%c0_30, %c0_31] : memref<8x32xf32, #tpu.memory_space<vmem>>, vector<8x8xf32>
    tpu.vector_store %arg21[%c0_30, %c0_31], %58 {strides = array<i32>} : memref<8x32xf32, #tpu.memory_space<vmem>>, vector<8x8xf32>,
    %60 = vector.extract_strided_slice %29 {offsets = [0, 8], sizes = [8, 8], strides = [1, 1]} : vector<8x32xf32> to vector<8x8xf32>
    %61 = vector.extract_strided_slice %35 {offsets = [0, 8], sizes = [8, 8], strides = [1, 1]} : vector<8x32xf32> to vector<8x8xf32>
    %62 = vector.extract_strided_slice %41 {offsets = [0, 8], sizes = [8, 8], strides = [1, 1]} : vector<8x32xf32> to vector<8x8xf32>
    %cst_32 = arith.constant dense<0.000000e+00> : vector<8x8xf32>
    %63 = tpu.matmul %60, %61, %cst_32 {dimension_numbers = #tpu.dot_dimension_numbers<[1], [1], [0], [0], [0, 0, 1, 0], [], []>} : vector<8x8xf32>, vector<8x8xf32>, vector<8x8xf32> -> vector<8x8xf32>
    %cst_33 = arith.constant 0.353553385 : f32
    %64 = vector.broadcast %cst_33 : f32 to vector<8x8xf32>
    %65 = arith.mulf %63, %64 : vector<8x8xf32>
    %cst_34 = arith.constant dense<0xFF800000> : vector<8xf32>
    %66 = vector.multi_reduction <maximumf>, %65, %cst_34 [1] : vector<8x8xf32> to vector<8xf32>
    %67 = vector.shape_cast %66 : vector<8xf32> to vector<8x1xf32>
    %68 = vector.broadcast %67 : vector<8x1xf32> to vector<8x8xf32>
    %69 = arith.subf %65, %68 : vector<8x8xf32>
    %70 = math.exp %69 : vector<8x8xf32>
    %cst_35 = arith.constant dense<0.000000e+00> : vector<8xf32>
    %71 = vector.multi_reduction <add>, %70, %cst_35 [1] : vector<8x8xf32> to vector<8xf32>
    %72 = vector.shape_cast %71 : vector<8xf32> to vector<8x1xf32>
    %73 = tpu.reciprocal %72 {approx = true} : vector<8x1xf32> -> vector<8x1xf32>
    %74 = vector.broadcast %73 : vector<8x1xf32> to vector<8x8xf32>
    %75 = arith.mulf %70, %74 : vector<8x8xf32>
    %cst_36 = arith.constant dense<0.000000e+00> : vector<8x8xf32>
    %76 = tpu.matmul %75, %62, %cst_36 {dimension_numbers = #tpu.dot_dimension_numbers<[1], [0], [0], [1], [0, 0, 1, 1], [], []>} : vector<8x8xf32>, vector<8x8xf32>, vector<8x8xf32> -> vector<8x8xf32>
    %c0_37 = arith.constant 0 : index
    %c8 = arith.constant 8 : index
    %77 = vector.load %arg21[%c0_37, %c8] : memref<8x32xf32, #tpu.memory_space<vmem>>, vector<8x8xf32>
    tpu.vector_store %arg21[%c0_37, %c8], %76 {strides = array<i32>} : memref<8x32xf32, #tpu.memory_space<vmem>>, vector<8x8xf32>,
    %78 = vector.extract_strided_slice %29 {offsets = [0, 16], sizes = [8, 8], strides = [1, 1]} : vector<8x32xf32> to vector<8x8xf32>
    %79 = vector.extract_strided_slice %35 {offsets = [0, 16], sizes = [8, 8], strides = [1, 1]} : vector<8x32xf32> to vector<8x8xf32>
    %80 = vector.extract_strided_slice %41 {offsets = [0, 16], sizes = [8, 8], strides = [1, 1]} : vector<8x32xf32> to vector<8x8xf32>
    %cst_38 = arith.constant dense<0.000000e+00> : vector<8x8xf32>
    %81 = tpu.matmul %78, %79, %cst_38 {dimension_numbers = #tpu.dot_dimension_numbers<[1], [1], [0], [0], [0, 0, 1, 0], [], []>} : vector<8x8xf32>, vector<8x8xf32>, vector<8x8xf32> -> vector<8x8xf32>
    %cst_39 = arith.constant 0.353553385 : f32
    %82 = vector.broadcast %cst_39 : f32 to vector<8x8xf32>
    %83 = arith.mulf %81, %82 : vector<8x8xf32>
    %cst_40 = arith.constant dense<0xFF800000> : vector<8xf32>
    %84 = vector.multi_reduction <maximumf>, %83, %cst_40 [1] : vector<8x8xf32> to vector<8xf32>
    %85 = vector.shape_cast %84 : vector<8xf32> to vector<8x1xf32>
    %86 = vector.broadcast %85 : vector<8x1xf32> to vector<8x8xf32>
    %87 = arith.subf %83, %86 : vector<8x8xf32>
    %88 = math.exp %87 : vector<8x8xf32>
    %cst_41 = arith.constant dense<0.000000e+00> : vector<8xf32>
    %89 = vector.multi_reduction <add>, %88, %cst_41 [1] : vector<8x8xf32> to vector<8xf32>
    %90 = vector.shape_cast %89 : vector<8xf32> to vector<8x1xf32>
    %91 = tpu.reciprocal %90 {approx = true} : vector<8x1xf32> -> vector<8x1xf32>
    %92 = vector.broadcast %91 : vector<8x1xf32> to vector<8x8xf32>
    %93 = arith.mulf %88, %92 : vector<8x8xf32>
    %cst_42 = arith.constant dense<0.000000e+00> : vector<8x8xf32>
    %94 = tpu.matmul %93, %80, %cst_42 {dimension_numbers = #tpu.dot_dimension_numbers<[1], [0], [0], [1], [0, 0, 1, 1], [], []>} : vector<8x8xf32>, vector<8x8xf32>, vector<8x8xf32> -> vector<8x8xf32>
    %c0_43 = arith.constant 0 : index
    %c16 = arith.constant 16 : index
    %95 = vector.load %arg21[%c0_43, %c16] : memref<8x32xf32, #tpu.memory_space<vmem>>, vector<8x8xf32>
    tpu.vector_store %arg21[%c0_43, %c16], %94 {strides = array<i32>} : memref<8x32xf32, #tpu.memory_space<vmem>>, vector<8x8xf32>,
    %96 = vector.extract_strided_slice %29 {offsets = [0, 24], sizes = [8, 8], strides = [1, 1]} : vector<8x32xf32> to vector<8x8xf32>
    %97 = vector.extract_strided_slice %35 {offsets = [0, 24], sizes = [8, 8], strides = [1, 1]} : vector<8x32xf32> to vector<8x8xf32>
    %98 = vector.extract_strided_slice %41 {offsets = [0, 24], sizes = [8, 8], strides = [1, 1]} : vector<8x32xf32> to vector<8x8xf32>
    %cst_44 = arith.constant dense<0.000000e+00> : vector<8x8xf32>
    %99 = tpu.matmul %96, %97, %cst_44 {dimension_numbers = #tpu.dot_dimension_numbers<[1], [1], [0], [0], [0, 0, 1, 0], [], []>} : vector<8x8xf32>, vector<8x8xf32>, vector<8x8xf32> -> vector<8x8xf32>
    %cst_45 = arith.constant 0.353553385 : f32
    %100 = vector.broadcast %cst_45 : f32 to vector<8x8xf32>
    %101 = arith.mulf %99, %100 : vector<8x8xf32>
    %cst_46 = arith.constant dense<0xFF800000> : vector<8xf32>
    %102 = vector.multi_reduction <maximumf>, %101, %cst_46 [1] : vector<8x8xf32> to vector<8xf32>
    %103 = vector.shape_cast %102 : vector<8xf32> to vector<8x1xf32>
    %104 = vector.broadcast %103 : vector<8x1xf32> to vector<8x8xf32>
    %105 = arith.subf %101, %104 : vector<8x8xf32>
    %106 = math.exp %105 : vector<8x8xf32>
    %cst_47 = arith.constant dense<0.000000e+00> : vector<8xf32>
    %107 = vector.multi_reduction <add>, %106, %cst_47 [1] : vector<8x8xf32> to vector<8xf32>
    %108 = vector.shape_cast %107 : vector<8xf32> to vector<8x1xf32>
    %109 = tpu.reciprocal %108 {approx = true} : vector<8x1xf32> -> vector<8x1xf32>
    %110 = vector.broadcast %109 : vector<8x1xf32> to vector<8x8xf32>
    %111 = arith.mulf %106, %110 : vector<8x8xf32>
    %cst_48 = arith.constant dense<0.000000e+00> : vector<8x8xf32>
    %112 = tpu.matmul %111, %98, %cst_48 {dimension_numbers = #tpu.dot_dimension_numbers<[1], [0], [0], [1], [0, 0, 1, 1], [], []>} : vector<8x8xf32>, vector<8x8xf32>, vector<8x8xf32> -> vector<8x8xf32>
    %c0_49 = arith.constant 0 : index
    %c24 = arith.constant 24 : index
    %113 = vector.load %arg21[%c0_49, %c24] : memref<8x32xf32, #tpu.memory_space<vmem>>, vector<8x8xf32>
    tpu.vector_store %arg21[%c0_49, %c24], %112 {strides = array<i32>} : memref<8x32xf32, #tpu.memory_space<vmem>>, vector<8x8xf32>,
    %c0_50 = arith.constant 0 : index
    %c0_51 = arith.constant 0 : index
    %114 = vector.load %arg21[%c0_50, %c0_51] : memref<8x32xf32, #tpu.memory_space<vmem>>, vector<8x32xf32>
    %115 = arith.truncf %114 : vector<8x32xf32> to vector<8x32xbf16>
    %c0_52 = arith.constant 0 : index
    %c0_53 = arith.constant 0 : index
    %116 = vector.load %arg10[%c0_52, %c0_53] : memref<32x32xbf16, #tpu.memory_space<vmem>>, vector<32x32xbf16>
    %cst_54 = arith.constant dense<0.000000e+00> : vector<8x32xf32>
    %117 = tpu.matmul %115, %116, %cst_54 {dimension_numbers = #tpu.dot_dimension_numbers<[1], [0], [0], [1], [0, 0, 1, 1], [], []>} : vector<8x32xbf16>, vector<32x32xbf16>, vector<8x32xf32> -> vector<8x32xf32>
    %c0_55 = arith.constant 0 : index
    %c0_56 = arith.constant 0 : index
    %118 = vector.load %arg11[%c0_55, %c0_56] : memref<1x32xf32, #tpu.memory_space<vmem>>, vector<1x32xf32>
    %119 = vector.broadcast %118 : vector<1x32xf32> to vector<8x32xf32>
    %120 = arith.addf %117, %119 : vector<8x32xf32>
    %121 = arith.addf %1, %120 : vector<8x32xf32>
    %cst_57 = arith.constant dense<0.000000e+00> : vector<8xf32>
    %122 = vector.multi_reduction <add>, %121, %cst_57 [1] : vector<8x32xf32> to vector<8xf32>
    %123 = vector.shape_cast %122 : vector<8xf32> to vector<8x1xf32>
    %cst_58 = arith.constant 3.200000e+01 : f32
    %124 = vector.broadcast %cst_58 : f32 to vector<8x1xf32>
    %125 = arith.divf %123, %124 : vector<8x1xf32>
    %126 = vector.broadcast %125 : vector<8x1xf32> to vector<8x32xf32>
    %127 = arith.subf %121, %126 : vector<8x32xf32>
    %128 = arith.mulf %127, %127 : vector<8x32xf32>
    %cst_59 = arith.constant dense<0.000000e+00> : vector<8xf32>
    %129 = vector.multi_reduction <add>, %128, %cst_59 [1] : vector<8x32xf32> to vector<8xf32>
    %130 = vector.shape_cast %129 : vector<8xf32> to vector<8x1xf32>
    %cst_60 = arith.constant 3.200000e+01 : f32
    %131 = vector.broadcast %cst_60 : f32 to vector<8x1xf32>
    %132 = arith.divf %130, %131 : vector<8x1xf32>
    %cst_61 = arith.constant 9.99999974E-6 : f32
    %133 = vector.broadcast %cst_61 : f32 to vector<8x1xf32>
    %134 = arith.addf %132, %133 : vector<8x1xf32>
    %135 = math.rsqrt %134 : vector<8x1xf32>
    %136 = vector.broadcast %135 : vector<8x1xf32> to vector<8x32xf32>
    %137 = arith.mulf %127, %136 : vector<8x32xf32>
    %c0_62 = arith.constant 0 : index
    %c0_63 = arith.constant 0 : index
    %138 = vector.load %arg12[%c0_62, %c0_63] : memref<1x32xf32, #tpu.memory_space<vmem>>, vector<1x32xf32>
    %139 = vector.broadcast %138 : vector<1x32xf32> to vector<8x32xf32>
    %140 = arith.mulf %137, %139 : vector<8x32xf32>
    %c0_64 = arith.constant 0 : index
    %c0_65 = arith.constant 0 : index
    %141 = vector.load %arg13[%c0_64, %c0_65] : memref<1x32xf32, #tpu.memory_space<vmem>>, vector<1x32xf32>
    %142 = vector.broadcast %141 : vector<1x32xf32> to vector<8x32xf32>
    %143 = arith.addf %140, %142 : vector<8x32xf32>
    %144 = arith.truncf %143 : vector<8x32xf32> to vector<8x32xbf16>
    %c0_66 = arith.constant 0 : index
    %c0_67 = arith.constant 0 : index
    %145 = vector.load %arg14[%c0_66, %c0_67] : memref<32x128xbf16, #tpu.memory_space<vmem>>, vector<32x128xbf16>
    %cst_68 = arith.constant dense<0.000000e+00> : vector<8x128xf32>
    %146 = tpu.matmul %144, %145, %cst_68 {dimension_numbers = #tpu.dot_dimension_numbers<[1], [0], [0], [1], [0, 0, 1, 1], [], []>} : vector<8x32xbf16>, vector<32x128xbf16>, vector<8x128xf32> -> vector<8x128xf32>
    %c0_69 = arith.constant 0 : index
    %c0_70 = arith.constant 0 : index
    %147 = vector.load %arg15[%c0_69, %c0_70] : memref<1x128xf32, #tpu.memory_space<vmem>>, vector<1x128xf32>
    %148 = vector.broadcast %147 : vector<1x128xf32> to vector<8x128xf32>
    %149 = arith.addf %146, %148 : vector<8x128xf32>
    %150 = arith.mulf %149, %149 : vector<8x128xf32>
    %151 = arith.mulf %149, %150 : vector<8x128xf32>
    %cst_71 = arith.constant 4.471500e-02 : f32
    %152 = vector.broadcast %cst_71 : f32 to vector<8x128xf32>
    %153 = arith.mulf %152, %151 : vector<8x128xf32>
    %154 = arith.addf %149, %153 : vector<8x128xf32>
    %cst_72 = arith.constant 0.797884583 : f32
    %155 = vector.broadcast %cst_72 : f32 to vector<8x128xf32>
    %156 = arith.mulf %155, %154 : vector<8x128xf32>
    %157 = math.tanh %156 : vector<8x128xf32>
    %cst_73 = arith.constant 1.000000e+00 : f32
    %158 = vector.broadcast %cst_73 : f32 to vector<8x128xf32>
    %159 = arith.addf %158, %157 : vector<8x128xf32>
    %cst_74 = arith.constant 5.000000e-01 : f32
    %160 = vector.broadcast %cst_74 : f32 to vector<8x128xf32>
    %161 = arith.mulf %160, %159 : vector<8x128xf32>
    %162 = arith.mulf %149, %161 : vector<8x128xf32>
    %163 = arith.truncf %162 : vector<8x128xf32> to vector<8x128xbf16>
    %c0_75 = arith.constant 0 : index
    %c0_76 = arith.constant 0 : index
    %164 = vector.load %arg16[%c0_75, %c0_76] : memref<128x32xbf16, #tpu.memory_space<vmem>>, vector<128x32xbf16>
    %cst_77 = arith.constant dense<0.000000e+00> : vector<8x32xf32>
    %165 = tpu.matmul %163, %164, %cst_77 {dimension_numbers = #tpu.dot_dimension_numbers<[1], [0], [0], [1], [0, 0, 1, 1], [], []>} : vector<8x128xbf16>, vector<128x32xbf16>, vector<8x32xf32> -> vector<8x32xf32>
    %c0_78 = arith.constant 0 : index
    %c0_79 = arith.constant 0 : index
    %166 = vector.load %arg17[%c0_78, %c0_79] : memref<1x32xf32, #tpu.memory_space<vmem>>, vector<1x32xf32>
    %167 = vector.broadcast %166 : vector<1x32xf32> to vector<8x32xf32>
    %168 = arith.addf %165, %167 : vector<8x32xf32>
    %169 = arith.addf %121, %168 : vector<8x32xf32>
    %170 = vector.shape_cast %169 : vector<8x32xf32> to vector<1x8x32xf32>
    %cst_80 = arith.constant dense<0.000000e+00> : vector<1x32xf32>
    %171 = vector.multi_reduction <add>, %170, %cst_80 [1] : vector<1x8x32xf32> to vector<1x32xf32>
    %cst_81 = arith.constant 8.000000e+00 : f32
    %172 = vector.broadcast %cst_81 : f32 to vector<1x32xf32>
    %173 = arith.divf %171, %172 : vector<1x32xf32>
    %174 = arith.truncf %173 : vector<1x32xf32> to vector<1x32xbf16>
    %c0_82 = arith.constant 0 : index
    %c0_83 = arith.constant 0 : index
    %175 = vector.load %arg18[%c0_82, %c0_83] : memref<32x10xbf16, #tpu.memory_space<vmem>>, vector<32x10xbf16>
    %cst_84 = arith.constant dense<0.000000e+00> : vector<1x10xf32>
    %176 = tpu.matmul %174, %175, %cst_84 {dimension_numbers = #tpu.dot_dimension_numbers<[1], [0], [0], [1], [0, 0, 1, 1], [], []>} : vector<1x32xbf16>, vector<32x10xbf16>, vector<1x10xf32> -> vector<1x10xf32>
    %c0_85 = arith.constant 0 : index
    %c0_86 = arith.constant 0 : index
    %177 = vector.load %arg19[%c0_85, %c0_86] : memref<1x10xf32, #tpu.memory_space<vmem>>, vector<1x10xf32>
    %178 = arith.addf %176, %177 : vector<1x10xf32>
    %c0_87 = arith.constant 0 : index
    %c0_88 = arith.constant 0 : index
    %c0_89 = arith.constant 0 : index
    %179 = vector.load %arg20[%c0_87, %c0_88, %c0_89] : memref<1x1x10xf32, #tpu.memory_space<vmem>>, vector<1x1x10xf32>
    %180 = vector.shape_cast %179 : vector<1x1x10xf32> to vector<1x10xf32>
    %181 = vector.shape_cast %178 : vector<1x10xf32> to vector<1x1x10xf32>
    tpu.vector_store %arg20[%c0_87, %c0_88, %c0_89], %181 {strides = array<i32>} : memref<1x1x10xf32, #tpu.memory_space<vmem>>, vector<1x1x10xf32>,
    return
  }
  func.func @transform_0(%arg0: i32) -> (i32, i32, i32) {
    %c0_i32 = arith.constant 0 : i32
    %c0_i32_0 = arith.constant 0 : i32
    %c0_i32_1 = arith.constant 0 : i32
    return %arg0, %c0_i32, %c0_i32_0 : i32, i32, i32
  }
  func.func @transform_1(%arg0: i32) -> (i32, i32) {
    %c0_i32 = arith.constant 0 : i32
    %c0_i32_0 = arith.constant 0 : i32
    %c0_i32_1 = arith.constant 0 : i32
    return %c0_i32, %c0_i32_0 : i32, i32
  }
  func.func @transform_2(%arg0: i32) -> (i32, i32) {
    %c0_i32 = arith.constant 0 : i32
    %c0_i32_0 = arith.constant 0 : i32
    %c0_i32_1 = arith.constant 0 : i32
    return %c0_i32, %c0_i32_0 : i32, i32
  }
  func.func @transform_3(%arg0: i32) -> (i32, i32) {
    %c0_i32 = arith.constant 0 : i32
    %c0_i32_0 = arith.constant 0 : i32
    %c0_i32_1 = arith.constant 0 : i32
    return %c0_i32, %c0_i32_0 : i32, i32
  }
  func.func @transform_4(%arg0: i32) -> (i32, i32) {
    %c0_i32 = arith.constant 0 : i32
    %c0_i32_0 = arith.constant 0 : i32
    %c0_i32_1 = arith.constant 0 : i32
    return %c0_i32, %c0_i32_0 : i32, i32
  }
  func.func @transform_5(%arg0: i32) -> (i32, i32) {
    %c0_i32 = arith.constant 0 : i32
    %c0_i32_0 = arith.constant 0 : i32
    %c0_i32_1 = arith.constant 0 : i32
    return %c0_i32, %c0_i32_0 : i32, i32
  }
  func.func @transform_6(%arg0: i32) -> (i32, i32) {
    %c0_i32 = arith.constant 0 : i32
    %c0_i32_0 = arith.constant 0 : i32
    %c0_i32_1 = arith.constant 0 : i32
    return %c0_i32, %c0_i32_0 : i32, i32
  }
  func.func @transform_7(%arg0: i32) -> (i32, i32) {
    %c0_i32 = arith.constant 0 : i32
    %c0_i32_0 = arith.constant 0 : i32
    %c0_i32_1 = arith.constant 0 : i32
    return %c0_i32, %c0_i32_0 : i32, i32
  }
  func.func @transform_8(%arg0: i32) -> (i32, i32) {
    %c0_i32 = arith.constant 0 : i32
    %c0_i32_0 = arith.constant 0 : i32
    %c0_i32_1 = arith.constant 0 : i32
    return %c0_i32, %c0_i32_0 : i32, i32
  }
  func.func @transform_9(%arg0: i32) -> (i32, i32) {
    %c0_i32 = arith.constant 0 : i32
    %c0_i32_0 = arith.constant 0 : i32
    %c0_i32_1 = arith.constant 0 : i32
    return %c0_i32, %c0_i32_0 : i32, i32
  }
  func.func @transform_10(%arg0: i32) -> (i32, i32) {
    %c0_i32 = arith.constant 0 : i32
    %c0_i32_0 = arith.constant 0 : i32
    %c0_i32_1 = arith.constant 0 : i32
    return %c0_i32, %c0_i32_0 : i32, i32
  }
  func.func @transform_11(%arg0: i32) -> (i32, i32) {
    %c0_i32 = arith.constant 0 : i32
    %c0_i32_0 = arith.constant 0 : i32
    %c0_i32_1 = arith.constant 0 : i32
    return %c0_i32, %c0_i32_0 : i32, i32
  }
  func.func @transform_12(%arg0: i32) -> (i32, i32) {
    %c0_i32 = arith.constant 0 : i32
    %c0_i32_0 = arith.constant 0 : i32
    %c0_i32_1 = arith.constant 0 : i32
    return %c0_i32, %c0_i32_0 : i32, i32
  }
  func.func @transform_13(%arg0: i32) -> (i32, i32) {
    %c0_i32 = arith.constant 0 : i32
    %c0_i32_0 = arith.constant 0 : i32
    %c0_i32_1 = arith.constant 0 : i32
    return %c0_i32, %c0_i32_0 : i32, i32
  }
  func.func @transform_14(%arg0: i32) -> (i32, i32) {
    %c0_i32 = arith.constant 0 : i32
    %c0_i32_0 = arith.constant 0 : i32
    %c0_i32_1 = arith.constant 0 : i32
    return %c0_i32, %c0_i32_0 : i32, i32
  }
  func.func @transform_15(%arg0: i32) -> (i32, i32) {
    %c0_i32 = arith.constant 0 : i32
    %c0_i32_0 = arith.constant 0 : i32
    %c0_i32_1 = arith.constant 0 : i32
    return %c0_i32, %c0_i32_0 : i32, i32
  }
  func.func @transform_16(%arg0: i32) -> (i32, i32) {
    %c0_i32 = arith.constant 0 : i32
    %c0_i32_0 = arith.constant 0 : i32
    %c0_i32_1 = arith.constant 0 : i32
    return %c0_i32, %c0_i32_0 : i32, i32
  }
  func.func @transform_17(%arg0: i32) -> (i32, i32) {
    %c0_i32 = arith.constant 0 : i32
    %c0_i32_0 = arith.constant 0 : i32
    %c0_i32_1 = arith.constant 0 : i32
    return %c0_i32, %c0_i32_0 : i32, i32
  }
  func.func @transform_18(%arg0: i32) -> (i32, i32) {
    %c0_i32 = arith.constant 0 : i32
    %c0_i32_0 = arith.constant 0 : i32
    %c0_i32_1 = arith.constant 0 : i32
    return %c0_i32, %c0_i32_0 : i32, i32
  }
  func.func @transform_19(%arg0: i32) -> (i32, i32, i32) {
    %c0_i32 = arith.constant 0 : i32
    %c0_i32_0 = arith.constant 0 : i32
    %c0_i32_1 = arith.constant 0 : i32
    return %arg0, %c0_i32, %c0_i32_0 : i32, i32, i32
  }
}

</mosaic_0001>

<llo_original>
// kernel: cnn_transformer_forward.2
$region0: #{cnn_transformer_forward.2}
  #allocation0 [shape = 'u32[]', space=smem, size = 0x4, offset = 0x4, fixed_abs, tag = 'smem constant byte address 0x4 - core index']
  #allocation1 [shape = 'u32[144,128]{1,0:T(1,128)}', space=vmem, size = 0x12000, scoped, tag = 'internal scratch']
  %s0 = inlined_call_operand.vmem [shape: bf16[16,36,256], index: 0, kind: input, shape index: {}]
  %s1 = inlined_call_operand.vmem [shape: bf16[16,36], index: 1, kind: input, shape index: {}]
  %s2 = inlined_call_operand.vmem [shape: f32[16,1], index: 2, kind: input, shape index: {}]
  %s3 = inlined_call_operand.vmem [shape: bf16[16,32], index: 3, kind: input, shape index: {}]
  %s4 = inlined_call_operand.vmem [shape: f32[1,32], index: 4, kind: input, shape index: {}]
  %s5 = inlined_call_operand.vmem [shape: f32[2,8,32], index: 5, kind: output, shape index: {}]
  %s6 = sld [smem:[#allocation0]]
  $region53: #{cnn_transformer_forward.2} parent=0
    _
  %s8 = ssub.s32 1, %s6
  %s9 = scalar_select 0, %s8, %s6
  loop: start=0, step=1, limit=4
  $region2: #{cnn_transformer_forward.2} parent=0 // loop_pre_header
    _
  $region3: #{cnn_transformer_forward.2} parent=0 // loop_header
    %s11 = sphi 0, %s15
    %p12 = scmp.ge.s32.totalorder %s11, 4
    %s21 = sphi 0, %s23
    %s24 = sphi 0, %s21
    %s25 = sphi 0, %s24
    %s41 = sphi 0, %s25
    %s45 = sphi 0, %s45
    %s47 = sphi 0, %s45
    %s48 = sphi 0, %s47
    %s62 = sphi 0, %s48
    %s66 = sphi 0, %s66
    %s68 = sphi 0, %s66
    %s69 = sphi 0, %s68
    %s83 = sphi 0, %s69
    %s87 = sphi 0, %s87
    %s89 = sphi 0, %s87
    %s90 = sphi 0, %s89
    %s104 = sphi 0, %s90
    %s108 = sphi 0, %s108
    %s110 = sphi 0, %s108
    %s111 = sphi 0, %s110
    %s125 = sphi 0, %s111
    %s131 = sphi 0, %s133
    %s134 = sphi 0, %s131
    %s135 = sphi 0, %s134
    %s151 = sphi 0, %s135
  $region4: #{cnn_transformer_forward.2} parent=0 // loop_header_branch
    %14 = sbr.rel (%p12) target = $region8
  $region5: #{cnn_transformer_forward.2} parent=0 // loop_body
    %s16 = ssub.s32 %s11, 1
    %s17 = ssub.s32 %s11, 2
    %s18 = sadd.s32 %s11, 1
    %s19 = ssub.s32 %s11, %s18
    %p20 = scmp.eq.s32.totalorder %s19, 0
    %s22 = sadd.s32 %s21, 1
    %s23 = scalar_select %p20, %s21, %s22
    %p26 = pneg %p20
    %p27 = scmp.eq.s32.totalorder %s11, 1
    %p28 = por %p26, %p27
    %p29 = scmp.ne.s32.totalorder %s21, %s24
    %p30 = scmp.eq.s32.totalorder %s11, 0
    %p31 = por %p29, %p30
    %p32 = scmp.ne.s32.totalorder %s21, %s24
    %p33 = scmp.eq.s32.totalorder %s16, 1
    %p34 = por %p32, %p33
    %p35 = scmp.ne.s32.totalorder %s24, %s25
    %p36 = scmp.eq.s32.totalorder %s16, 0
    %p37 = por %p35, %p36
    %p38 = scmp.ne.s32.totalorder %s24, %s25
    %p39 = scmp.eq.s32.totalorder %s17, 1
    %p40 = por %p38, %p39
    %p42 = scmp.ne.s32.totalorder %s25, %s41
    %p43 = scmp.eq.s32.totalorder %s17, 0
    %p44 = por %p42, %p43
    %s46 = sadd.s32 %s45, 1
    %p49 = scmp.eq.s32.totalorder %s11, 1
    %p50 = scmp.ne.s32.totalorder %s45, %s47
    %p51 = scmp.eq.s32.totalorder %s11, 0
    %p52 = por %p50, %p51
    %p53 = scmp.ne.s32.totalorder %s45, %s47
    %p54 = scmp.eq.s32.totalorder %s16, 1
    %p55 = por %p53, %p54
    %p56 = scmp.ne.s32.totalorder %s47, %s48
    %p57 = scmp.eq.s32.totalorder %s16, 0
    %p58 = por %p56, %p57
    %p59 = scmp.ne.s32.totalorder %s47, %s48
    %p60 = scmp.eq.s32.totalorder %s17, 1
    %p61 = por %p59, %p60
    %p63 = scmp.ne.s32.totalorder %s48, %s62
    %p64 = scmp.eq.s32.totalorder %s17, 0
    %p65 = por %p63, %p64
    %s67 = sadd.s32 %s66, 1
    %p70 = scmp.eq.s32.totalorder %s11, 1
    %p71 = scmp.ne.s32.totalorder %s66, %s68
    %p72 = scmp.eq.s32.totalorder %s11, 0
    %p73 = por %p71, %p72
    %p74 = scmp.ne.s32.totalorder %s66, %s68
    %p75 = scmp.eq.s32.totalorder %s16, 1
    %p76 = por %p74, %p75
    %p77 = scmp.ne.s32.totalorder %s68, %s69
    %p78 = scmp.eq.s32.totalorder %s16, 0
    %p79 = por %p77, %p78
    %p80 = scmp.ne.s32.totalorder %s68, %s69
    %p81 = scmp.eq.s32.totalorder %s17, 1
    %p82 = por %p80, %p81
    %p84 = scmp.ne.s32.totalorder %s69, %s83
    %p85 = scmp.eq.s32.totalorder %s17, 0
    %p86 = por %p84, %p85
    %s88 = sadd.s32 %s87, 1
    %p91 = scmp.eq.s32.totalorder %s11, 1
    %p92 = scmp.ne.s32.totalorder %s87, %s89
    %p93 = scmp.eq.s32.totalorder %s11, 0
    %p94 = por %p92, %p93
    %p95 = scmp.ne.s32.totalorder %s87, %s89
    %p96 = scmp.eq.s32.totalorder %s16, 1
    %p97 = por %p95, %p96
    %p98 = scmp.ne.s32.totalorder %s89, %s90
    %p99 = scmp.eq.s32.totalorder %s16, 0
    %p100 = por %p98, %p99
    %p101 = scmp.ne.s32.totalorder %s89, %s90
    %p102 = scmp.eq.s32.totalorder %s17, 1
    %p103 = por %p101, %p102
    %p105 = scmp.ne.s32.totalorder %s90, %s104
    %p106 = scmp.eq.s32.totalorder %s17, 0
    %p107 = por %p105, %p106
    %s109 = sadd.s32 %s108, 1
    %p112 = scmp.eq.s32.totalorder %s11, 1
    %p113 = scmp.ne.s32.totalorder %s108, %s110
    %p114 = scmp.eq.s32.totalorder %s11, 0
    %p115 = por %p113, %p114
    %p116 = scmp.ne.s32.totalorder %s108, %s110
    %p117 = scmp.eq.s32.totalorder %s16, 1
    %p118 = por %p116, %p117
    %p119 = scmp.ne.s32.totalorder %s110, %s111
    %p120 = scmp.eq.s32.totalorder %s16, 0
    %p121 = por %p119, %p120
    %p122 = scmp.ne.s32.totalorder %s110, %s111
    %p123 = scmp.eq.s32.totalorder %s17, 1
    %p124 = por %p122, %p123
    %p126 = scmp.ne.s32.totalorder %s111, %s125
    %p127 = scmp.eq.s32.totalorder %s17, 0
    %p128 = por %p126, %p127
    %s129 = ssub.s32 %s11, %s18
    %p130 = scmp.eq.s32.totalorder %s129, 0
    %s132 = sadd.s32 %s131, 1
    %s133 = scalar_select %p130, %s131, %s132
    %p136 = pneg %p130
    %p137 = scmp.eq.s32.totalorder %s11, 1
    %p138 = por %p136, %p137
    %p139 = scmp.ne.s32.totalorder %s131, %s134
    %p140 = scmp.eq.s32.totalorder %s11, 0
    %p141 = por %p139, %p140
    %p142 = scmp.ne.s32.totalorder %s131, %s134
    %p143 = scmp.eq.s32.totalorder %s16, 1
    %p144 = por %p142, %p143
    %p145 = scmp.ne.s32.totalorder %s134, %s135
    %p146 = scmp.eq.s32.totalorder %s16, 0
    %p147 = por %p145, %p146
    %p148 = scmp.ne.s32.totalorder %s134, %s135
    %p149 = scmp.eq.s32.totalorder %s17, 1
    %p150 = por %p148, %p149
    %p152 = scmp.ne.s32.totalorder %s135, %s151
    %p153 = scmp.eq.s32.totalorder %s17, 0
    %p154 = por %p152, %p153
    %p155 = scmp.le.s32.totalorder 1, %s11
    %p156 = scmp.lt.s32.totalorder %s11, 3
    %p157 = pnand %p155, %p156
    %p158 = pneg %p157
    // Predicated region
    $region9: #{cnn_transformer_forward.2} parent=5 // pred_check
      _
    $region10: #{cnn_transformer_forward.2} parent=5 // pred_check_branch
      %160 = sbr.rel (%p157) target = $region12
    $region11: #{cnn_transformer_forward.2} parent=5 // pred_region
      %s161 = ssub.s32 %s11, 1
      // Predicated region
      $region13: #{cnn_transformer_forward.2} parent=11 // pred_check
        %p162 = pneg %p58
      $region14: #{cnn_transformer_forward.2} parent=11 // pred_check_branch
        %164 = sbr.rel (%p162) target = $region16
      $region15: #{cnn_transformer_forward.2} parent=11 // pred_region
        _
      $region16: #{cnn_transformer_forward.2} parent=11 // pred_fallthru
        _
      // Predicated region
      $region17: #{cnn_transformer_forward.2} parent=11 // pred_check
        %p165 = pneg %p79
      $region18: #{cnn_transformer_forward.2} parent=11 // pred_check_branch
        %167 = sbr.rel (%p165) target = $region20
      $region19: #{cnn_transformer_forward.2} parent=11 // pred_region
        _
      $region20: #{cnn_transformer_forward.2} parent=11 // pred_fallthru
        _
      // Predicated region
      $region21: #{cnn_transformer_forward.2} parent=11 // pred_check
        %p168 = pneg %p100
      $region22: #{cnn_transformer_forward.2} parent=11 // pred_check_branch
        %170 = sbr.rel (%p168) target = $region24
      $region23: #{cnn_transformer_forward.2} parent=11 // pred_region
        _
      $region24: #{cnn_transformer_forward.2} parent=11 // pred_fallthru
        _
      // Predicated region
      $region25: #{cnn_transformer_forward.2} parent=11 // pred_check
        %p171 = pneg %p121
      $region26: #{cnn_transformer_forward.2} parent=11 // pred_check_branch
        %173 = sbr.rel (%p171) target = $region28
      $region27: #{cnn_transformer_forward.2} parent=11 // pred_region
        _
      $region28: #{cnn_transformer_forward.2} parent=11 // pred_fallthru
        _
    $region12: #{cnn_transformer_forward.2} parent=5 // pred_fallthru
      _
    %p174 = scmp.lt.s32.totalorder %s11, 2
    // Predicated region
    $region29: #{cnn_transformer_forward.2} parent=5 // pred_check
      %p175 = pneg %p174
    $region30: #{cnn_transformer_forward.2} parent=5 // pred_check_branch
      %177 = sbr.rel (%p175) target = $region32
    $region31: #{cnn_transformer_forward.2} parent=5 // pred_region
      // Predicated region
      $region33: #{cnn_transformer_forward.2} parent=31 // pred_check
        %p178 = pneg %p31
      $region34: #{cnn_transformer_forward.2} parent=31 // pred_check_branch
        %180 = sbr.rel (%p178) target = $region36
      $region35: #{cnn_transformer_forward.2} parent=31 // pred_region
        %s181 = smul.u32 8, %s11
        %p182 = scmp.lt.s32.totalorder %s181, 15
        %s183 = scalar_select %p182, %s181, 15
        %s184 = smul.addr %s183, 10
        %s185 = smul.addr %s184, 4
        %s186 = scalar_lea.vmem %s0, %s185
        %s187 = smul.u32 8, %s11
      $region36: #{cnn_transformer_forward.2} parent=31 // pred_fallthru
        _
    $region32: #{cnn_transformer_forward.2} parent=5 // pred_fallthru
      _
    %p188 = scmp.le.s32.totalorder 1, %s11
    %p189 = scmp.lt.s32.totalorder %s11, 3
    %p190 = pnand %p188, %p189
    %p191 = pneg %p190
    // Predicated region
    $region37: #{cnn_transformer_forward.2} parent=5 // pred_check
      _
    $region38: #{cnn_transformer_forward.2} parent=5 // pred_check_branch
      %193 = sbr.rel (%p190) target = $region40
    $region39: #{cnn_transformer_forward.2} parent=5 // pred_region
      %s194 = ssub.s32 %s11, 1
      %s195 = smul.u32 8, %s16
      %p196 = scmp.lt.s32.totalorder %s195, 15
      %s197 = scalar_select %p196, %s195, 15
      %s198 = smul.addr %s197, 10
      %s199 = smul.addr %s198, 4
      %s200 = scalar_lea.vmem %s0, %s199
      %p201 = pneg %p37
      %p202 = pneg %p34
      %p203 = pneg %p58
      %p204 = pneg %p55
      %p205 = pneg %p79
      %p206 = pneg %p76
      %p207 = pneg %p100
      %p208 = pneg %p97
      %p209 = pneg %p121
      %p210 = pneg %p118
      %p211 = pneg %p147
      %p212 = pneg %p144
      %p213 = scmp.lt.s32.totalorder %s16, 1
      %s214 = scalar_select %p213, %s16, 1
      %s215 = smul.addr %s214, 8
      %s216 = scalar_lea.vmem %s5, %s215
      %s217 = smul.u32 8, %s16
      %p218 = scmp.lt.s32.totalorder %s217, 15
      %s219 = scalar_select %p218, %s217, 15
      %s220 = smul.addr %s219, 10
      %s221 = smul.addr %s220, 4
      %s222 = scalar_lea.vmem %s0, %s221
      %s223 = smul.u32 8, %s16
      %p224 = scmp.lt.s32.totalorder %s16, 1
      %s225 = scalar_select %p224, %s16, 1
      %s226 = smul.addr %s225, 8
      %s227 = scalar_lea.vmem %s5, %s226
      %v229 = vld [vmem:[%s1] sm:$0xf]
      %v230 = vld [vmem:[%s1 + $0x4] sm:$0xf]
      %v231 = vld [vmem:[%s2] sm:$0xff]
      %v232 = vld [vmem:[%s2 + $0x8] sm:$0xff]
      %v233 = vld [vmem:[%s222] sm:$0xff]
      %v234 = vld [vmem:[%s222 + $0x8] sm:$0xff]
      %v235 = vld [vmem:[%s222 + $0x10] sm:$0xff]
      %v236 = vld [vmem:[%s222 + $0x18] sm:$0xff]
      %v237 = vld [vmem:[%s222 + $0x20] sm:$0x33]
      %239 = vset.pattern.permute.xlu0 0
      %240 = vperm.xlu0 %239, %v231
      %v241 = vpop.permute.xlu0 %240
      %244 = vset.pattern.permute.xlu0 0
      %245 = vperm.xlu0 %244, %v232
      %v246 = vpop.permute.xlu0 %245
      %v250 = vunpack.c.l.b16 %v229
      %v251 = vunpack.c.l.b16 %v230
      %v252 = vpack.c.b16 %v251, %v250
      %v258 = vunpack.c.l.b16 %v233
      %v259 = vunpack.c.h.b16 %v233
      %v260 = vunpack.c.l.b16 %v234
      %v261 = vunpack.c.h.b16 %v234
      %v262 = vunpack.c.l.b16 %v235
      %v263 = vunpack.c.h.b16 %v235
      %v264 = vunpack.c.l.b16 %v236
      %v265 = vunpack.c.h.b16 %v236
      %v266 = vunpack.c.l.b16 %v237
      %v267 = vunpack.c.h.b16 %v237
      %v268 = vpack.c.b16 %v260, %v258
      %v269 = vpack.c.b16 %v261, %v259
      %v270 = vpack.c.b16 %v264, %v262
      %v271 = vpack.c.b16 %v265, %v263
      %v272 = vpack.c.b16 %v266, %v266
      %v273 = vpack.c.b16 %v267, %v267
      %vm278 = vcmask 293888
      %v280 = vsel %vm278, %v252, 0
      %vm282 = vcmask 1041408
      %v284 = vsel %vm282, %v272, 0
      %v287 = vsel %vm282, %v273, 0
      %289 = vmatprep.subr.bf16.mxu0 0
      %290 = vmatpush1.bf16.msra.mxu0 0
      %291 = vmatprep.subr.bf16.mxu0 0
      %292 = vmatpush1.bf16.msra.mxu0 0
      %293 = vmatprep.subr.bf16.mxu0 0
      %294 = vmatpush1.bf16.msra.mxu0 0
      %295 = vmatprep.subr.bf16.mxu0 0
      %296 = vmatpush1.bf16.msra.mxu0 0
      %297 = vmatprep.subr.bf16.mxu0 0
      %298 = vmatpush1.bf16.msra.mxu0 0
      %299 = vmatprep.subr.bf16.mxu0 %v287
      %300 = vmatpush1.bf16.msra.mxu0 %v284
      %301 = vmatprep.subr.bf16.mxu0 %v271
      %302 = vmatpush1.bf16.msra.mxu0 %v270
      %303 = vmatprep.subr.bf16.mxu0 %v269
      %304 = vmatpush1.bf16.msra.mxu0 %v268
      %305 = vmatprep.subr.bf16.mxu0 0
      %306 = vmatpush2.bf16.msra.mxu0 0
      %307 = vmatprep.subr.bf16.mxu0 0
      %308 = vmatpush2.bf16.msra.mxu0 0
      %309 = vmatprep.subr.bf16.mxu0 0
      %310 = vmatpush2.bf16.msra.mxu0 0
      %311 = vmatprep.subr.bf16.mxu0 0
      %312 = vmatpush2.bf16.msra.mxu0 0
      %313 = vmatprep.subr.bf16.mxu0 0
      %314 = vmatpush2.bf16.msra.mxu0 0
      %315 = vmatprep.subr.bf16.mxu0 0
      %316 = vmatpush2.bf16.msra.mxu0 0
      %317 = vmatprep.subr.bf16.mxu0 0
      %318 = vmatpush2.bf16.msra.mxu0 0
      %319 = vmatprep.subr.bf16.mxu0 0
      %320 = vmatpush2.bf16.msra.mxu0 0
      %321 = vmatprep.mubr.bf16.mxu0 0
      %322 = vmatmul.mubr.bf16.gmra.mxu0 %v280
      %v323 = vpop.f32.mrf.mxu0
      %v324 = vadd.f32 %v241, %v323
      %v325 = vpop.f32.mrf.mxu0
      %v326 = vadd.f32 %v241, %v325
      %v327 = vpop.f32.mrf.mxu0
      %v328 = vadd.f32 %v246, %v327
      %v329 = vpop.f32.mrf.mxu0
      %v330 = vadd.f32 %v246, %v329
      %331 = vdwg.mxu0
      %v332 = vmax.f32 %v324, 0.0
      %v333 = vmax.f32 %v326, 0.0
      %v334 = vmax.f32 %v328, 0.0
      %v335 = vmax.f32 %v330, 0.0
      %v336 = vadd.f32 %v332, %v333
      %337 = vadd.xlane.f32.xlu0 %v336
      %v338 = vpop.xlane.xlu0 %337
      %v339 = vadd.f32 %v334, %v335
      %340 = vadd.xlane.f32.xlu0 %v339
      %v341 = vpop.xlane.xlu0 %340
      %v342 = vrcp.pop 256.0
      %v343 = vmul.f32 %v338, %v342
      %v344 = vmul.f32 %v341, %v342
      %s345 = scalar_lea.vmem %s222, 40
      %v346 = vld [vmem:[%s345] sm:$0xff]
      %v347 = vld [vmem:[%s345 + $0x8] sm:$0xff]
      %v348 = vld [vmem:[%s345 + $0x10] sm:$0xff]
      %v349 = vld [vmem:[%s345 + $0x18] sm:$0xff]
      %v350 = vld [vmem:[%s345 + $0x20] sm:$0x33]
      %v356 = vunpack.c.l.b16 %v346
      %v357 = vunpack.c.h.b16 %v346
      %v358 = vunpack.c.l.b16 %v347
      %v359 = vunpack.c.h.b16 %v347
      %v360 = vunpack.c.l.b16 %v348
      %v361 = vunpack.c.h.b16 %v348
      %v362 = vunpack.c.l.b16 %v349
      %v363 = vunpack.c.h.b16 %v349
      %v364 = vunpack.c.l.b16 %v350
      %v365 = vunpack.c.h.b16 %v350
      %v366 = vpack.c.b16 %v358, %v356
      %v367 = vpack.c.b16 %v359, %v357
      %v368 = vpack.c.b16 %v362, %v360
      %v369 = vpack.c.b16 %v363, %v361
      %v370 = vpack.c.b16 %v364, %v364
      %v371 = vpack.c.b16 %v365, %v365
      %v377 = vsel %vm282, %v370, 0
      %v380 = vsel %vm282, %v371, 0
      %382 = vmatprep.subr.bf16.mxu0 0
      %383 = vmatpush1.bf16.msra.mxu0 0
      %384 = vmatprep.subr.bf16.mxu0 0
      %385 = vmatpush1.bf16.msra.mxu0 0
      %386 = vmatprep.subr.bf16.mxu0 0
      %387 = vmatpush1.bf16.msra.mxu0 0
      %388 = vmatprep.subr.bf16.mxu0 0
      %389 = vmatpush1.bf16.msra.mxu0 0
      %390 = vmatprep.subr.bf16.mxu0 0
      %391 = vmatpush1.bf16.msra.mxu0 0
      %392 = vmatprep.subr.bf16.mxu0 %v380
      %393 = vmatpush1.bf16.msra.mxu0 %v377
      %394 = vmatprep.subr.bf16.mxu0 %v369
      %395 = vmatpush1.bf16.msra.mxu0 %v368
      %396 = vmatprep.subr.bf16.mxu0 %v367
      %397 = vmatpush1.bf16.msra.mxu0 %v366
      %398 = vmatprep.subr.bf16.mxu0 0
      %399 = vmatpush2.bf16.msra.mxu0 0
      %400 = vmatprep.subr.bf16.mxu0 0
      %401 = vmatpush2.bf16.msra.mxu0 0
      %402 = vmatprep.subr.bf16.mxu0 0
      %403 = vmatpush2.bf16.msra.mxu0 0
      %404 = vmatprep.subr.bf16.mxu0 0
      %405 = vmatpush2.bf16.msra.mxu0 0
      %406 = vmatprep.subr.bf16.mxu0 0
      %407 = vmatpush2.bf16.msra.mxu0 0
      %408 = vmatprep.subr.bf16.mxu0 0
      %409 = vmatpush2.bf16.msra.mxu0 0
      %410 = vmatprep.subr.bf16.mxu0 0
      %411 = vmatpush2.bf16.msra.mxu0 0
      %412 = vmatprep.subr.bf16.mxu0 0
      %413 = vmatpush2.bf16.msra.mxu0 0
      %414 = vmatprep.mubr.bf16.mxu0 0
      %415 = vmatmul.mubr.bf16.gmra.mxu0 %v280
      %v416 = vpop.f32.mrf.mxu0
      %v417 = vadd.f32 %v241, %v416
      %v418 = vpop.f32.mrf.mxu0
      %v419 = vadd.f32 %v241, %v418
      %v420 = vpop.f32.mrf.mxu0
      %v421 = vadd.f32 %v246, %v420
      %v422 = vpop.f32.mrf.mxu0
      %v423 = vadd.f32 %v246, %v422
      %424 = vdwg.mxu0
      %v425 = vmax.f32 %v417, 0.0
      %v426 = vmax.f32 %v419, 0.0
      %v427 = vmax.f32 %v421, 0.0
      %v428 = vmax.f32 %v423, 0.0
      %v429 = vadd.f32 %v425, %v426
      %430 = vadd.xlane.f32.xlu0 %v429
      %v431 = vpop.xlane.xlu0 %430
      %v432 = vadd.f32 %v427, %v428
      %433 = vadd.xlane.f32.xlu0 %v432
      %v434 = vpop.xlane.xlu0 %433
      %v435 = vmul.f32 %v431, %v342
      %v436 = vmul.f32 %v434, %v342
      %s437 = scalar_lea.vmem %s222, 80
      %v438 = vld [vmem:[%s437] sm:$0xff]
      %v439 = vld [vmem:[%s437 + $0x8] sm:$0xff]
      %v440 = vld [vmem:[%s437 + $0x10] sm:$0xff]
      %v441 = vld [vmem:[%s437 + $0x18] sm:$0xff]
      %v442 = vld [vmem:[%s437 + $0x20] sm:$0x33]
      %v448 = vunpack.c.l.b16 %v438
      %v449 = vunpack.c.h.b16 %v438
      %v450 = vunpack.c.l.b16 %v439
      %v451 = vunpack.c.h.b16 %v439
      %v452 = vunpack.c.l.b16 %v440
      %v453 = vunpack.c.h.b16 %v440
      %v454 = vunpack.c.l.b16 %v441
      %v455 = vunpack.c.h.b16 %v441
      %v456 = vunpack.c.l.b16 %v442
      %v457 = vunpack.c.h.b16 %v442
      %v458 = vpack.c.b16 %v450, %v448
      %v459 = vpack.c.b16 %v451, %v449
      %v460 = vpack.c.b16 %v454, %v452
      %v461 = vpack.c.b16 %v455, %v453
      %v462 = vpack.c.b16 %v456, %v456
      %v463 = vpack.c.b16 %v457, %v457
      %v469 = vsel %vm282, %v462, 0
      %v472 = vsel %vm282, %v463, 0
      %474 = vmatprep.subr.bf16.mxu0 0
      %475 = vmatpush1.bf16.msra.mxu0 0
      %476 = vmatprep.subr.bf16.mxu0 0
      %477 = vmatpush1.bf16.msra.mxu0 0
      %478 = vmatprep.subr.bf16.mxu0 0
      %479 = vmatpush1.bf16.msra.mxu0 0
      %480 = vmatprep.subr.bf16.mxu0 0
      %481 = vmatpush1.bf16.msra.mxu0 0
      %482 = vmatprep.subr.bf16.mxu0 0
      %483 = vmatpush1.bf16.msra.mxu0 0
      %484 = vmatprep.subr.bf16.mxu0 %v472
      %485 = vmatpush1.bf16.msra.mxu0 %v469
      %486 = vmatprep.subr.bf16.mxu0 %v461
      %487 = vmatpush1.bf16.msra.mxu0 %v460
      %488 = vmatprep.subr.bf16.mxu0 %v459
      %489 = vmatpush1.bf16.msra.mxu0 %v458
      %490 = vmatprep.subr.bf16.mxu0 0
      %491 = vmatpush2.bf16.msra.mxu0 0
      %492 = vmatprep.subr.bf16.mxu0 0
      %493 = vmatpush2.bf16.msra.mxu0 0
      %494 = vmatprep.subr.bf16.mxu0 0
      %495 = vmatpush2.bf16.msra.mxu0 0
      %496 = vmatprep.subr.bf16.mxu0 0
      %497 = vmatpush2.bf16.msra.mxu0 0
      %498 = vmatprep.subr.bf16.mxu0 0
      %499 = vmatpush2.bf16.msra.mxu0 0
      %500 = vmatprep.subr.bf16.mxu0 0
      %501 = vmatpush2.bf16.msra.mxu0 0
      %502 = vmatprep.subr.bf16.mxu0 0
      %503 = vmatpush2.bf16.msra.mxu0 0
      %504 = vmatprep.subr.bf16.mxu0 0
      %505 = vmatpush2.bf16.msra.mxu0 0
      %506 = vmatprep.mubr.bf16.mxu0 0
      %507 = vmatmul.mubr.bf16.gmra.mxu0 %v280
      %v508 = vpop.f32.mrf.mxu0
      %v509 = vadd.f32 %v241, %v508
      %v510 = vpop.f32.mrf.mxu0
      %v511 = vadd.f32 %v241, %v510
      %v512 = vpop.f32.mrf.mxu0
      %v513 = vadd.f32 %v246, %v512
      %v514 = vpop.f32.mrf.mxu0
      %v515 = vadd.f32 %v246, %v514
      %516 = vdwg.mxu0
      %v517 = vmax.f32 %v509, 0.0
      %v518 = vmax.f32 %v511, 0.0
      %v519 = vmax.f32 %v513, 0.0
      %v520 = vmax.f32 %v515, 0.0
      %v521 = vadd.f32 %v517, %v518
      %522 = vadd.xlane.f32.xlu0 %v521
      %v523 = vpop.xlane.xlu0 %522
      %v524 = vadd.f32 %v519, %v520
      %525 = vadd.xlane.f32.xlu0 %v524
      %v526 = vpop.xlane.xlu0 %525
      %v527 = vmul.f32 %v523, %v342
      %v528 = vmul.f32 %v526, %v342
      %s529 = scalar_lea.vmem %s222, 120
      %v530 = vld [vmem:[%s529] sm:$0xff]
      %v531 = vld [vmem:[%s529 + $0x8] sm:$0xff]
      %v532 = vld [vmem:[%s529 + $0x10] sm:$0xff]
      %v533 = vld [vmem:[%s529 + $0x18] sm:$0xff]
      %v534 = vld [vmem:[%s529 + $0x20] sm:$0x33]
      %v540 = vunpack.c.l.b16 %v530
      %v541 = vunpack.c.h.b16 %v530
      %v542 = vunpack.c.l.b16 %v531
      %v543 = vunpack.c.h.b16 %v531
      %v544 = vunpack.c.l.b16 %v532
      %v545 = vunpack.c.h.b16 %v532
      %v546 = vunpack.c.l.b16 %v533
      %v547 = vunpack.c.h.b16 %v533
      %v548 = vunpack.c.l.b16 %v534
      %v549 = vunpack.c.h.b16 %v534
      %v550 = vpack.c.b16 %v542, %v540
      %v551 = vpack.c.b16 %v543, %v541
      %v552 = vpack.c.b16 %v546, %v544
      %v553 = vpack.c.b16 %v547, %v545
      %v554 = vpack.c.b16 %v548, %v548
      %v555 = vpack.c.b16 %v549, %v549
      %v561 = vsel %vm282, %v554, 0
      %v564 = vsel %vm282, %v555, 0
      %566 = vmatprep.subr.bf16.mxu0 0
      %567 = vmatpush1.bf16.msra.mxu0 0
      %568 = vmatprep.subr.bf16.mxu0 0
      %569 = vmatpush1.bf16.msra.mxu0 0
      %570 = vmatprep.subr.bf16.mxu0 0
      %571 = vmatpush1.bf16.msra.mxu0 0
      %572 = vmatprep.subr.bf16.mxu0 0
      %573 = vmatpush1.bf16.msra.mxu0 0
      %574 = vmatprep.subr.bf16.mxu0 0
      %575 = vmatpush1.bf16.msra.mxu0 0
      %576 = vmatprep.subr.bf16.mxu0 %v564
      %577 = vmatpush1.bf16.msra.mxu0 %v561
      %578 = vmatprep.subr.bf16.mxu0 %v553
      %579 = vmatpush1.bf16.msra.mxu0 %v552
      %580 = vmatprep.subr.bf16.mxu0 %v551
      %581 = vmatpush1.bf16.msra.mxu0 %v550
      %582 = vmatprep.subr.bf16.mxu0 0
      %583 = vmatpush2.bf16.msra.mxu0 0
      %584 = vmatprep.subr.bf16.mxu0 0
      %585 = vmatpush2.bf16.msra.mxu0 0
      %586 = vmatprep.subr.bf16.mxu0 0
      %587 = vmatpush2.bf16.msra.mxu0 0
      %588 = vmatprep.subr.bf16.mxu0 0
      %589 = vmatpush2.bf16.msra.mxu0 0
      %590 = vmatprep.subr.bf16.mxu0 0
      %591 = vmatpush2.bf16.msra.mxu0 0
      %592 = vmatprep.subr.bf16.mxu0 0
      %593 = vmatpush2.bf16.msra.mxu0 0
      %594 = vmatprep.subr.bf16.mxu0 0
      %595 = vmatpush2.bf16.msra.mxu0 0
      %596 = vmatprep.subr.bf16.mxu0 0
      %597 = vmatpush2.bf16.msra.mxu0 0
      %598 = vmatprep.mubr.bf16.mxu0 0
      %599 = vmatmul.mubr.bf16.gmra.mxu0 %v280
      %v600 = vpop.f32.mrf.mxu0
      %v601 = vadd.f32 %v241, %v600
      %v602 = vpop.f32.mrf.mxu0
      %v603 = vadd.f32 %v241, %v602
      %v604 = vpop.f32.mrf.mxu0
      %v605 = vadd.f32 %v246, %v604
      %v606 = vpop.f32.mrf.mxu0
      %v607 = vadd.f32 %v246, %v606
      %608 = vdwg.mxu0
      %v609 = vmax.f32 %v601, 0.0
      %v610 = vmax.f32 %v603, 0.0
      %v611 = vmax.f32 %v605, 0.0
      %v612 = vmax.f32 %v607, 0.0
      %v613 = vadd.f32 %v609, %v610
      %614 = vadd.xlane.f32.xlu0 %v613
      %v615 = vpop.xlane.xlu0 %614
      %v616 = vadd.f32 %v611, %v612
      %617 = vadd.xlane.f32.xlu0 %v616
      %v618 = vpop.xlane.xlu0 %617
      %v619 = vmul.f32 %v615, %v342
      %v620 = vmul.f32 %v618, %v342
      %s621 = scalar_lea.vmem %s222, 160
      %v622 = vld [vmem:[%s621] sm:$0xff]
      %v623 = vld [vmem:[%s621 + $0x8] sm:$0xff]
      %v624 = vld [vmem:[%s621 + $0x10] sm:$0xff]
      %v625 = vld [vmem:[%s621 + $0x18] sm:$0xff]
      %v626 = vld [vmem:[%s621 + $0x20] sm:$0x33]
      %v632 = vunpack.c.l.b16 %v622
      %v633 = vunpack.c.h.b16 %v622
      %v634 = vunpack.c.l.b16 %v623
      %v635 = vunpack.c.h.b16 %v623
      %v636 = vunpack.c.l.b16 %v624
      %v637 = vunpack.c.h.b16 %v624
      %v638 = vunpack.c.l.b16 %v625
      %v639 = vunpack.c.h.b16 %v625
      %v640 = vunpack.c.l.b16 %v626
      %v641 = vunpack.c.h.b16 %v626
      %v642 = vpack.c.b16 %v634, %v632
      %v643 = vpack.c.b16 %v635, %v633
      %v644 = vpack.c.b16 %v638, %v636
      %v645 = vpack.c.b16 %v639, %v637
      %v646 = vpack.c.b16 %v640, %v640
      %v647 = vpack.c.b16 %v641, %v641
      %v653 = vsel %vm282, %v646, 0
      %v656 = vsel %vm282, %v647, 0
      %658 = vmatprep.subr.bf16.mxu0 0
      %659 = vmatpush1.bf16.msra.mxu0 0
      %660 = vmatprep.subr.bf16.mxu0 0
      %661 = vmatpush1.bf16.msra.mxu0 0
      %662 = vmatprep.subr.bf16.mxu0 0
      %663 = vmatpush1.bf16.msra.mxu0 0
      %664 = vmatprep.subr.bf16.mxu0 0
      %665 = vmatpush1.bf16.msra.mxu0 0
      %666 = vmatprep.subr.bf16.mxu0 0
      %667 = vmatpush1.bf16.msra.mxu0 0
      %668 = vmatprep.subr.bf16.mxu0 %v656
      %669 = vmatpush1.bf16.msra.mxu0 %v653
      %670 = vmatprep.subr.bf16.mxu0 %v645
      %671 = vmatpush1.bf16.msra.mxu0 %v644
      %672 = vmatprep.subr.bf16.mxu0 %v643
      %673 = vmatpush1.bf16.msra.mxu0 %v642
      %674 = vmatprep.subr.bf16.mxu0 0
      %675 = vmatpush2.bf16.msra.mxu0 0
      %676 = vmatprep.subr.bf16.mxu0 0
      %677 = vmatpush2.bf16.msra.mxu0 0
      %678 = vmatprep.subr.bf16.mxu0 0
      %679 = vmatpush2.bf16.msra.mxu0 0
      %680 = vmatprep.subr.bf16.mxu0 0
      %681 = vmatpush2.bf16.msra.mxu0 0
      %682 = vmatprep.subr.bf16.mxu0 0
      %683 = vmatpush2.bf16.msra.mxu0 0
      %684 = vmatprep.subr.bf16.mxu0 0
      %685 = vmatpush2.bf16.msra.mxu0 0
      %686 = vmatprep.subr.bf16.mxu0 0
      %687 = vmatpush2.bf16.msra.mxu0 0
      %688 = vmatprep.subr.bf16.mxu0 0
      %689 = vmatpush2.bf16.msra.mxu0 0
      %690 = vmatprep.mubr.bf16.mxu0 0
      %691 = vmatmul.mubr.bf16.gmra.mxu0 %v280
      %v692 = vpop.f32.mrf.mxu0
      %v693 = vadd.f32 %v241, %v692
      %v694 = vpop.f32.mrf.mxu0
      %v695 = vadd.f32 %v241, %v694
      %v696 = vpop.f32.mrf.mxu0
      %v697 = vadd.f32 %v246, %v696
      %v698 = vpop.f32.mrf.mxu0
      %v699 = vadd.f32 %v246, %v698
      %700 = vdwg.mxu0
      %v701 = vmax.f32 %v693, 0.0
      %v702 = vmax.f32 %v695, 0.0
      %v703 = vmax.f32 %v697, 0.0
      %v704 = vmax.f32 %v699, 0.0
      %v705 = vadd.f32 %v701, %v702
      %706 = vadd.xlane.f32.xlu0 %v705
      %v707 = vpop.xlane.xlu0 %706
      %v708 = vadd.f32 %v703, %v704
      %709 = vadd.xlane.f32.xlu0 %v708
      %v710 = vpop.xlane.xlu0 %709
      %v711 = vmul.f32 %v707, %v342
      %v712 = vmul.f32 %v710, %v342
      %s713 = scalar_lea.vmem %s222, 200
      %v714 = vld [vmem:[%s713] sm:$0xff]
      %v715 = vld [vmem:[%s713 + $0x8] sm:$0xff]
      %v716 = vld [vmem:[%s713 + $0x10] sm:$0xff]
      %v717 = vld [vmem:[%s713 + $0x18] sm:$0xff]
      %v718 = vld [vmem:[%s713 + $0x20] sm:$0x33]
      %v724 = vunpack.c.l.b16 %v714
      %v725 = vunpack.c.h.b16 %v714
      %v726 = vunpack.c.l.b16 %v715
      %v727 = vunpack.c.h.b16 %v715
      %v728 = vunpack.c.l.b16 %v716
      %v729 = vunpack.c.h.b16 %v716
      %v730 = vunpack.c.l.b16 %v717
      %v731 = vunpack.c.h.b16 %v717
      %v732 = vunpack.c.l.b16 %v718
      %v733 = vunpack.c.h.b16 %v718
      %v734 = vpack.c.b16 %v726, %v724
      %v735 = vpack.c.b16 %v727, %v725
      %v736 = vpack.c.b16 %v730, %v728
      %v737 = vpack.c.b16 %v731, %v729
      %v738 = vpack.c.b16 %v732, %v732
      %v739 = vpack.c.b16 %v733, %v733
      %v745 = vsel %vm282, %v738, 0
      %v748 = vsel %vm282, %v739, 0
      %750 = vmatprep.subr.bf16.mxu0 0
      %751 = vmatpush1.bf16.msra.mxu0 0
      %752 = vmatprep.subr.bf16.mxu0 0
      %753 = vmatpush1.bf16.msra.mxu0 0
      %754 = vmatprep.subr.bf16.mxu0 0
      %755 = vmatpush1.bf16.msra.mxu0 0
      %756 = vmatprep.subr.bf16.mxu0 0
      %757 = vmatpush1.bf16.msra.mxu0 0
      %758 = vmatprep.subr.bf16.mxu0 0
      %759 = vmatpush1.bf16.msra.mxu0 0
      %760 = vmatprep.subr.bf16.mxu0 %v748
      %761 = vmatpush1.bf16.msra.mxu0 %v745
      %762 = vmatprep.subr.bf16.mxu0 %v737
      %763 = vmatpush1.bf16.msra.mxu0 %v736
      %764 = vmatprep.subr.bf16.mxu0 %v735
      %765 = vmatpush1.bf16.msra.mxu0 %v734
      %766 = vmatprep.subr.bf16.mxu0 0
      %767 = vmatpush2.bf16.msra.mxu0 0
      %768 = vmatprep.subr.bf16.mxu0 0
      %769 = vmatpush2.bf16.msra.mxu0 0
      %770 = vmatprep.subr.bf16.mxu0 0
      %771 = vmatpush2.bf16.msra.mxu0 0
      %772 = vmatprep.subr.bf16.mxu0 0
      %773 = vmatpush2.bf16.msra.mxu0 0
      %774 = vmatprep.subr.bf16.mxu0 0
      %775 = vmatpush2.bf16.msra.mxu0 0
      %776 = vmatprep.subr.bf16.mxu0 0
      %777 = vmatpush2.bf16.msra.mxu0 0
      %778 = vmatprep.subr.bf16.mxu0 0
      %779 = vmatpush2.bf16.msra.mxu0 0
      %780 = vmatprep.subr.bf16.mxu0 0
      %781 = vmatpush2.bf16.msra.mxu0 0
      %782 = vmatprep.mubr.bf16.mxu0 0
      %783 = vmatmul.mubr.bf16.gmra.mxu0 %v280
      %v784 = vpop.f32.mrf.mxu0
      %v785 = vadd.f32 %v241, %v784
      %v786 = vpop.f32.mrf.mxu0
      %v787 = vadd.f32 %v241, %v786
      %v788 = vpop.f32.mrf.mxu0
      %v789 = vadd.f32 %v246, %v788
      %v790 = vpop.f32.mrf.mxu0
      %v791 = vadd.f32 %v246, %v790
      %792 = vdwg.mxu0
      %v793 = vmax.f32 %v785, 0.0
      %v794 = vmax.f32 %v787, 0.0
      %v795 = vmax.f32 %v789, 0.0
      %v796 = vmax.f32 %v791, 0.0
      %v797 = vadd.f32 %v793, %v794
      %798 = vadd.xlane.f32.xlu0 %v797
      %v799 = vpop.xlane.xlu0 %798
      %v800 = vadd.f32 %v795, %v796
      %801 = vadd.xlane.f32.xlu0 %v800
      %v802 = vpop.xlane.xlu0 %801
      %v803 = vmul.f32 %v799, %v342
      %v804 = vmul.f32 %v802, %v342
      %s805 = scalar_lea.vmem %s222, 240
      %v806 = vld [vmem:[%s805] sm:$0xff]
      %v807 = vld [vmem:[%s805 + $0x8] sm:$0xff]
      %v808 = vld [vmem:[%s805 + $0x10] sm:$0xff]
      %v809 = vld [vmem:[%s805 + $0x18] sm:$0xff]
      %v810 = vld [vmem:[%s805 + $0x20] sm:$0x33]
      %v816 = vunpack.c.l.b16 %v806
      %v817 = vunpack.c.h.b16 %v806
      %v818 = vunpack.c.l.b16 %v807
      %v819 = vunpack.c.h.b16 %v807
      %v820 = vunpack.c.l.b16 %v808
      %v821 = vunpack.c.h.b16 %v808
      %v822 = vunpack.c.l.b16 %v809
      %v823 = vunpack.c.h.b16 %v809
      %v824 = vunpack.c.l.b16 %v810
      %v825 = vunpack.c.h.b16 %v810
      %v826 = vpack.c.b16 %v818, %v816
      %v827 = vpack.c.b16 %v819, %v817
      %v828 = vpack.c.b16 %v822, %v820
      %v829 = vpack.c.b16 %v823, %v821
      %v830 = vpack.c.b16 %v824, %v824
      %v831 = vpack.c.b16 %v825, %v825
      %v837 = vsel %vm282, %v830, 0
      %v840 = vsel %vm282, %v831, 0
      %842 = vmatprep.subr.bf16.mxu0 0
      %843 = vmatpush1.bf16.msra.mxu0 0
      %844 = vmatprep.subr.bf16.mxu0 0
      %845 = vmatpush1.bf16.msra.mxu0 0
      %846 = vmatprep.subr.bf16.mxu0 0
      %847 = vmatpush1.bf16.msra.mxu0 0
      %848 = vmatprep.subr.bf16.mxu0 0
      %849 = vmatpush1.bf16.msra.mxu0 0
      %850 = vmatprep.subr.bf16.mxu0 0
      %851 = vmatpush1.bf16.msra.mxu0 0
      %852 = vmatprep.subr.bf16.mxu0 %v840
      %853 = vmatpush1.bf16.msra.mxu0 %v837
      %854 = vmatprep.subr.bf16.mxu0 %v829
      %855 = vmatpush1.bf16.msra.mxu0 %v828
      %856 = vmatprep.subr.bf16.mxu0 %v827
      %857 = vmatpush1.bf16.msra.mxu0 %v826
      %858 = vmatprep.subr.bf16.mxu0 0
      %859 = vmatpush2.bf16.msra.mxu0 0
      %860 = vmatprep.subr.bf16.mxu0 0
      %861 = vmatpush2.bf16.msra.mxu0 0
      %862 = vmatprep.subr.bf16.mxu0 0
      %863 = vmatpush2.bf16.msra.mxu0 0
      %864 = vmatprep.subr.bf16.mxu0 0
      %865 = vmatpush2.bf16.msra.mxu0 0
      %866 = vmatprep.subr.bf16.mxu0 0
      %867 = vmatpush2.bf16.msra.mxu0 0
      %868 = vmatprep.subr.bf16.mxu0 0
      %869 = vmatpush2.bf16.msra.mxu0 0
      %870 = vmatprep.subr.bf16.mxu0 0
      %871 = vmatpush2.bf16.msra.mxu0 0
      %872 = vmatprep.subr.bf16.mxu0 0
      %873 = vmatpush2.bf16.msra.mxu0 0
      %874 = vmatprep.mubr.bf16.mxu0 0
      %875 = vmatmul.mubr.bf16.gmra.mxu0 %v280
      %v876 = vpop.f32.mrf.mxu0
      %v877 = vadd.f32 %v241, %v876
      %v878 = vpop.f32.mrf.mxu0
      %v879 = vadd.f32 %v241, %v878
      %v880 = vpop.f32.mrf.mxu0
      %v881 = vadd.f32 %v246, %v880
      %v882 = vpop.f32.mrf.mxu0
      %v883 = vadd.f32 %v246, %v882
      %884 = vdwg.mxu0
      %v885 = vmax.f32 %v877, 0.0
      %v886 = vmax.f32 %v879, 0.0
      %v887 = vmax.f32 %v881, 0.0
      %v888 = vmax.f32 %v883, 0.0
      %v889 = vadd.f32 %v885, %v886
      %890 = vadd.xlane.f32.xlu0 %v889
      %v891 = vpop.xlane.xlu0 %890
      %v892 = vadd.f32 %v887, %v888
      %893 = vadd.xlane.f32.xlu0 %v892
      %v894 = vpop.xlane.xlu0 %893
      %v895 = vmul.f32 %v891, %v342
      %v896 = vmul.f32 %v894, %v342
      %s897 = scalar_lea.vmem %s222, 280
      %v898 = vld [vmem:[%s897] sm:$0xff]
      %v899 = vld [vmem:[%s897 + $0x8] sm:$0xff]
      %v900 = vld [vmem:[%s897 + $0x10] sm:$0xff]
      %v901 = vld [vmem:[%s897 + $0x18] sm:$0xff]
      %v902 = vld [vmem:[%s897 + $0x20] sm:$0x33]
      %v908 = vunpack.c.l.b16 %v898
      %v909 = vunpack.c.h.b16 %v898
      %v910 = vunpack.c.l.b16 %v899
      %v911 = vunpack.c.h.b16 %v899
      %v912 = vunpack.c.l.b16 %v900
      %v913 = vunpack.c.h.b16 %v900
      %v914 = vunpack.c.l.b16 %v901
      %v915 = vunpack.c.h.b16 %v901
      %v916 = vunpack.c.l.b16 %v902
      %v917 = vunpack.c.h.b16 %v902
      %v918 = vpack.c.b16 %v910, %v908
      %v919 = vpack.c.b16 %v911, %v909
      %v920 = vpack.c.b16 %v914, %v912
      %v921 = vpack.c.b16 %v915, %v913
      %v922 = vpack.c.b16 %v916, %v916
      %v923 = vpack.c.b16 %v917, %v917
      %v929 = vsel %vm282, %v922, 0
      %v932 = vsel %vm282, %v923, 0
      %934 = vmatprep.subr.bf16.mxu0 0
      %935 = vmatpush1.bf16.msra.mxu0 0
      %936 = vmatprep.subr.bf16.mxu0 0
      %937 = vmatpush1.bf16.msra.mxu0 0
      %938 = vmatprep.subr.bf16.mxu0 0
      %939 = vmatpush1.bf16.msra.mxu0 0
      %940 = vmatprep.subr.bf16.mxu0 0
      %941 = vmatpush1.bf16.msra.mxu0 0
      %942 = vmatprep.subr.bf16.mxu0 0
      %943 = vmatpush1.bf16.msra.mxu0 0
      %944 = vmatprep.subr.bf16.mxu0 %v932
      %945 = vmatpush1.bf16.msra.mxu0 %v929
      %946 = vmatprep.subr.bf16.mxu0 %v921
      %947 = vmatpush1.bf16.msra.mxu0 %v920
      %948 = vmatprep.subr.bf16.mxu0 %v919
      %949 = vmatpush1.bf16.msra.mxu0 %v918
      %950 = vmatprep.subr.bf16.mxu0 0
      %951 = vmatpush2.bf16.msra.mxu0 0
      %952 = vmatprep.subr.bf16.mxu0 0
      %953 = vmatpush2.bf16.msra.mxu0 0
      %954 = vmatprep.subr.bf16.mxu0 0
      %955 = vmatpush2.bf16.msra.mxu0 0
      %956 = vmatprep.subr.bf16.mxu0 0
      %957 = vmatpush2.bf16.msra.mxu0 0
      %958 = vmatprep.subr.bf16.mxu0 0
      %959 = vmatpush2.bf16.msra.mxu0 0
      %960 = vmatprep.subr.bf16.mxu0 0
      %961 = vmatpush2.bf16.msra.mxu0 0
      %962 = vmatprep.subr.bf16.mxu0 0
      %963 = vmatpush2.bf16.msra.mxu0 0
      %964 = vmatprep.subr.bf16.mxu0 0
      %965 = vmatpush2.bf16.msra.mxu0 0
      %966 = vmatprep.mubr.bf16.mxu0 0
      %967 = vmatmul.mubr.bf16.gmra.mxu0 %v280
      %v968 = vpop.f32.mrf.mxu0
      %v969 = vadd.f32 %v241, %v968
      %v970 = vpop.f32.mrf.mxu0
      %v971 = vadd.f32 %v241, %v970
      %v972 = vpop.f32.mrf.mxu0
      %v973 = vadd.f32 %v246, %v972
      %v974 = vpop.f32.mrf.mxu0
      %v975 = vadd.f32 %v246, %v974
      %976 = vdwg.mxu0
      %v977 = vmax.f32 %v969, 0.0
      %v978 = vmax.f32 %v971, 0.0
      %v979 = vmax.f32 %v973, 0.0
      %v980 = vmax.f32 %v975, 0.0
      %v981 = vadd.f32 %v977, %v978
      %982 = vadd.xlane.f32.xlu0 %v981
      %v983 = vpop.xlane.xlu0 %982
      %v984 = vadd.f32 %v979, %v980
      %985 = vadd.xlane.f32.xlu0 %v984
      %v986 = vpop.xlane.xlu0 %985
      %v987 = vmul.f32 %v983, %v342
      %v988 = vmul.f32 %v986, %v342
      %vm989 = vcmask 7168
      %v990 = vsel %vm989, %v343, %v435
      %v991 = vsel %vm989, %v344, %v436
      %vm992 = vcmask 15360
      %v993 = vsel %vm992, %v990, %v527
      %v994 = vsel %vm992, %v991, %v528
      %vm995 = vcmask 23552
      %v996 = vsel %vm995, %v993, %v619
      %v997 = vsel %vm995, %v994, %v620
      %vm998 = vcmask 31744
      %v999 = vsel %vm998, %v996, %v711
      %v1000 = vsel %vm998, %v997, %v712
      %vm1001 = vcmask 39936
      %v1002 = vsel %vm1001, %v999, %v803
      %v1003 = vsel %vm1001, %v1000, %v804
      %vm1004 = vcmask 48128
      %v1005 = vsel %vm1004, %v1002, %v895
      %v1006 = vsel %vm1004, %v1003, %v896
      %vm1007 = vcmask 56320
      %v1008 = vsel %vm1007, %v1005, %v987
      %v1009 = vsel %vm1007, %v1006, %v988
      %v1010 = vpack.c.bf16 %v1009, %v1008
      %v1011 = vld [vmem:[%s3] sm:$0xf]
      %v1012 = vld [vmem:[%s3 + $0x4] sm:$0xf]
      %v1013 = vld [vmem:[%s4] sm:$0x1]
      %v1015 = vlaneseq
      %v1016 = vshrl.u32 %v1015, 7
      %v1017 = vsub.s32 0, %v1016
      %v1018 = vrot.slane %v1013, %v1017
      %1020 = vxpose.xlu0.c.b16.start [1/8] %v1010, 128
      %1021 = vxpose.xlu0.c.b16.cont [2/8] 0, 128
      %1022 = vxpose.xlu0.c.b16.cont [3/8] 0, 128
      %1023 = vxpose.xlu0.c.b16.cont [4/8] 0, 128
      %1024 = vxpose.xlu0.c.b16.cont [5/8] 0, 128
      %1025 = vxpose.xlu0.c.b16.cont [6/8] 0, 128
      %1026 = vxpose.xlu0.c.b16.cont [7/8] 0, 128
      %1027 = vxpose.xlu0.c.b16.end [8/8] 0, 128
      %v1028 = vpop.trf.xlu0
      %v1029 = vpop.trf.xlu0
      %v1030 = vpop.trf.xlu0
      %v1031 = vpop.trf.xlu0
      %v1032 = vpop.trf.xlu0
      %v1033 = vpop.trf.xlu0
      %v1034 = vpop.trf.xlu0
      %v1035 = vpop.trf.xlu0
      %v1038 = vunpack.c.l.b16 %v1011
      %v1039 = vunpack.c.l.b16 %v1012
      %v1040 = vpack.c.b16 %v1039, %v1038
      %vm1042 = vcmask 130048
      %v1044 = vsel %vm1042, %v1028, 0
      %1046 = vmatprep.subr.bf16.mxu0 0
      %1047 = vmatpush1.bf16.msra.mxu0 0
      %1048 = vmatprep.subr.bf16.mxu0 0
      %1049 = vmatpush1.bf16.msra.mxu0 0
      %1050 = vmatprep.subr.bf16.mxu0 0
      %1051 = vmatpush1.bf16.msra.mxu0 0
      %1052 = vmatprep.subr.bf16.mxu0 0
      %1053 = vmatpush1.bf16.msra.mxu0 0
      %1054 = vmatprep.subr.bf16.mxu0 0
      %1055 = vmatpush1.bf16.msra.mxu0 0
      %1056 = vmatprep.subr.bf16.mxu0 0
      %1057 = vmatpush1.bf16.msra.mxu0 0
      %1058 = vmatprep.subr.bf16.mxu0 0
      %1059 = vmatpush1.bf16.msra.mxu0 0
      %1060 = vmatprep.subr.bf16.mxu0 0
      %1061 = vmatpush1.bf16.msra.mxu0 %v1040
      %1062 = vmatprep.subr.bf16.mxu0 0
      %1063 = vmatpush2.bf16.msra.mxu0 0
      %1064 = vmatprep.subr.bf16.mxu0 0
      %1065 = vmatpush2.bf16.msra.mxu0 0
      %1066 = vmatprep.subr.bf16.mxu0 0
      %1067 = vmatpush2.bf16.msra.mxu0 0
      %1068 = vmatprep.subr.bf16.mxu0 0
      %1069 = vmatpush2.bf16.msra.mxu0 0
      %1070 = vmatprep.subr.bf16.mxu0 0
      %1071 = vmatpush2.bf16.msra.mxu0 0
      %1072 = vmatprep.subr.bf16.mxu0 0
      %1073 = vmatpush2.bf16.msra.mxu0 0
      %1074 = vmatprep.subr.bf16.mxu0 0
      %1075 = vmatpush2.bf16.msra.mxu0 0
      %1076 = vmatprep.subr.bf16.mxu0 0
      %1077 = vmatpush2.bf16.msra.mxu0 0
      %1078 = vmatprep.mubr.bf16.mxu0 0
      %1079 = vmatmul.mubr.bf16.gmra.mxu0 %v1044
      %v1080 = vpop.f32.mrf.mxu0
      %v1081 = vadd.f32 %v1018, %v1080
      %v1082 = vpop.f32.mrf.mxu0
      %v1083 = vpop.f32.mrf.mxu0
      %v1084 = vpop.f32.mrf.mxu0
      %1085 = vdwg.mxu0
      %vm1086 = vcmask 261120
      %1087 = vst.msk [vmem:[%s227] sm:$0xff] %vm1086, %v1081
      %p1088 = scmp.lt.s32.totalorder %s16, 1
      %s1089 = scalar_select %p1088, %s16, 1
      %s1090 = smul.addr %s1089, 8
      %s1091 = scalar_lea.vmem %s5, %s1090
      // Predicated region
      $region41: #{cnn_transformer_forward.2} parent=39 // pred_check
        %p1092 = pneg %p144
      $region42: #{cnn_transformer_forward.2} parent=39 // pred_check_branch
        %1094 = sbr.rel (%p1092) target = $region44
      $region43: #{cnn_transformer_forward.2} parent=39 // pred_region
        _
      $region44: #{cnn_transformer_forward.2} parent=39 // pred_fallthru
        _
    $region40: #{cnn_transformer_forward.2} parent=5 // pred_fallthru
      _
    %p1095 = scmp.le.s32.totalorder 2, %s11
    // Predicated region
    $region45: #{cnn_transformer_forward.2} parent=5 // pred_check
      %p1096 = pneg %p1095
    $region46: #{cnn_transformer_forward.2} parent=5 // pred_check_branch
      %1098 = sbr.rel (%p1096) target = $region48
    $region47: #{cnn_transformer_forward.2} parent=5 // pred_region
      %s1099 = ssub.s32 %s11, 2
      // Predicated region
      $region49: #{cnn_transformer_forward.2} parent=47 // pred_check
        %p1100 = pneg %p150
      $region50: #{cnn_transformer_forward.2} parent=47 // pred_check_branch
        %1102 = sbr.rel (%p1100) target = $region52
      $region51: #{cnn_transformer_forward.2} parent=47 // pred_region
        %p1103 = scmp.lt.s32.totalorder %s17, 1
        %s1104 = scalar_select %p1103, %s17, 1
        %s1105 = smul.addr %s1104, 8
        %s1106 = scalar_lea.vmem %s5, %s1105
      $region52: #{cnn_transformer_forward.2} parent=47 // pred_fallthru
        _
    $region48: #{cnn_transformer_forward.2} parent=5 // pred_fallthru
      _
  $region6: #{cnn_transformer_forward.2} parent=0 // loop_footer
    %s15 = sadd.s32 1, %s11
  $region7: #{cnn_transformer_forward.2} parent=0 // loop_footer_branch
    %10 = sbr.rel target = $region3
  $region8: #{cnn_transformer_forward.2} parent=0 // loop_exit
    _

// kernel: cnn_transformer_forward.3
$region0: #{cnn_transformer_forward.3}
  #allocation0 [shape = 'u32[]', space=smem, size = 0x4, offset = 0x4, fixed_abs, tag = 'smem constant byte address 0x4 - core index']
  #allocation1 [shape = 'u32[144,128]{1,0:T(1,128)}', space=vmem, size = 0x12000, scoped, tag = 'internal scratch']
  #allocation2 [shape = 'f32[8,32]{1,0:T(8,128)}', space=vmem, size = 0x1000, scoped, tag = 'scratch operand']
  %s0 = inlined_call_operand.vmem [shape: f32[2,8,32], index: 0, kind: input, shape index: {}]
  %s1 = inlined_call_operand.vmem [shape: f32[1,32], index: 1, kind: input, shape index: {}]
  %s2 = inlined_call_operand.vmem [shape: f32[1,32], index: 2, kind: input, shape index: {}]
  %s3 = inlined_call_operand.vmem [shape: bf16[32,32], index: 3, kind: input, shape index: {}]
  %s4 = inlined_call_operand.vmem [shape: bf16[32,32], index: 4, kind: input, shape index: {}]
  %s5 = inlined_call_operand.vmem [shape: bf16[32,32], index: 5, kind: input, shape index: {}]
  %s6 = inlined_call_operand.vmem [shape: f32[1,32], index: 6, kind: input, shape index: {}]
  %s7 = inlined_call_operand.vmem [shape: f32[1,32], index: 7, kind: input, shape index: {}]
  %s8 = inlined_call_operand.vmem [shape: f32[1,32], index: 8, kind: input, shape index: {}]
  %s9 = inlined_call_operand.vmem [shape: bf16[32,32], index: 9, kind: input, shape index: {}]
  %s10 = inlined_call_operand.vmem [shape: f32[1,32], index: 10, kind: input, shape index: {}]
  %s11 = inlined_call_operand.vmem [shape: f32[1,32], index: 11, kind: input, shape index: {}]
  %s12 = inlined_call_operand.vmem [shape: f32[1,32], index: 12, kind: input, shape index: {}]
  %s13 = inlined_call_operand.vmem [shape: bf16[32,128], index: 13, kind: input, shape index: {}]
  %s14 = inlined_call_operand.vmem [shape: f32[1,128], index: 14, kind: input, shape index: {}]
  %s15 = inlined_call_operand.vmem [shape: bf16[128,32], index: 15, kind: input, shape index: {}]
  %s16 = inlined_call_operand.vmem [shape: f32[1,32], index: 16, kind: input, shape index: {}]
  %s17 = inlined_call_operand.vmem [shape: bf16[32,10], index: 17, kind: input, shape index: {}]
  %s18 = inlined_call_operand.vmem [shape: f32[1,10], index: 18, kind: input, shape index: {}]
  %s19 = inlined_call_operand.hbm [shape: f32[2,1,10], index: 19, kind: output, shape index: {}]
  %s20 = sld [smem:[#allocation0]]
  $region109: #{cnn_transformer_forward.3} parent=0
    _
  %s22 = ssub.s32 1, %s20
  %s23 = scalar_select 0, %s22, %s20
  $region1: #{cnn_transformer_forward.3} parent=0
    #allocation3 [shape = 'u8[1024]{0}', space=vmem, size = 0x400, scoped, tag = 'output window, operand 0']
    #allocation4 [shape = 's32[2]{0}', space=sflag, size = 0x8, scoped, tag = 'scoped memory for cnn_transformer_forward.3']
    %24 = vsyncpa [#allocation4], 0
    %s25 = scalar_lea.sflag [#allocation4], 1
    %26 = vsyncpa %s25, 0
    loop: start=0, step=1, limit=4
    $region2: #{cnn_transformer_forward.3} parent=1 // loop_pre_header
      _
    $region3: #{cnn_transformer_forward.3} parent=1 // loop_header
      %s28 = sphi 0, %s32
      %p29 = scmp.ge.s32.totalorder %s28, 4
      %s38 = sphi 0, %s40
      %s41 = sphi 0, %s38
      %s42 = sphi 0, %s41
      %s58 = sphi 0, %s42
      %s62 = sphi 0, %s62
      %s64 = sphi 0, %s62
      %s65 = sphi 0, %s64
      %s79 = sphi 0, %s65
      %s83 = sphi 0, %s83
      %s85 = sphi 0, %s83
      %s86 = sphi 0, %s85
      %s100 = sphi 0, %s86
      %s104 = sphi 0, %s104
      %s106 = sphi 0, %s104
      %s107 = sphi 0, %s106
      %s121 = sphi 0, %s107
      %s125 = sphi 0, %s125
      %s127 = sphi 0, %s125
      %s128 = sphi 0, %s127
      %s142 = sphi 0, %s128
      %s146 = sphi 0, %s146
      %s148 = sphi 0, %s146
      %s149 = sphi 0, %s148
      %s163 = sphi 0, %s149
      %s167 = sphi 0, %s167
      %s169 = sphi 0, %s167
      %s170 = sphi 0, %s169
      %s184 = sphi 0, %s170
      %s188 = sphi 0, %s188
      %s190 = sphi 0, %s188
      %s191 = sphi 0, %s190
      %s205 = sphi 0, %s191
      %s209 = sphi 0, %s209
      %s211 = sphi 0, %s209
      %s212 = sphi 0, %s211
      %s226 = sphi 0, %s212
      %s230 = sphi 0, %s230
      %s232 = sphi 0, %s230
      %s233 = sphi 0, %s232
      %s247 = sphi 0, %s233
      %s251 = sphi 0, %s251
      %s253 = sphi 0, %s251
      %s254 = sphi 0, %s253
      %s268 = sphi 0, %s254
      %s272 = sphi 0, %s272
      %s274 = sphi 0, %s272
      %s275 = sphi 0, %s274
      %s289 = sphi 0, %s275
      %s293 = sphi 0, %s293
      %s295 = sphi 0, %s293
      %s296 = sphi 0, %s295
      %s310 = sphi 0, %s296
      %s314 = sphi 0, %s314
      %s316 = sphi 0, %s314
      %s317 = sphi 0, %s316
      %s331 = sphi 0, %s317
      %s335 = sphi 0, %s335
      %s337 = sphi 0, %s335
      %s338 = sphi 0, %s337
      %s352 = sphi 0, %s338
      %s356 = sphi 0, %s356
      %s358 = sphi 0, %s356
      %s359 = sphi 0, %s358
      %s373 = sphi 0, %s359
      %s377 = sphi 0, %s377
      %s379 = sphi 0, %s377
      %s380 = sphi 0, %s379
      %s394 = sphi 0, %s380
      %s398 = sphi 0, %s398
      %s400 = sphi 0, %s398
      %s401 = sphi 0, %s400
      %s415 = sphi 0, %s401
      %s419 = sphi 0, %s419
      %s421 = sphi 0, %s419
      %s422 = sphi 0, %s421
      %s436 = sphi 0, %s422
      %s442 = sphi 0, %s444
      %s445 = sphi 0, %s442
      %s446 = sphi 0, %s445
      %s462 = sphi 0, %s446
    $region4: #{cnn_transformer_forward.3} parent=1 // loop_header_branch
      %31 = sbr.rel (%p29) target = $region8
    $region5: #{cnn_transformer_forward.3} parent=1 // loop_body
      %s33 = ssub.s32 %s28, 1
      %s34 = ssub.s32 %s28, 2
      %s35 = sadd.s32 %s28, 1
      %s36 = ssub.s32 %s28, %s35
      %p37 = scmp.eq.s32.totalorder %s36, 0
      %s39 = sadd.s32 %s38, 1
      %s40 = scalar_select %p37, %s38, %s39
      %p43 = pneg %p37
      %p44 = scmp.eq.s32.totalorder %s28, 1
      %p45 = por %p43, %p44
      %p46 = scmp.ne.s32.totalorder %s38, %s41
      %p47 = scmp.eq.s32.totalorder %s28, 0
      %p48 = por %p46, %p47
      %p49 = scmp.ne.s32.totalorder %s38, %s41
      %p50 = scmp.eq.s32.totalorder %s33, 1
      %p51 = por %p49, %p50
      %p52 = scmp.ne.s32.totalorder %s41, %s42
      %p53 = scmp.eq.s32.totalorder %s33, 0
      %p54 = por %p52, %p53
      %p55 = scmp.ne.s32.totalorder %s41, %s42
      %p56 = scmp.eq.s32.totalorder %s34, 1
      %p57 = por %p55, %p56
      %p59 = scmp.ne.s32.totalorder %s42, %s58
      %p60 = scmp.eq.s32.totalorder %s34, 0
      %p61 = por %p59, %p60
      %s63 = sadd.s32 %s62, 1
      %p66 = scmp.eq.s32.totalorder %s28, 1
      %p67 = scmp.ne.s32.totalorder %s62, %s64
      %p68 = scmp.eq.s32.totalorder %s28, 0
      %p69 = por %p67, %p68
      %p70 = scmp.ne.s32.totalorder %s62, %s64
      %p71 = scmp.eq.s32.totalorder %s33, 1
      %p72 = por %p70, %p71
      %p73 = scmp.ne.s32.totalorder %s64, %s65
      %p74 = scmp.eq.s32.totalorder %s33, 0
      %p75 = por %p73, %p74
      %p76 = scmp.ne.s32.totalorder %s64, %s65
      %p77 = scmp.eq.s32.totalorder %s34, 1
      %p78 = por %p76, %p77
      %p80 = scmp.ne.s32.totalorder %s65, %s79
      %p81 = scmp.eq.s32.totalorder %s34, 0
      %p82 = por %p80, %p81
      %s84 = sadd.s32 %s83, 1
      %p87 = scmp.eq.s32.totalorder %s28, 1
      %p88 = scmp.ne.s32.totalorder %s83, %s85
      %p89 = scmp.eq.s32.totalorder %s28, 0
      %p90 = por %p88, %p89
      %p91 = scmp.ne.s32.totalorder %s83, %s85
      %p92 = scmp.eq.s32.totalorder %s33, 1
      %p93 = por %p91, %p92
      %p94 = scmp.ne.s32.totalorder %s85, %s86
      %p95 = scmp.eq.s32.totalorder %s33, 0
      %p96 = por %p94, %p95
      %p97 = scmp.ne.s32.totalorder %s85, %s86
      %p98 = scmp.eq.s32.totalorder %s34, 1
      %p99 = por %p97, %p98
      %p101 = scmp.ne.s32.totalorder %s86, %s100
      %p102 = scmp.eq.s32.totalorder %s34, 0
      %p103 = por %p101, %p102
      %s105 = sadd.s32 %s104, 1
      %p108 = scmp.eq.s32.totalorder %s28, 1
      %p109 = scmp.ne.s32.totalorder %s104, %s106
      %p110 = scmp.eq.s32.totalorder %s28, 0
      %p111 = por %p109, %p110
      %p112 = scmp.ne.s32.totalorder %s104, %s106
      %p113 = scmp.eq.s32.totalorder %s33, 1
      %p114 = por %p112, %p113
      %p115 = scmp.ne.s32.totalorder %s106, %s107
      %p116 = scmp.eq.s32.totalorder %s33, 0
      %p117 = por %p115, %p116
      %p118 = scmp.ne.s32.totalorder %s106, %s107
      %p119 = scmp.eq.s32.totalorder %s34, 1
      %p120 = por %p118, %p119
      %p122 = scmp.ne.s32.totalorder %s107, %s121
      %p123 = scmp.eq.s32.totalorder %s34, 0
      %p124 = por %p122, %p123
      %s126 = sadd.s32 %s125, 1
      %p129 = scmp.eq.s32.totalorder %s28, 1
      %p130 = scmp.ne.s32.totalorder %s125, %s127
      %p131 = scmp.eq.s32.totalorder %s28, 0
      %p132 = por %p130, %p131
      %p133 = scmp.ne.s32.totalorder %s125, %s127
      %p134 = scmp.eq.s32.totalorder %s33, 1
      %p135 = por %p133, %p134
      %p136 = scmp.ne.s32.totalorder %s127, %s128
      %p137 = scmp.eq.s32.totalorder %s33, 0
      %p138 = por %p136, %p137
      %p139 = scmp.ne.s32.totalorder %s127, %s128
      %p140 = scmp.eq.s32.totalorder %s34, 1
      %p141 = por %p139, %p140
      %p143 = scmp.ne.s32.totalorder %s128, %s142
      %p144 = scmp.eq.s32.totalorder %s34, 0
      %p145 = por %p143, %p144
      %s147 = sadd.s32 %s146, 1
      %p150 = scmp.eq.s32.totalorder %s28, 1
      %p151 = scmp.ne.s32.totalorder %s146, %s148
      %p152 = scmp.eq.s32.totalorder %s28, 0
      %p153 = por %p151, %p152
      %p154 = scmp.ne.s32.totalorder %s146, %s148
      %p155 = scmp.eq.s32.totalorder %s33, 1
      %p156 = por %p154, %p155
      %p157 = scmp.ne.s32.totalorder %s148, %s149
      %p158 = scmp.eq.s32.totalorder %s33, 0
      %p159 = por %p157, %p158
      %p160 = scmp.ne.s32.totalorder %s148, %s149
      %p161 = scmp.eq.s32.totalorder %s34, 1
      %p162 = por %p160, %p161
      %p164 = scmp.ne.s32.totalorder %s149, %s163
      %p165 = scmp.eq.s32.totalorder %s34, 0
      %p166 = por %p164, %p165
      %s168 = sadd.s32 %s167, 1
      %p171 = scmp.eq.s32.totalorder %s28, 1
      %p172 = scmp.ne.s32.totalorder %s167, %s169
      %p173 = scmp.eq.s32.totalorder %s28, 0
      %p174 = por %p172, %p173
      %p175 = scmp.ne.s32.totalorder %s167, %s169
      %p176 = scmp.eq.s32.totalorder %s33, 1
      %p177 = por %p175, %p176
      %p178 = scmp.ne.s32.totalorder %s169, %s170
      %p179 = scmp.eq.s32.totalorder %s33, 0
      %p180 = por %p178, %p179
      %p181 = scmp.ne.s32.totalorder %s169, %s170
      %p182 = scmp.eq.s32.totalorder %s34, 1
      %p183 = por %p181, %p182
      %p185 = scmp.ne.s32.totalorder %s170, %s184
      %p186 = scmp.eq.s32.totalorder %s34, 0
      %p187 = por %p185, %p186
      %s189 = sadd.s32 %s188, 1
      %p192 = scmp.eq.s32.totalorder %s28, 1
      %p193 = scmp.ne.s32.totalorder %s188, %s190
      %p194 = scmp.eq.s32.totalorder %s28, 0
      %p195 = por %p193, %p194
      %p196 = scmp.ne.s32.totalorder %s188, %s190
      %p197 = scmp.eq.s32.totalorder %s33, 1
      %p198 = por %p196, %p197
      %p199 = scmp.ne.s32.totalorder %s190, %s191
      %p200 = scmp.eq.s32.totalorder %s33, 0
      %p201 = por %p199, %p200
      %p202 = scmp.ne.s32.totalorder %s190, %s191
      %p203 = scmp.eq.s32.totalorder %s34, 1
      %p204 = por %p202, %p203
      %p206 = scmp.ne.s32.totalorder %s191, %s205
      %p207 = scmp.eq.s32.totalorder %s34, 0
      %p208 = por %p206, %p207
      %s210 = sadd.s32 %s209, 1
      %p213 = scmp.eq.s32.totalorder %s28, 1
      %p214 = scmp.ne.s32.totalorder %s209, %s211
      %p215 = scmp.eq.s32.totalorder %s28, 0
      %p216 = por %p214, %p215
      %p217 = scmp.ne.s32.totalorder %s209, %s211
      %p218 = scmp.eq.s32.totalorder %s33, 1
      %p219 = por %p217, %p218
      %p220 = scmp.ne.s32.totalorder %s211, %s212
      %p221 = scmp.eq.s32.totalorder %s33, 0
      %p222 = por %p220, %p221
      %p223 = scmp.ne.s32.totalorder %s211, %s212
      %p224 = scmp.eq.s32.totalorder %s34, 1
      %p225 = por %p223, %p224
      %p227 = scmp.ne.s32.totalorder %s212, %s226
      %p228 = scmp.eq.s32.totalorder %s34, 0
      %p229 = por %p227, %p228
      %s231 = sadd.s32 %s230, 1
      %p234 = scmp.eq.s32.totalorder %s28, 1
      %p235 = scmp.ne.s32.totalorder %s230, %s232
      %p236 = scmp.eq.s32.totalorder %s28, 0
      %p237 = por %p235, %p236
      %p238 = scmp.ne.s32.totalorder %s230, %s232
      %p239 = scmp.eq.s32.totalorder %s33, 1
      %p240 = por %p238, %p239
      %p241 = scmp.ne.s32.totalorder %s232, %s233
      %p242 = scmp.eq.s32.totalorder %s33, 0
      %p243 = por %p241, %p242
      %p244 = scmp.ne.s32.totalorder %s232, %s233
      %p245 = scmp.eq.s32.totalorder %s34, 1
      %p246 = por %p244, %p245
      %p248 = scmp.ne.s32.totalorder %s233, %s247
      %p249 = scmp.eq.s32.totalorder %s34, 0
      %p250 = por %p248, %p249
      %s252 = sadd.s32 %s251, 1
      %p255 = scmp.eq.s32.totalorder %s28, 1
      %p256 = scmp.ne.s32.totalorder %s251, %s253
      %p257 = scmp.eq.s32.totalorder %s28, 0
      %p258 = por %p256, %p257
      %p259 = scmp.ne.s32.totalorder %s251, %s253
      %p260 = scmp.eq.s32.totalorder %s33, 1
      %p261 = por %p259, %p260
      %p262 = scmp.ne.s32.totalorder %s253, %s254
      %p263 = scmp.eq.s32.totalorder %s33, 0
      %p264 = por %p262, %p263
      %p265 = scmp.ne.s32.totalorder %s253, %s254
      %p266 = scmp.eq.s32.totalorder %s34, 1
      %p267 = por %p265, %p266
      %p269 = scmp.ne.s32.totalorder %s254, %s268
      %p270 = scmp.eq.s32.totalorder %s34, 0
      %p271 = por %p269, %p270
      %s273 = sadd.s32 %s272, 1
      %p276 = scmp.eq.s32.totalorder %s28, 1
      %p277 = scmp.ne.s32.totalorder %s272, %s274
      %p278 = scmp.eq.s32.totalorder %s28, 0
      %p279 = por %p277, %p278
      %p280 = scmp.ne.s32.totalorder %s272, %s274
      %p281 = scmp.eq.s32.totalorder %s33, 1
      %p282 = por %p280, %p281
      %p283 = scmp.ne.s32.totalorder %s274, %s275
      %p284 = scmp.eq.s32.totalorder %s33, 0
      %p285 = por %p283, %p284
      %p286 = scmp.ne.s32.totalorder %s274, %s275
      %p287 = scmp.eq.s32.totalorder %s34, 1
      %p288 = por %p286, %p287
      %p290 = scmp.ne.s32.totalorder %s275, %s289
      %p291 = scmp.eq.s32.totalorder %s34, 0
      %p292 = por %p290, %p291
      %s294 = sadd.s32 %s293, 1
      %p297 = scmp.eq.s32.totalorder %s28, 1
      %p298 = scmp.ne.s32.totalorder %s293, %s295
      %p299 = scmp.eq.s32.totalorder %s28, 0
      %p300 = por %p298, %p299
      %p301 = scmp.ne.s32.totalorder %s293, %s295
      %p302 = scmp.eq.s32.totalorder %s33, 1
      %p303 = por %p301, %p302
      %p304 = scmp.ne.s32.totalorder %s295, %s296
      %p305 = scmp.eq.s32.totalorder %s33, 0
      %p306 = por %p304, %p305
      %p307 = scmp.ne.s32.totalorder %s295, %s296
      %p308 = scmp.eq.s32.totalorder %s34, 1
      %p309 = por %p307, %p308
      %p311 = scmp.ne.s32.totalorder %s296, %s310
      %p312 = scmp.eq.s32.totalorder %s34, 0
      %p313 = por %p311, %p312
      %s315 = sadd.s32 %s314, 1
      %p318 = scmp.eq.s32.totalorder %s28, 1
      %p319 = scmp.ne.s32.totalorder %s314, %s316
      %p320 = scmp.eq.s32.totalorder %s28, 0
      %p321 = por %p319, %p320
      %p322 = scmp.ne.s32.totalorder %s314, %s316
      %p323 = scmp.eq.s32.totalorder %s33, 1
      %p324 = por %p322, %p323
      %p325 = scmp.ne.s32.totalorder %s316, %s317
      %p326 = scmp.eq.s32.totalorder %s33, 0
      %p327 = por %p325, %p326
      %p328 = scmp.ne.s32.totalorder %s316, %s317
      %p329 = scmp.eq.s32.totalorder %s34, 1
      %p330 = por %p328, %p329
      %p332 = scmp.ne.s32.totalorder %s317, %s331
      %p333 = scmp.eq.s32.totalorder %s34, 0
      %p334 = por %p332, %p333
      %s336 = sadd.s32 %s335, 1
      %p339 = scmp.eq.s32.totalorder %s28, 1
      %p340 = scmp.ne.s32.totalorder %s335, %s337
      %p341 = scmp.eq.s32.totalorder %s28, 0
      %p342 = por %p340, %p341
      %p343 = scmp.ne.s32.totalorder %s335, %s337
      %p344 = scmp.eq.s32.totalorder %s33, 1
      %p345 = por %p343, %p344
      %p346 = scmp.ne.s32.totalorder %s337, %s338
      %p347 = scmp.eq.s32.totalorder %s33, 0
      %p348 = por %p346, %p347
      %p349 = scmp.ne.s32.totalorder %s337, %s338
      %p350 = scmp.eq.s32.totalorder %s34, 1
      %p351 = por %p349, %p350
      %p353 = scmp.ne.s32.totalorder %s338, %s352
      %p354 = scmp.eq.s32.totalorder %s34, 0
      %p355 = por %p353, %p354
      %s357 = sadd.s32 %s356, 1
      %p360 = scmp.eq.s32.totalorder %s28, 1
      %p361 = scmp.ne.s32.totalorder %s356, %s358
      %p362 = scmp.eq.s32.totalorder %s28, 0
      %p363 = por %p361, %p362
      %p364 = scmp.ne.s32.totalorder %s356, %s358
      %p365 = scmp.eq.s32.totalorder %s33, 1
      %p366 = por %p364, %p365
      %p367 = scmp.ne.s32.totalorder %s358, %s359
      %p368 = scmp.eq.s32.totalorder %s33, 0
      %p369 = por %p367, %p368
      %p370 = scmp.ne.s32.totalorder %s358, %s359
      %p371 = scmp.eq.s32.totalorder %s34, 1
      %p372 = por %p370, %p371
      %p374 = scmp.ne.s32.totalorder %s359, %s373
      %p375 = scmp.eq.s32.totalorder %s34, 0
      %p376 = por %p374, %p375
      %s378 = sadd.s32 %s377, 1
      %p381 = scmp.eq.s32.totalorder %s28, 1
      %p382 = scmp.ne.s32.totalorder %s377, %s379
      %p383 = scmp.eq.s32.totalorder %s28, 0
      %p384 = por %p382, %p383
      %p385 = scmp.ne.s32.totalorder %s377, %s379
      %p386 = scmp.eq.s32.totalorder %s33, 1
      %p387 = por %p385, %p386
      %p388 = scmp.ne.s32.totalorder %s379, %s380
      %p389 = scmp.eq.s32.totalorder %s33, 0
      %p390 = por %p388, %p389
      %p391 = scmp.ne.s32.totalorder %s379, %s380
      %p392 = scmp.eq.s32.totalorder %s34, 1
      %p393 = por %p391, %p392
      %p395 = scmp.ne.s32.totalorder %s380, %s394
      %p396 = scmp.eq.s32.totalorder %s34, 0
      %p397 = por %p395, %p396
      %s399 = sadd.s32 %s398, 1
      %p402 = scmp.eq.s32.totalorder %s28, 1
      %p403 = scmp.ne.s32.totalorder %s398, %s400
      %p404 = scmp.eq.s32.totalorder %s28, 0
      %p405 = por %p403, %p404
      %p406 = scmp.ne.s32.totalorder %s398, %s400
      %p407 = scmp.eq.s32.totalorder %s33, 1
      %p408 = por %p406, %p407
      %p409 = scmp.ne.s32.totalorder %s400, %s401
      %p410 = scmp.eq.s32.totalorder %s33, 0
      %p411 = por %p409, %p410
      %p412 = scmp.ne.s32.totalorder %s400, %s401
      %p413 = scmp.eq.s32.totalorder %s34, 1
      %p414 = por %p412, %p413
      %p416 = scmp.ne.s32.totalorder %s401, %s415
      %p417 = scmp.eq.s32.totalorder %s34, 0
      %p418 = por %p416, %p417
      %s420 = sadd.s32 %s419, 1
      %p423 = scmp.eq.s32.totalorder %s28, 1
      %p424 = scmp.ne.s32.totalorder %s419, %s421
      %p425 = scmp.eq.s32.totalorder %s28, 0
      %p426 = por %p424, %p425
      %p427 = scmp.ne.s32.totalorder %s419, %s421
      %p428 = scmp.eq.s32.totalorder %s33, 1
      %p429 = por %p427, %p428
      %p430 = scmp.ne.s32.totalorder %s421, %s422
      %p431 = scmp.eq.s32.totalorder %s33, 0
      %p432 = por %p430, %p431
      %p433 = scmp.ne.s32.totalorder %s421, %s422
      %p434 = scmp.eq.s32.totalorder %s34, 1
      %p435 = por %p433, %p434
      %p437 = scmp.ne.s32.totalorder %s422, %s436
      %p438 = scmp.eq.s32.totalorder %s34, 0
      %p439 = por %p437, %p438
      %s440 = ssub.s32 %s28, %s35
      %p441 = scmp.eq.s32.totalorder %s440, 0
      %s443 = sadd.s32 %s442, 1
      %s444 = scalar_select %p441, %s442, %s443
      %p447 = pneg %p441
      %p448 = scmp.eq.s32.totalorder %s28, 1
      %p449 = por %p447, %p448
      %p450 = scmp.ne.s32.totalorder %s442, %s445
      %p451 = scmp.eq.s32.totalorder %s28, 0
      %p452 = por %p450, %p451
      %p453 = scmp.ne.s32.totalorder %s442, %s445
      %p454 = scmp.eq.s32.totalorder %s33, 1
      %p455 = por %p453, %p454
      %p456 = scmp.ne.s32.totalorder %s445, %s446
      %p457 = scmp.eq.s32.totalorder %s33, 0
      %p458 = por %p456, %p457
      %p459 = scmp.ne.s32.totalorder %s445, %s446
      %p460 = scmp.eq.s32.totalorder %s34, 1
      %p461 = por %p459, %p460
      %p463 = scmp.ne.s32.totalorder %s446, %s462
      %p464 = scmp.eq.s32.totalorder %s34, 0
      %p465 = por %p463, %p464
      %p466 = scmp.le.s32.totalorder 1, %s28
      %p467 = scmp.lt.s32.totalorder %s28, 3
      %p468 = pnand %p466, %p467
      %p469 = pneg %p468
      // Predicated region
      $region9: #{cnn_transformer_forward.3} parent=5 // pred_check
        _
      $region10: #{cnn_transformer_forward.3} parent=5 // pred_check_branch
        %471 = sbr.rel (%p468) target = $region12
      $region11: #{cnn_transformer_forward.3} parent=5 // pred_region
        %s472 = ssub.s32 %s28, 1
        // Predicated region
        $region13: #{cnn_transformer_forward.3} parent=11 // pred_check
          %p473 = pneg %p75
        $region14: #{cnn_transformer_forward.3} parent=11 // pred_check_branch
          %475 = sbr.rel (%p473) target = $region16
        $region15: #{cnn_transformer_forward.3} parent=11 // pred_region
          _
        $region16: #{cnn_transformer_forward.3} parent=11 // pred_fallthru
          _
        // Predicated region
        $region17: #{cnn_transformer_forward.3} parent=11 // pred_check
          %p476 = pneg %p96
        $region18: #{cnn_transformer_forward.3} parent=11 // pred_check_branch
          %478 = sbr.rel (%p476) target = $region20
        $region19: #{cnn_transformer_forward.3} parent=11 // pred_region
          _
        $region20: #{cnn_transformer_forward.3} parent=11 // pred_fallthru
          _
        // Predicated region
        $region21: #{cnn_transformer_forward.3} parent=11 // pred_check
          %p479 = pneg %p117
        $region22: #{cnn_transformer_forward.3} parent=11 // pred_check_branch
          %481 = sbr.rel (%p479) target = $region24
        $region23: #{cnn_transformer_forward.3} parent=11 // pred_region
          _
        $region24: #{cnn_transformer_forward.3} parent=11 // pred_fallthru
          _
        // Predicated region
        $region25: #{cnn_transformer_forward.3} parent=11 // pred_check
          %p482 = pneg %p138
        $region26: #{cnn_transformer_forward.3} parent=11 // pred_check_branch
          %484 = sbr.rel (%p482) target = $region28
        $region27: #{cnn_transformer_forward.3} parent=11 // pred_region
          _
        $region28: #{cnn_transformer_forward.3} parent=11 // pred_fallthru
          _
        // Predicated region
        $region29: #{cnn_transformer_forward.3} parent=11 // pred_check
          %p485 = pneg %p159
        $region30: #{cnn_transformer_forward.3} parent=11 // pred_check_branch
          %487 = sbr.rel (%p485) target = $region32
        $region31: #{cnn_transformer_forward.3} parent=11 // pred_region
          _
        $region32: #{cnn_transformer_forward.3} parent=11 // pred_fallthru
          _
        // Predicated region
        $region33: #{cnn_transformer_forward.3} parent=11 // pred_check
          %p488 = pneg %p180
        $region34: #{cnn_transformer_forward.3} parent=11 // pred_check_branch
          %490 = sbr.rel (%p488) target = $region36
        $region35: #{cnn_transformer_forward.3} parent=11 // pred_region
          _
        $region36: #{cnn_transformer_forward.3} parent=11 // pred_fallthru
          _
        // Predicated region
        $region37: #{cnn_transformer_forward.3} parent=11 // pred_check
          %p491 = pneg %p201
        $region38: #{cnn_transformer_forward.3} parent=11 // pred_check_branch
          %493 = sbr.rel (%p491) target = $region40
        $region39: #{cnn_transformer_forward.3} parent=11 // pred_region
          _
        $region40: #{cnn_transformer_forward.3} parent=11 // pred_fallthru
          _
        // Predicated region
        $region41: #{cnn_transformer_forward.3} parent=11 // pred_check
          %p494 = pneg %p222
        $region42: #{cnn_transformer_forward.3} parent=11 // pred_check_branch
          %496 = sbr.rel (%p494) target = $region44
        $region43: #{cnn_transformer_forward.3} parent=11 // pred_region
          _
        $region44: #{cnn_transformer_forward.3} parent=11 // pred_fallthru
          _
        // Predicated region
        $region45: #{cnn_transformer_forward.3} parent=11 // pred_check
          %p497 = pneg %p243
        $region46: #{cnn_transformer_forward.3} parent=11 // pred_check_branch
          %499 = sbr.rel (%p497) target = $region48
        $region47: #{cnn_transformer_forward.3} parent=11 // pred_region
          _
        $region48: #{cnn_transformer_forward.3} parent=11 // pred_fallthru
          _
        // Predicated region
        $region49: #{cnn_transformer_forward.3} parent=11 // pred_check
          %p500 = pneg %p264
        $region50: #{cnn_transformer_forward.3} parent=11 // pred_check_branch
          %502 = sbr.rel (%p500) target = $region52
        $region51: #{cnn_transformer_forward.3} parent=11 // pred_region
          _
        $region52: #{cnn_transformer_forward.3} parent=11 // pred_fallthru
          _
        // Predicated region
        $region53: #{cnn_transformer_forward.3} parent=11 // pred_check
          %p503 = pneg %p285
        $region54: #{cnn_transformer_forward.3} parent=11 // pred_check_branch
          %505 = sbr.rel (%p503) target = $region56
        $region55: #{cnn_transformer_forward.3} parent=11 // pred_region
          _
        $region56: #{cnn_transformer_forward.3} parent=11 // pred_fallthru
          _
        // Predicated region
        $region57: #{cnn_transformer_forward.3} parent=11 // pred_check
          %p506 = pneg %p306
        $region58: #{cnn_transformer_forward.3} parent=11 // pred_check_branch
          %508 = sbr.rel (%p506) target = $region60
        $region59: #{cnn_transformer_forward.3} parent=11 // pred_region
          _
        $region60: #{cnn_transformer_forward.3} parent=11 // pred_fallthru
          _
        // Predicated region
        $region61: #{cnn_transformer_forward.3} parent=11 // pred_check
          %p509 = pneg %p327
        $region62: #{cnn_transformer_forward.3} parent=11 // pred_check_branch
          %511 = sbr.rel (%p509) target = $region64
        $region63: #{cnn_transformer_forward.3} parent=11 // pred_region
          _
        $region64: #{cnn_transformer_forward.3} parent=11 // pred_fallthru
          _
        // Predicated region
        $region65: #{cnn_transformer_forward.3} parent=11 // pred_check
          %p512 = pneg %p348
        $region66: #{cnn_transformer_forward.3} parent=11 // pred_check_branch
          %514 = sbr.rel (%p512) target = $region68
        $region67: #{cnn_transformer_forward.3} parent=11 // pred_region
          _
        $region68: #{cnn_transformer_forward.3} parent=11 // pred_fallthru
          _
        // Predicated region
        $region69: #{cnn_transformer_forward.3} parent=11 // pred_check
          %p515 = pneg %p369
        $region70: #{cnn_transformer_forward.3} parent=11 // pred_check_branch
          %517 = sbr.rel (%p515) target = $region72
        $region71: #{cnn_transformer_forward.3} parent=11 // pred_region
          _
        $region72: #{cnn_transformer_forward.3} parent=11 // pred_fallthru
          _
        // Predicated region
        $region73: #{cnn_transformer_forward.3} parent=11 // pred_check
          %p518 = pneg %p390
        $region74: #{cnn_transformer_forward.3} parent=11 // pred_check_branch
          %520 = sbr.rel (%p518) target = $region76
        $region75: #{cnn_transformer_forward.3} parent=11 // pred_region
          _
        $region76: #{cnn_transformer_forward.3} parent=11 // pred_fallthru
          _
        // Predicated region
        $region77: #{cnn_transformer_forward.3} parent=11 // pred_check
          %p521 = pneg %p411
        $region78: #{cnn_transformer_forward.3} parent=11 // pred_check_branch
          %523 = sbr.rel (%p521) target = $region80
        $region79: #{cnn_transformer_forward.3} parent=11 // pred_region
          _
        $region80: #{cnn_transformer_forward.3} parent=11 // pred_fallthru
          _
        // Predicated region
        $region81: #{cnn_transformer_forward.3} parent=11 // pred_check
          %p524 = pneg %p432
        $region82: #{cnn_transformer_forward.3} parent=11 // pred_check_branch
          %526 = sbr.rel (%p524) target = $region84
        $region83: #{cnn_transformer_forward.3} parent=11 // pred_region
          _
        $region84: #{cnn_transformer_forward.3} parent=11 // pred_fallthru
          _
      $region12: #{cnn_transformer_forward.3} parent=5 // pred_fallthru
        _
      %p527 = scmp.lt.s32.totalorder %s28, 2
      // Predicated region
      $region85: #{cnn_transformer_forward.3} parent=5 // pred_check
        %p528 = pneg %p527
      $region86: #{cnn_transformer_forward.3} parent=5 // pred_check_branch
        %530 = sbr.rel (%p528) target = $region88
      $region87: #{cnn_transformer_forward.3} parent=5 // pred_region
        // Predicated region
        $region89: #{cnn_transformer_forward.3} parent=87 // pred_check
          %p531 = pneg %p48
        $region90: #{cnn_transformer_forward.3} parent=87 // pred_check_branch
          %533 = sbr.rel (%p531) target = $region92
        $region91: #{cnn_transformer_forward.3} parent=87 // pred_region
          %p534 = scmp.lt.s32.totalorder %s28, 1
          %s535 = scalar_select %p534, %s28, 1
          %s536 = smul.addr %s535, 8
          %s537 = scalar_lea.vmem %s0, %s536
        $region92: #{cnn_transformer_forward.3} parent=87 // pred_fallthru
          _
      $region88: #{cnn_transformer_forward.3} parent=5 // pred_fallthru
        _
      %p538 = scmp.le.s32.totalorder 1, %s28
      %p539 = scmp.lt.s32.totalorder %s28, 3
      %p540 = pnand %p538, %p539
      %p541 = pneg %p540
      // Predicated region
      $region93: #{cnn_transformer_forward.3} parent=5 // pred_check
        _
      $region94: #{cnn_transformer_forward.3} parent=5 // pred_check_branch
        %543 = sbr.rel (%p540) target = $region96
      $region95: #{cnn_transformer_forward.3} parent=5 // pred_region
        %s544 = ssub.s32 %s28, 1
        %p545 = scmp.lt.s32.totalorder %s33, 1
        %s546 = scalar_select %p545, %s33, 1
        %s547 = smul.addr %s546, 8
        %s548 = scalar_lea.vmem %s0, %s547
        %p549 = pneg %p54
        %p550 = pneg %p51
        %p551 = pneg %p75
        %p552 = pneg %p72
        %p553 = pneg %p96
        %p554 = pneg %p93
        %p555 = pneg %p117
        %p556 = pneg %p114
        %p557 = pneg %p138
        %p558 = pneg %p135
        %p559 = pneg %p159
        %p560 = pneg %p156
        %p561 = pneg %p180
        %p562 = pneg %p177
        %p563 = pneg %p201
        %p564 = pneg %p198
        %p565 = pneg %p222
        %p566 = pneg %p219
        %p567 = pneg %p243
        %p568 = pneg %p240
        %p569 = pneg %p264
        %p570 = pneg %p261
        %p571 = pneg %p285
        %p572 = pneg %p282
        %p573 = pneg %p306
        %p574 = pneg %p303
        %p575 = pneg %p327
        %p576 = pneg %p324
        %p577 = pneg %p348
        %p578 = pneg %p345
        %p579 = pneg %p369
        %p580 = pneg %p366
        %p581 = pneg %p390
        %p582 = pneg %p387
        %p583 = pneg %p411
        %p584 = pneg %p408
        %p585 = pneg %p432
        %p586 = pneg %p429
        %p587 = pneg %p458
        %p588 = pneg %p455
        %s589 = sand.u32 %s445, 1
        %s590 = scalar_lea.sflag [#allocation4], %s589
        %s591 = sand.u32 %s445, 1
        %s592 = scalar_lea.vmem [#allocation3], %s591
        %p593 = scmp.lt.s32.totalorder %s33, 1
        %s594 = scalar_select %p593, %s33, 1
        %s595 = smul.addr %s594, 8
        %s596 = scalar_lea.vmem %s0, %s595
        %v598 = vld [vmem:[%s596] sm:$0xff]
        %vm599 = vcmask 261120
        %v600 = vsel %vm599, %v598, 0.0
        %601 = vadd.xlane.f32.xlu0 %v600
        %v602 = vpop.xlane.xlu0 %601
        %v603 = vrcp.pop 32.0
        %v604 = vmul.f32 %v602, %v603
        %v605 = vsub.f32 %v598, %v604
        %v606 = vmul.f32 %v605, %v605
        %v607 = vsel %vm599, %v606, 0.0
        %608 = vadd.xlane.f32.xlu0 %v607
        %v609 = vpop.xlane.xlu0 %608
        %v610 = vmul.f32 %v609, %v603
        %v611 = vadd.f32 %v610, 1e-05
        %v612 = vrsqrt.pop %v611
        %v613 = vmul.f32 %v605, %v612
        %v614 = vld [vmem:[%s1] sm:$0x1]
        %v616 = vlaneseq
        %v617 = vshrl.u32 %v616, 7
        %v618 = vsub.s32 0, %v617
        %v619 = vrot.slane %v614, %v618
        %v621 = vmul.f32 %v613, %v619
        %v622 = vld [vmem:[%s2] sm:$0x1]
        %v624 = vlaneseq
        %v625 = vshrl.u32 %v624, 7
        %v626 = vsub.s32 0, %v625
        %v627 = vrot.slane %v622, %v626
        %v629 = vadd.f32 %v621, %v627
        %v630 = vpack.c.bf16 %v629, %v629
        %v631 = vld [vmem:[%s3] sm:$0xf]
        %v632 = vld [vmem:[%s3 + $0x4] sm:$0xf]
        %v633 = vld [vmem:[%s3 + $0x8] sm:$0xf]
        %v634 = vld [vmem:[%s3 + $0xc] sm:$0xf]
        %v635 = vld [vmem:[%s6] sm:$0x1]
        %v637 = vlaneseq
        %v638 = vshrl.u32 %v637, 7
        %v639 = vsub.s32 0, %v638
        %v640 = vrot.slane %v635, %v639
        %v646 = vunpack.c.l.b16 %v631
        %v647 = vunpack.c.l.b16 %v632
        %v648 = vunpack.c.l.b16 %v633
        %v649 = vunpack.c.l.b16 %v634
        %v650 = vpack.c.b16 %v647, %v646
        %v651 = vpack.c.b16 %v649, %v648
        %v655 = vsel %vm599, %v630, 0
        %657 = vmatprep.subr.bf16.mxu0 0
        %658 = vmatpush1.bf16.msra.mxu0 0
        %659 = vmatprep.subr.bf16.mxu0 0
        %660 = vmatpush1.bf16.msra.mxu0 0
        %661 = vmatprep.subr.bf16.mxu0 0
        %662 = vmatpush1.bf16.msra.mxu0 0
        %663 = vmatprep.subr.bf16.mxu0 0
        %664 = vmatpush1.bf16.msra.mxu0 0
        %665 = vmatprep.subr.bf16.mxu0 0
        %666 = vmatpush1.bf16.msra.mxu0 0
        %667 = vmatprep.subr.bf16.mxu0 0
        %668 = vmatpush1.bf16.msra.mxu0 0
        %669 = vmatprep.subr.bf16.mxu0 0
        %670 = vmatpush1.bf16.msra.mxu0 %v651
        %671 = vmatprep.subr.bf16.mxu0 0
        %672 = vmatpush1.bf16.msra.mxu0 %v650
        %673 = vmatprep.subr.bf16.mxu0 0
        %674 = vmatpush2.bf16.msra.mxu0 0
        %675 = vmatprep.subr.bf16.mxu0 0
        %676 = vmatpush2.bf16.msra.mxu0 0
        %677 = vmatprep.subr.bf16.mxu0 0
        %678 = vmatpush2.bf16.msra.mxu0 0
        %679 = vmatprep.subr.bf16.mxu0 0
        %680 = vmatpush2.bf16.msra.mxu0 0
        %681 = vmatprep.subr.bf16.mxu0 0
        %682 = vmatpush2.bf16.msra.mxu0 0
        %683 = vmatprep.subr.bf16.mxu0 0
        %684 = vmatpush2.bf16.msra.mxu0 0
        %685 = vmatprep.subr.bf16.mxu0 0
        %686 = vmatpush2.bf16.msra.mxu0 0
        %687 = vmatprep.subr.bf16.mxu0 0
        %688 = vmatpush2.bf16.msra.mxu0 0
        %689 = vmatprep.mubr.bf16.mxu0 0
        %690 = vmatmul.mubr.bf16.gmra.mxu0 %v655
        %v691 = vpop.f32.mrf.mxu0
        %v692 = vadd.f32 %v640, %v691
        %v693 = vpop.f32.mrf.mxu0
        %v694 = vpop.f32.mrf.mxu0
        %v695 = vpop.f32.mrf.mxu0
        %696 = vdwg.mxu0
        %v697 = vld [vmem:[%s4] sm:$0xf]
        %v698 = vld [vmem:[%s4 + $0x4] sm:$0xf]
        %v699 = vld [vmem:[%s4 + $0x8] sm:$0xf]
        %v700 = vld [vmem:[%s4 + $0xc] sm:$0xf]
        %v701 = vld [vmem:[%s7] sm:$0x1]
        %v703 = vlaneseq
        %v704 = vshrl.u32 %v703, 7
        %v705 = vsub.s32 0, %v704
        %v706 = vrot.slane %v701, %v705
        %v712 = vunpack.c.l.b16 %v697
        %v713 = vunpack.c.l.b16 %v698
        %v714 = vunpack.c.l.b16 %v699
        %v715 = vunpack.c.l.b16 %v700
        %v716 = vpack.c.b16 %v713, %v712
        %v717 = vpack.c.b16 %v715, %v714
        %720 = vmatprep.subr.bf16.mxu0 0
        %721 = vmatpush1.bf16.msra.mxu0 0
        %722 = vmatprep.subr.bf16.mxu0 0
        %723 = vmatpush1.bf16.msra.mxu0 0
        %724 = vmatprep.subr.bf16.mxu0 0
        %725 = vmatpush1.bf16.msra.mxu0 0
        %726 = vmatprep.subr.bf16.mxu0 0
        %727 = vmatpush1.bf16.msra.mxu0 0
        %728 = vmatprep.subr.bf16.mxu0 0
        %729 = vmatpush1.bf16.msra.mxu0 0
        %730 = vmatprep.subr.bf16.mxu0 0
        %731 = vmatpush1.bf16.msra.mxu0 0
        %732 = vmatprep.subr.bf16.mxu0 0
        %733 = vmatpush1.bf16.msra.mxu0 %v717
        %734 = vmatprep.subr.bf16.mxu0 0
        %735 = vmatpush1.bf16.msra.mxu0 %v716
        %736 = vmatprep.subr.bf16.mxu0 0
        %737 = vmatpush2.bf16.msra.mxu0 0
        %738 = vmatprep.subr.bf16.mxu0 0
        %739 = vmatpush2.bf16.msra.mxu0 0
        %740 = vmatprep.subr.bf16.mxu0 0
        %741 = vmatpush2.bf16.msra.mxu0 0
        %742 = vmatprep.subr.bf16.mxu0 0
        %743 = vmatpush2.bf16.msra.mxu0 0
        %744 = vmatprep.subr.bf16.mxu0 0
        %745 = vmatpush2.bf16.msra.mxu0 0
        %746 = vmatprep.subr.bf16.mxu0 0
        %747 = vmatpush2.bf16.msra.mxu0 0
        %748 = vmatprep.subr.bf16.mxu0 0
        %749 = vmatpush2.bf16.msra.mxu0 0
        %750 = vmatprep.subr.bf16.mxu0 0
        %751 = vmatpush2.bf16.msra.mxu0 0
        %752 = vmatprep.mubr.bf16.mxu0 0
        %753 = vmatmul.mubr.bf16.gmra.mxu0 %v655
        %v754 = vpop.f32.mrf.mxu0
        %v755 = vadd.f32 %v706, %v754
        %v756 = vpop.f32.mrf.mxu0
        %v757 = vpop.f32.mrf.mxu0
        %v758 = vpop.f32.mrf.mxu0
        %759 = vdwg.mxu0
        %v760 = vld [vmem:[%s5] sm:$0xf]
        %v761 = vld [vmem:[%s5 + $0x4] sm:$0xf]
        %v762 = vld [vmem:[%s5 + $0x8] sm:$0xf]
        %v763 = vld [vmem:[%s5 + $0xc] sm:$0xf]
        %v764 = vld [vmem:[%s8] sm:$0x1]
        %v766 = vlaneseq
        %v767 = vshrl.u32 %v766, 7
        %v768 = vsub.s32 0, %v767
        %v769 = vrot.slane %v764, %v768
        %v775 = vunpack.c.l.b16 %v760
        %v776 = vunpack.c.l.b16 %v761
        %v777 = vunpack.c.l.b16 %v762
        %v778 = vunpack.c.l.b16 %v763
        %v779 = vpack.c.b16 %v776, %v775
        %v780 = vpack.c.b16 %v778, %v777
        %783 = vmatprep.subr.bf16.mxu0 0
        %784 = vmatpush1.bf16.msra.mxu0 0
        %785 = vmatprep.subr.bf16.mxu0 0
        %786 = vmatpush1.bf16.msra.mxu0 0
        %787 = vmatprep.subr.bf16.mxu0 0
        %788 = vmatpush1.bf16.msra.mxu0 0
        %789 = vmatprep.subr.bf16.mxu0 0
        %790 = vmatpush1.bf16.msra.mxu0 0
        %791 = vmatprep.subr.bf16.mxu0 0
        %792 = vmatpush1.bf16.msra.mxu0 0
        %793 = vmatprep.subr.bf16.mxu0 0
        %794 = vmatpush1.bf16.msra.mxu0 0
        %795 = vmatprep.subr.bf16.mxu0 0
        %796 = vmatpush1.bf16.msra.mxu0 %v780
        %797 = vmatprep.subr.bf16.mxu0 0
        %798 = vmatpush1.bf16.msra.mxu0 %v779
        %799 = vmatprep.subr.bf16.mxu0 0
        %800 = vmatpush2.bf16.msra.mxu0 0
        %801 = vmatprep.subr.bf16.mxu0 0
        %802 = vmatpush2.bf16.msra.mxu0 0
        %803 = vmatprep.subr.bf16.mxu0 0
        %804 = vmatpush2.bf16.msra.mxu0 0
        %805 = vmatprep.subr.bf16.mxu0 0
        %806 = vmatpush2.bf16.msra.mxu0 0
        %807 = vmatprep.subr.bf16.mxu0 0
        %808 = vmatpush2.bf16.msra.mxu0 0
        %809 = vmatprep.subr.bf16.mxu0 0
        %810 = vmatpush2.bf16.msra.mxu0 0
        %811 = vmatprep.subr.bf16.mxu0 0
        %812 = vmatpush2.bf16.msra.mxu0 0
        %813 = vmatprep.subr.bf16.mxu0 0
        %814 = vmatpush2.bf16.msra.mxu0 0
        %815 = vmatprep.mubr.bf16.mxu0 0
        %816 = vmatmul.mubr.bf16.gmra.mxu0 %v655
        %v817 = vpop.f32.mrf.mxu0
        %v818 = vadd.f32 %v769, %v817
        %v819 = vpop.f32.mrf.mxu0
        %v820 = vpop.f32.mrf.mxu0
        %v821 = vpop.f32.mrf.mxu0
        %822 = vdwg.mxu0
        %vm823 = vcmask 64512
        %v825 = vsel %vm823, %v692, 0
        %v828 = vsel %vm823, %v755, 0
        %830 = vmatprep.subr.mxu0 0.0
        %831 = vmatpush1.xpose.msra.mxu0 0.0
        %832 = vmatprep.subr.mxu0 0.0
        %833 = vmatpush1.xpose.msra.mxu0 0.0
        %834 = vmatprep.subr.mxu0 0.0
        %835 = vmatpush1.xpose.msra.mxu0 0.0
        %836 = vmatprep.subr.mxu0 0.0
        %837 = vmatpush1.xpose.msra.mxu0 0.0
        %838 = vmatprep.subr.mxu0 0.0
        %839 = vmatpush1.xpose.msra.mxu0 0.0
        %840 = vmatprep.subr.mxu0 0.0
        %841 = vmatpush1.xpose.msra.mxu0 0.0
        %842 = vmatprep.subr.mxu0 0.0
        %843 = vmatpush1.xpose.msra.mxu0 0.0
        %844 = vmatprep.subr.mxu0 0.0
        %845 = vmatpush1.xpose.msra.mxu0 0.0
        %846 = vmatprep.subr.mxu0 0.0
        %847 = vmatpush1.xpose.msra.mxu0 0.0
        %848 = vmatprep.subr.mxu0 0.0
        %849 = vmatpush1.xpose.msra.mxu0 0.0
        %850 = vmatprep.subr.mxu0 0.0
        %851 = vmatpush1.xpose.msra.mxu0 0.0
        %852 = vmatprep.subr.mxu0 0.0
        %853 = vmatpush1.xpose.msra.mxu0 0.0
        %854 = vmatprep.subr.mxu0 0.0
        %855 = vmatpush1.xpose.msra.mxu0 0.0
        %856 = vmatprep.subr.mxu0 0.0
        %857 = vmatpush1.xpose.msra.mxu0 0.0
        %858 = vmatprep.subr.mxu0 0.0
        %859 = vmatpush1.xpose.msra.mxu0 0.0
        %860 = vmatprep.subr.mxu0 0.0
        %861 = vmatpush1.xpose.msra.mxu0 %v828
        %862 = vmatprep.subr.mxu0 0.0
        %863 = vmatpush2.xpose.msra.mxu0 0.0
        %864 = vmatprep.subr.mxu0 0.0
        %865 = vmatpush2.xpose.msra.mxu0 0.0
        %866 = vmatprep.subr.mxu0 0.0
        %867 = vmatpush2.xpose.msra.mxu0 0.0
        %868 = vmatprep.subr.mxu0 0.0
        %869 = vmatpush2.xpose.msra.mxu0 0.0
        %870 = vmatprep.subr.mxu0 0.0
        %871 = vmatpush2.xpose.msra.mxu0 0.0
        %872 = vmatprep.subr.mxu0 0.0
        %873 = vmatpush2.xpose.msra.mxu0 0.0
        %874 = vmatprep.subr.mxu0 0.0
        %875 = vmatpush2.xpose.msra.mxu0 0.0
        %876 = vmatprep.subr.mxu0 0.0
        %877 = vmatpush2.xpose.msra.mxu0 0.0
        %878 = vmatprep.subr.mxu0 0.0
        %879 = vmatpush2.xpose.msra.mxu0 0.0
        %880 = vmatprep.subr.mxu0 0.0
        %881 = vmatpush2.xpose.msra.mxu0 0.0
        %882 = vmatprep.subr.mxu0 0.0
        %883 = vmatpush2.xpose.msra.mxu0 0.0
        %884 = vmatprep.subr.mxu0 0.0
        %885 = vmatpush2.xpose.msra.mxu0 0.0
        %886 = vmatprep.subr.mxu0 0.0
        %887 = vmatpush2.xpose.msra.mxu0 0.0
        %888 = vmatprep.subr.mxu0 0.0
        %889 = vmatpush2.xpose.msra.mxu0 0.0
        %890 = vmatprep.subr.mxu0 0.0
        %891 = vmatpush2.xpose.msra.mxu0 0.0
        %892 = vmatprep.subr.mxu0 0.0
        %893 = vmatpush2.xpose.msra.mxu0 0.0
        %894 = vmatprep.mubr.f32.mxu0 0.0
        %895 = vmatmul.mubr.f32.gmra.mxu0 %v825
        %v896 = vpop.f32.mrf.mxu0
        %v897 = vadd.f32 0.0, %v896
        %v898 = vpop.f32.mrf.mxu0
        %899 = vdwg.mxu0
        %v900 = vmul.f32 %v897, 0.35355338
        %v901 = vsel %vm823, %v900, -inf
        %902 = vmax.xlane.f32.xlu0 %v901
        %v903 = vpop.xlane.xlu0 %902
        %v904 = vsub.f32 %v900, %v903
        %v905 = vmul.f32 %v904, 1.442695
        %v906 = vpow.pop %v905
        %v907 = vsel %vm823, %v906, 0.0
        %908 = vadd.xlane.f32.xlu0 %v907
        %v909 = vpop.xlane.xlu0 %908
        %v910 = vrcp.pop %v909
        %v911 = vmul.f32 %v906, %v910
        %v913 = vsel %vm823, %v911, 0
        %915 = vmatprep.subr.mxu0 0.0
        %916 = vmatpush1.msra.mxu0 0.0
        %917 = vmatprep.subr.mxu0 0.0
        %918 = vmatpush1.msra.mxu0 0.0
        %919 = vmatprep.subr.mxu0 0.0
        %920 = vmatpush1.msra.mxu0 0.0
        %921 = vmatprep.subr.mxu0 0.0
        %922 = vmatpush1.msra.mxu0 0.0
        %923 = vmatprep.subr.mxu0 0.0
        %924 = vmatpush1.msra.mxu0 0.0
        %925 = vmatprep.subr.mxu0 0.0
        %926 = vmatpush1.msra.mxu0 0.0
        %927 = vmatprep.subr.mxu0 0.0
        %928 = vmatpush1.msra.mxu0 0.0
        %929 = vmatprep.subr.mxu0 0.0
        %930 = vmatpush1.msra.mxu0 0.0
        %931 = vmatprep.subr.mxu0 0.0
        %932 = vmatpush1.msra.mxu0 0.0
        %933 = vmatprep.subr.mxu0 0.0
        %934 = vmatpush1.msra.mxu0 0.0
        %935 = vmatprep.subr.mxu0 0.0
        %936 = vmatpush1.msra.mxu0 0.0
        %937 = vmatprep.subr.mxu0 0.0
        %938 = vmatpush1.msra.mxu0 0.0
        %939 = vmatprep.subr.mxu0 0.0
        %940 = vmatpush1.msra.mxu0 0.0
        %941 = vmatprep.subr.mxu0 0.0
        %942 = vmatpush1.msra.mxu0 0.0
        %943 = vmatprep.subr.mxu0 0.0
        %944 = vmatpush1.msra.mxu0 0.0
        %945 = vmatprep.subr.mxu0 0.0
        %946 = vmatpush1.msra.mxu0 %v818
        %947 = vmatprep.subr.mxu0 0.0
        %948 = vmatpush2.msra.mxu0 0.0
        %949 = vmatprep.subr.mxu0 0.0
        %950 = vmatpush2.msra.mxu0 0.0
        %951 = vmatprep.subr.mxu0 0.0
        %952 = vmatpush2.msra.mxu0 0.0
        %953 = vmatprep.subr.mxu0 0.0
        %954 = vmatpush2.msra.mxu0 0.0
        %955 = vmatprep.subr.mxu0 0.0
        %956 = vmatpush2.msra.mxu0 0.0
        %957 = vmatprep.subr.mxu0 0.0
        %958 = vmatpush2.msra.mxu0 0.0
        %959 = vmatprep.subr.mxu0 0.0
        %960 = vmatpush2.msra.mxu0 0.0
        %961 = vmatprep.subr.mxu0 0.0
        %962 = vmatpush2.msra.mxu0 0.0
        %963 = vmatprep.subr.mxu0 0.0
        %964 = vmatpush2.msra.mxu0 0.0
        %965 = vmatprep.subr.mxu0 0.0
        %966 = vmatpush2.msra.mxu0 0.0
        %967 = vmatprep.subr.mxu0 0.0
        %968 = vmatpush2.msra.mxu0 0.0
        %969 = vmatprep.subr.mxu0 0.0
        %970 = vmatpush2.msra.mxu0 0.0
        %971 = vmatprep.subr.mxu0 0.0
        %972 = vmatpush2.msra.mxu0 0.0
        %973 = vmatprep.subr.mxu0 0.0
        %974 = vmatpush2.msra.mxu0 0.0
        %975 = vmatprep.subr.mxu0 0.0
        %976 = vmatpush2.msra.mxu0 0.0
        %977 = vmatprep.subr.mxu0 0.0
        %978 = vmatpush2.msra.mxu0 0.0
        %979 = vmatprep.mubr.f32.mxu0 0.0
        %980 = vmatmul.mubr.f32.gmra.mxu0 %v913
        %v981 = vpop.f32.mrf.mxu0
        %v982 = vadd.f32 0.0, %v981
        %v983 = vpop.f32.mrf.mxu0
        %984 = vdwg.mxu0
        %985 = vst.msk [vmem:[#allocation2] sm:$0xff] %vm823, %v982
        %986 = vrot.lane.b32.xlu0 %v692, 120
        %v987 = vpop.permute.xlu0 %986
        %988 = vrot.lane.b32.xlu0 %v755, 120
        %v989 = vpop.permute.xlu0 %988
        %v990 = vsel %vm823, %v987, 0
        %v992 = vsel %vm823, %v989, 0
        %994 = vmatprep.subr.mxu0 0.0
        %995 = vmatpush1.xpose.msra.mxu0 0.0
        %996 = vmatprep.subr.mxu0 0.0
        %997 = vmatpush1.xpose.msra.mxu0 0.0
        %998 = vmatprep.subr.mxu0 0.0
        %999 = vmatpush1.xpose.msra.mxu0 0.0
        %1000 = vmatprep.subr.mxu0 0.0
        %1001 = vmatpush1.xpose.msra.mxu0 0.0
        %1002 = vmatprep.subr.mxu0 0.0
        %1003 = vmatpush1.xpose.msra.mxu0 0.0
        %1004 = vmatprep.subr.mxu0 0.0
        %1005 = vmatpush1.xpose.msra.mxu0 0.0
        %1006 = vmatprep.subr.mxu0 0.0
        %1007 = vmatpush1.xpose.msra.mxu0 0.0
        %1008 = vmatprep.subr.mxu0 0.0
        %1009 = vmatpush1.xpose.msra.mxu0 0.0
        %1010 = vmatprep.subr.mxu0 0.0
        %1011 = vmatpush1.xpose.msra.mxu0 0.0
        %1012 = vmatprep.subr.mxu0 0.0
        %1013 = vmatpush1.xpose.msra.mxu0 0.0
        %1014 = vmatprep.subr.mxu0 0.0
        %1015 = vmatpush1.xpose.msra.mxu0 0.0
        %1016 = vmatprep.subr.mxu0 0.0
        %1017 = vmatpush1.xpose.msra.mxu0 0.0
        %1018 = vmatprep.subr.mxu0 0.0
        %1019 = vmatpush1.xpose.msra.mxu0 0.0
        %1020 = vmatprep.subr.mxu0 0.0
        %1021 = vmatpush1.xpose.msra.mxu0 0.0
        %1022 = vmatprep.subr.mxu0 0.0
        %1023 = vmatpush1.xpose.msra.mxu0 0.0
        %1024 = vmatprep.subr.mxu0 0.0
        %1025 = vmatpush1.xpose.msra.mxu0 %v992
        %1026 = vmatprep.subr.mxu0 0.0
        %1027 = vmatpush2.xpose.msra.mxu0 0.0
        %1028 = vmatprep.subr.mxu0 0.0
        %1029 = vmatpush2.xpose.msra.mxu0 0.0
        %1030 = vmatprep.subr.mxu0 0.0
        %1031 = vmatpush2.xpose.msra.mxu0 0.0
        %1032 = vmatprep.subr.mxu0 0.0
        %1033 = vmatpush2.xpose.msra.mxu0 0.0
        %1034 = vmatprep.subr.mxu0 0.0
        %1035 = vmatpush2.xpose.msra.mxu0 0.0
        %1036 = vmatprep.subr.mxu0 0.0
        %1037 = vmatpush2.xpose.msra.mxu0 0.0
        %1038 = vmatprep.subr.mxu0 0.0
        %1039 = vmatpush2.xpose.msra.mxu0 0.0
        %1040 = vmatprep.subr.mxu0 0.0
        %1041 = vmatpush2.xpose.msra.mxu0 0.0
        %1042 = vmatprep.subr.mxu0 0.0
        %1043 = vmatpush2.xpose.msra.mxu0 0.0
        %1044 = vmatprep.subr.mxu0 0.0
        %1045 = vmatpush2.xpose.msra.mxu0 0.0
        %1046 = vmatprep.subr.mxu0 0.0
        %1047 = vmatpush2.xpose.msra.mxu0 0.0
        %1048 = vmatprep.subr.mxu0 0.0
        %1049 = vmatpush2.xpose.msra.mxu0 0.0
        %1050 = vmatprep.subr.mxu0 0.0
        %1051 = vmatpush2.xpose.msra.mxu0 0.0
        %1052 = vmatprep.subr.mxu0 0.0
        %1053 = vmatpush2.xpose.msra.mxu0 0.0
        %1054 = vmatprep.subr.mxu0 0.0
        %1055 = vmatpush2.xpose.msra.mxu0 0.0
        %1056 = vmatprep.subr.mxu0 0.0
        %1057 = vmatpush2.xpose.msra.mxu0 0.0
        %1058 = vmatprep.mubr.f32.mxu0 0.0
        %1059 = vmatmul.mubr.f32.gmra.mxu0 %v990
        %v1060 = vpop.f32.mrf.mxu0
        %v1061 = vadd.f32 0.0, %v1060
        %v1062 = vpop.f32.mrf.mxu0
        %1063 = vdwg.mxu0
        %v1064 = vmul.f32 %v1061, 0.35355338
        %v1065 = vsel %vm823, %v1064, -inf
        %1066 = vmax.xlane.f32.xlu0 %v1065
        %v1067 = vpop.xlane.xlu0 %1066
        %v1068 = vsub.f32 %v1064, %v1067
        %v1069 = vmul.f32 %v1068, 1.442695
        %v1070 = vpow.pop %v1069
        %v1071 = vsel %vm823, %v1070, 0.0
        %1072 = vadd.xlane.f32.xlu0 %v1071
        %v1073 = vpop.xlane.xlu0 %1072
        %v1074 = vrcp.pop %v1073
        %v1075 = vmul.f32 %v1070, %v1074
        %1077 = vrot.lane.b32.xlu0 %v818, 120
        %v1078 = vpop.permute.xlu0 %1077
        %v1081 = vsel %vm823, %v1075, 0
        %1083 = vmatprep.subr.mxu0 0.0
        %1084 = vmatpush1.msra.mxu0 0.0
        %1085 = vmatprep.subr.mxu0 0.0
        %1086 = vmatpush1.msra.mxu0 0.0
        %1087 = vmatprep.subr.mxu0 0.0
        %1088 = vmatpush1.msra.mxu0 0.0
        %1089 = vmatprep.subr.mxu0 0.0
        %1090 = vmatpush1.msra.mxu0 0.0
        %1091 = vmatprep.subr.mxu0 0.0
        %1092 = vmatpush1.msra.mxu0 0.0
        %1093 = vmatprep.subr.mxu0 0.0
        %1094 = vmatpush1.msra.mxu0 0.0
        %1095 = vmatprep.subr.mxu0 0.0
        %1096 = vmatpush1.msra.mxu0 0.0
        %1097 = vmatprep.subr.mxu0 0.0
        %1098 = vmatpush1.msra.mxu0 0.0
        %1099 = vmatprep.subr.mxu0 0.0
        %1100 = vmatpush1.msra.mxu0 0.0
        %1101 = vmatprep.subr.mxu0 0.0
        %1102 = vmatpush1.msra.mxu0 0.0
        %1103 = vmatprep.subr.mxu0 0.0
        %1104 = vmatpush1.msra.mxu0 0.0
        %1105 = vmatprep.subr.mxu0 0.0
        %1106 = vmatpush1.msra.mxu0 0.0
        %1107 = vmatprep.subr.mxu0 0.0
        %1108 = vmatpush1.msra.mxu0 0.0
        %1109 = vmatprep.subr.mxu0 0.0
        %1110 = vmatpush1.msra.mxu0 0.0
        %1111 = vmatprep.subr.mxu0 0.0
        %1112 = vmatpush1.msra.mxu0 0.0
        %1113 = vmatprep.subr.mxu0 0.0
        %1114 = vmatpush1.msra.mxu0 %v1078
        %1115 = vmatprep.subr.mxu0 0.0
        %1116 = vmatpush2.msra.mxu0 0.0
        %1117 = vmatprep.subr.mxu0 0.0
        %1118 = vmatpush2.msra.mxu0 0.0
        %1119 = vmatprep.subr.mxu0 0.0
        %1120 = vmatpush2.msra.mxu0 0.0
        %1121 = vmatprep.subr.mxu0 0.0
        %1122 = vmatpush2.msra.mxu0 0.0
        %1123 = vmatprep.subr.mxu0 0.0
        %1124 = vmatpush2.msra.mxu0 0.0
        %1125 = vmatprep.subr.mxu0 0.0
        %1126 = vmatpush2.msra.mxu0 0.0
        %1127 = vmatprep.subr.mxu0 0.0
        %1128 = vmatpush2.msra.mxu0 0.0
        %1129 = vmatprep.subr.mxu0 0.0
        %1130 = vmatpush2.msra.mxu0 0.0
        %1131 = vmatprep.subr.mxu0 0.0
        %1132 = vmatpush2.msra.mxu0 0.0
        %1133 = vmatprep.subr.mxu0 0.0
        %1134 = vmatpush2.msra.mxu0 0.0
        %1135 = vmatprep.subr.mxu0 0.0
        %1136 = vmatpush2.msra.mxu0 0.0
        %1137 = vmatprep.subr.mxu0 0.0
        %1138 = vmatpush2.msra.mxu0 0.0
        %1139 = vmatprep.subr.mxu0 0.0
        %1140 = vmatpush2.msra.mxu0 0.0
        %1141 = vmatprep.subr.mxu0 0.0
        %1142 = vmatpush2.msra.mxu0 0.0
        %1143 = vmatprep.subr.mxu0 0.0
        %1144 = vmatpush2.msra.mxu0 0.0
        %1145 = vmatprep.subr.mxu0 0.0
        %1146 = vmatpush2.msra.mxu0 0.0
        %1147 = vmatprep.mubr.f32.mxu0 0.0
        %1148 = vmatmul.mubr.f32.gmra.mxu0 %v1081
        %v1149 = vpop.f32.mrf.mxu0
        %v1150 = vadd.f32 0.0, %v1149
        %v1151 = vpop.f32.mrf.mxu0
        %1152 = vdwg.mxu0
        %1154 = vrot.lane.b32.xlu0 %v1150, 8
        %v1155 = vpop.permute.xlu0 %1154
        %vm1157 = vcmask 130112
        %1158 = vst.msk [vmem:[#allocation2] sm:$0xff] %vm1157, %v1155
        %1159 = vrot.lane.b32.xlu0 %v692, 112
        %v1160 = vpop.permute.xlu0 %1159
        %1161 = vrot.lane.b32.xlu0 %v755, 112
        %v1162 = vpop.permute.xlu0 %1161
        %v1163 = vsel %vm823, %v1160, 0
        %v1165 = vsel %vm823, %v1162, 0
        %1167 = vmatprep.subr.mxu0 0.0
        %1168 = vmatpush1.xpose.msra.mxu0 0.0
        %1169 = vmatprep.subr.mxu0 0.0
        %1170 = vmatpush1.xpose.msra.mxu0 0.0
        %1171 = vmatprep.subr.mxu0 0.0
        %1172 = vmatpush1.xpose.msra.mxu0 0.0
        %1173 = vmatprep.subr.mxu0 0.0
        %1174 = vmatpush1.xpose.msra.mxu0 0.0
        %1175 = vmatprep.subr.mxu0 0.0
        %1176 = vmatpush1.xpose.msra.mxu0 0.0
        %1177 = vmatprep.subr.mxu0 0.0
        %1178 = vmatpush1.xpose.msra.mxu0 0.0
        %1179 = vmatprep.subr.mxu0 0.0
        %1180 = vmatpush1.xpose.msra.mxu0 0.0
        %1181 = vmatprep.subr.mxu0 0.0
        %1182 = vmatpush1.xpose.msra.mxu0 0.0
        %1183 = vmatprep.subr.mxu0 0.0
        %1184 = vmatpush1.xpose.msra.mxu0 0.0
        %1185 = vmatprep.subr.mxu0 0.0
        %1186 = vmatpush1.xpose.msra.mxu0 0.0
        %1187 = vmatprep.subr.mxu0 0.0
        %1188 = vmatpush1.xpose.msra.mxu0 0.0
        %1189 = vmatprep.subr.mxu0 0.0
        %1190 = vmatpush1.xpose.msra.mxu0 0.0
        %1191 = vmatprep.subr.mxu0 0.0
        %1192 = vmatpush1.xpose.msra.mxu0 0.0
        %1193 = vmatprep.subr.mxu0 0.0
        %1194 = vmatpush1.xpose.msra.mxu0 0.0
        %1195 = vmatprep.subr.mxu0 0.0
        %1196 = vmatpush1.xpose.msra.mxu0 0.0
        %1197 = vmatprep.subr.mxu0 0.0
        %1198 = vmatpush1.xpose.msra.mxu0 %v1165
        %1199 = vmatprep.subr.mxu0 0.0
        %1200 = vmatpush2.xpose.msra.mxu0 0.0
        %1201 = vmatprep.subr.mxu0 0.0
        %1202 = vmatpush2.xpose.msra.mxu0 0.0
        %1203 = vmatprep.subr.mxu0 0.0
        %1204 = vmatpush2.xpose.msra.mxu0 0.0
        %1205 = vmatprep.subr.mxu0 0.0
        %1206 = vmatpush2.xpose.msra.mxu0 0.0
        %1207 = vmatprep.subr.mxu0 0.0
        %1208 = vmatpush2.xpose.msra.mxu0 0.0
        %1209 = vmatprep.subr.mxu0 0.0
        %1210 = vmatpush2.xpose.msra.mxu0 0.0
        %1211 = vmatprep.subr.mxu0 0.0
        %1212 = vmatpush2.xpose.msra.mxu0 0.0
        %1213 = vmatprep.subr.mxu0 0.0
        %1214 = vmatpush2.xpose.msra.mxu0 0.0
        %1215 = vmatprep.subr.mxu0 0.0
        %1216 = vmatpush2.xpose.msra.mxu0 0.0
        %1217 = vmatprep.subr.mxu0 0.0
        %1218 = vmatpush2.xpose.msra.mxu0 0.0
        %1219 = vmatprep.subr.mxu0 0.0
        %1220 = vmatpush2.xpose.msra.mxu0 0.0
        %1221 = vmatprep.subr.mxu0 0.0
        %1222 = vmatpush2.xpose.msra.mxu0 0.0
        %1223 = vmatprep.subr.mxu0 0.0
        %1224 = vmatpush2.xpose.msra.mxu0 0.0
        %1225 = vmatprep.subr.mxu0 0.0
        %1226 = vmatpush2.xpose.msra.mxu0 0.0
        %1227 = vmatprep.subr.mxu0 0.0
        %1228 = vmatpush2.xpose.msra.mxu0 0.0
        %1229 = vmatprep.subr.mxu0 0.0
        %1230 = vmatpush2.xpose.msra.mxu0 0.0
        %1231 = vmatprep.mubr.f32.mxu0 0.0
        %1232 = vmatmul.mubr.f32.gmra.mxu0 %v1163
        %v1233 = vpop.f32.mrf.mxu0
        %v1234 = vadd.f32 0.0, %v1233
        %v1235 = vpop.f32.mrf.mxu0
        %1236 = vdwg.mxu0
        %v1237 = vmul.f32 %v1234, 0.35355338
        %v1238 = vsel %vm823, %v1237, -inf
        %1239 = vmax.xlane.f32.xlu0 %v1238
        %v1240 = vpop.xlane.xlu0 %1239
        %v1241 = vsub.f32 %v1237, %v1240
        %v1242 = vmul.f32 %v1241, 1.442695
        %v1243 = vpow.pop %v1242
        %v1244 = vsel %vm823, %v1243, 0.0
        %1245 = vadd.xlane.f32.xlu0 %v1244
        %v1246 = vpop.xlane.xlu0 %1245
        %v1247 = vrcp.pop %v1246
        %v1248 = vmul.f32 %v1243, %v1247
        %1249 = vrot.lane.b32.xlu0 %v818, 112
        %v1250 = vpop.permute.xlu0 %1249
        %v1253 = vsel %vm823, %v1248, 0
        %1255 = vmatprep.subr.mxu0 0.0
        %1256 = vmatpush1.msra.mxu0 0.0
        %1257 = vmatprep.subr.mxu0 0.0
        %1258 = vmatpush1.msra.mxu0 0.0
        %1259 = vmatprep.subr.mxu0 0.0
        %1260 = vmatpush1.msra.mxu0 0.0
        %1261 = vmatprep.subr.mxu0 0.0
        %1262 = vmatpush1.msra.mxu0 0.0
        %1263 = vmatprep.subr.mxu0 0.0
        %1264 = vmatpush1.msra.mxu0 0.0
        %1265 = vmatprep.subr.mxu0 0.0
        %1266 = vmatpush1.msra.mxu0 0.0
        %1267 = vmatprep.subr.mxu0 0.0
        %1268 = vmatpush1.msra.mxu0 0.0
        %1269 = vmatprep.subr.mxu0 0.0
        %1270 = vmatpush1.msra.mxu0 0.0
        %1271 = vmatprep.subr.mxu0 0.0
        %1272 = vmatpush1.msra.mxu0 0.0
        %1273 = vmatprep.subr.mxu0 0.0
        %1274 = vmatpush1.msra.mxu0 0.0
        %1275 = vmatprep.subr.mxu0 0.0
        %1276 = vmatpush1.msra.mxu0 0.0
        %1277 = vmatprep.subr.mxu0 0.0
        %1278 = vmatpush1.msra.mxu0 0.0
        %1279 = vmatprep.subr.mxu0 0.0
        %1280 = vmatpush1.msra.mxu0 0.0
        %1281 = vmatprep.subr.mxu0 0.0
        %1282 = vmatpush1.msra.mxu0 0.0
        %1283 = vmatprep.subr.mxu0 0.0
        %1284 = vmatpush1.msra.mxu0 0.0
        %1285 = vmatprep.subr.mxu0 0.0
        %1286 = vmatpush1.msra.mxu0 %v1250
        %1287 = vmatprep.subr.mxu0 0.0
        %1288 = vmatpush2.msra.mxu0 0.0
        %1289 = vmatprep.subr.mxu0 0.0
        %1290 = vmatpush2.msra.mxu0 0.0
        %1291 = vmatprep.subr.mxu0 0.0
        %1292 = vmatpush2.msra.mxu0 0.0
        %1293 = vmatprep.subr.mxu0 0.0
        %1294 = vmatpush2.msra.mxu0 0.0
        %1295 = vmatprep.subr.mxu0 0.0
        %1296 = vmatpush2.msra.mxu0 0.0
        %1297 = vmatprep.subr.mxu0 0.0
        %1298 = vmatpush2.msra.mxu0 0.0
        %1299 = vmatprep.subr.mxu0 0.0
        %1300 = vmatpush2.msra.mxu0 0.0
        %1301 = vmatprep.subr.mxu0 0.0
        %1302 = vmatpush2.msra.mxu0 0.0
        %1303 = vmatprep.subr.mxu0 0.0
        %1304 = vmatpush2.msra.mxu0 0.0
        %1305 = vmatprep.subr.mxu0 0.0
        %1306 = vmatpush2.msra.mxu0 0.0
        %1307 = vmatprep.subr.mxu0 0.0
        %1308 = vmatpush2.msra.mxu0 0.0
        %1309 = vmatprep.subr.mxu0 0.0
        %1310 = vmatpush2.msra.mxu0 0.0
        %1311 = vmatprep.subr.mxu0 0.0
        %1312 = vmatpush2.msra.mxu0 0.0
        %1313 = vmatprep.subr.mxu0 0.0
        %1314 = vmatpush2.msra.mxu0 0.0
        %1315 = vmatprep.subr.mxu0 0.0
        %1316 = vmatpush2.msra.mxu0 0.0
        %1317 = vmatprep.subr.mxu0 0.0
        %1318 = vmatpush2.msra.mxu0 0.0
        %1319 = vmatprep.mubr.f32.mxu0 0.0
        %1320 = vmatmul.mubr.f32.gmra.mxu0 %v1253
        %v1321 = vpop.f32.mrf.mxu0
        %v1322 = vadd.f32 0.0, %v1321
        %v1323 = vpop.f32.mrf.mxu0
        %1324 = vdwg.mxu0
        %1326 = vrot.lane.b32.xlu0 %v1322, 16
        %v1327 = vpop.permute.xlu0 %1326
        %vm1329 = vcmask 195712
        %1330 = vst.msk [vmem:[#allocation2] sm:$0xff] %vm1329, %v1327
        %1331 = vrot.lane.b32.xlu0 %v692, 104
        %v1332 = vpop.permute.xlu0 %1331
        %1333 = vrot.lane.b32.xlu0 %v755, 104
        %v1334 = vpop.permute.xlu0 %1333
        %v1335 = vsel %vm823, %v1332, 0
        %v1337 = vsel %vm823, %v1334, 0
        %1339 = vmatprep.subr.mxu0 0.0
        %1340 = vmatpush1.xpose.msra.mxu0 0.0
        %1341 = vmatprep.subr.mxu0 0.0
        %1342 = vmatpush1.xpose.msra.mxu0 0.0
        %1343 = vmatprep.subr.mxu0 0.0
        %1344 = vmatpush1.xpose.msra.mxu0 0.0
        %1345 = vmatprep.subr.mxu0 0.0
        %1346 = vmatpush1.xpose.msra.mxu0 0.0
        %1347 = vmatprep.subr.mxu0 0.0
        %1348 = vmatpush1.xpose.msra.mxu0 0.0
        %1349 = vmatprep.subr.mxu0 0.0
        %1350 = vmatpush1.xpose.msra.mxu0 0.0
        %1351 = vmatprep.subr.mxu0 0.0
        %1352 = vmatpush1.xpose.msra.mxu0 0.0
        %1353 = vmatprep.subr.mxu0 0.0
        %1354 = vmatpush1.xpose.msra.mxu0 0.0
        %1355 = vmatprep.subr.mxu0 0.0
        %1356 = vmatpush1.xpose.msra.mxu0 0.0
        %1357 = vmatprep.subr.mxu0 0.0
        %1358 = vmatpush1.xpose.msra.mxu0 0.0
        %1359 = vmatprep.subr.mxu0 0.0
        %1360 = vmatpush1.xpose.msra.mxu0 0.0
        %1361 = vmatprep.subr.mxu0 0.0
        %1362 = vmatpush1.xpose.msra.mxu0 0.0
        %1363 = vmatprep.subr.mxu0 0.0
        %1364 = vmatpush1.xpose.msra.mxu0 0.0
        %1365 = vmatprep.subr.mxu0 0.0
        %1366 = vmatpush1.xpose.msra.mxu0 0.0
        %1367 = vmatprep.subr.mxu0 0.0
        %1368 = vmatpush1.xpose.msra.mxu0 0.0
        %1369 = vmatprep.subr.mxu0 0.0
        %1370 = vmatpush1.xpose.msra.mxu0 %v1337
        %1371 = vmatprep.subr.mxu0 0.0
        %1372 = vmatpush2.xpose.msra.mxu0 0.0
        %1373 = vmatprep.subr.mxu0 0.0
        %1374 = vmatpush2.xpose.msra.mxu0 0.0
        %1375 = vmatprep.subr.mxu0 0.0
        %1376 = vmatpush2.xpose.msra.mxu0 0.0
        %1377 = vmatprep.subr.mxu0 0.0
        %1378 = vmatpush2.xpose.msra.mxu0 0.0
        %1379 = vmatprep.subr.mxu0 0.0
        %1380 = vmatpush2.xpose.msra.mxu0 0.0
        %1381 = vmatprep.subr.mxu0 0.0
        %1382 = vmatpush2.xpose.msra.mxu0 0.0
        %1383 = vmatprep.subr.mxu0 0.0
        %1384 = vmatpush2.xpose.msra.mxu0 0.0
        %1385 = vmatprep.subr.mxu0 0.0
        %1386 = vmatpush2.xpose.msra.mxu0 0.0
        %1387 = vmatprep.subr.mxu0 0.0
        %1388 = vmatpush2.xpose.msra.mxu0 0.0
        %1389 = vmatprep.subr.mxu0 0.0
        %1390 = vmatpush2.xpose.msra.mxu0 0.0
        %1391 = vmatprep.subr.mxu0 0.0
        %1392 = vmatpush2.xpose.msra.mxu0 0.0
        %1393 = vmatprep.subr.mxu0 0.0
        %1394 = vmatpush2.xpose.msra.mxu0 0.0
        %1395 = vmatprep.subr.mxu0 0.0
        %1396 = vmatpush2.xpose.msra.mxu0 0.0
        %1397 = vmatprep.subr.mxu0 0.0
        %1398 = vmatpush2.xpose.msra.mxu0 0.0
        %1399 = vmatprep.subr.mxu0 0.0
        %1400 = vmatpush2.xpose.msra.mxu0 0.0
        %1401 = vmatprep.subr.mxu0 0.0
        %1402 = vmatpush2.xpose.msra.mxu0 0.0
        %1403 = vmatprep.mubr.f32.mxu0 0.0
        %1404 = vmatmul.mubr.f32.gmra.mxu0 %v1335
        %v1405 = vpop.f32.mrf.mxu0
        %v1406 = vadd.f32 0.0, %v1405
        %v1407 = vpop.f32.mrf.mxu0
        %1408 = vdwg.mxu0
        %v1409 = vmul.f32 %v1406, 0.35355338
        %v1410 = vsel %vm823, %v1409, -inf
        %1411 = vmax.xlane.f32.xlu0 %v1410
        %v1412 = vpop.xlane.xlu0 %1411
        %v1413 = vsub.f32 %v1409, %v1412
        %v1414 = vmul.f32 %v1413, 1.442695
        %v1415 = vpow.pop %v1414
        %v1416 = vsel %vm823, %v1415, 0.0
        %1417 = vadd.xlane.f32.xlu0 %v1416
        %v1418 = vpop.xlane.xlu0 %1417
        %v1419 = vrcp.pop %v1418
        %v1420 = vmul.f32 %v1415, %v1419
        %1421 = vrot.lane.b32.xlu0 %v818, 104
        %v1422 = vpop.permute.xlu0 %1421
        %v1425 = vsel %vm823, %v1420, 0
        %1427 = vmatprep.subr.mxu0 0.0
        %1428 = vmatpush1.msra.mxu0 0.0
        %1429 = vmatprep.subr.mxu0 0.0
        %1430 = vmatpush1.msra.mxu0 0.0
        %1431 = vmatprep.subr.mxu0 0.0
        %1432 = vmatpush1.msra.mxu0 0.0
        %1433 = vmatprep.subr.mxu0 0.0
        %1434 = vmatpush1.msra.mxu0 0.0
        %1435 = vmatprep.subr.mxu0 0.0
        %1436 = vmatpush1.msra.mxu0 0.0
        %1437 = vmatprep.subr.mxu0 0.0
        %1438 = vmatpush1.msra.mxu0 0.0
        %1439 = vmatprep.subr.mxu0 0.0
        %1440 = vmatpush1.msra.mxu0 0.0
        %1441 = vmatprep.subr.mxu0 0.0
        %1442 = vmatpush1.msra.mxu0 0.0
        %1443 = vmatprep.subr.mxu0 0.0
        %1444 = vmatpush1.msra.mxu0 0.0
        %1445 = vmatprep.subr.mxu0 0.0
        %1446 = vmatpush1.msra.mxu0 0.0
        %1447 = vmatprep.subr.mxu0 0.0
        %1448 = vmatpush1.msra.mxu0 0.0
        %1449 = vmatprep.subr.mxu0 0.0
        %1450 = vmatpush1.msra.mxu0 0.0
        %1451 = vmatprep.subr.mxu0 0.0
        %1452 = vmatpush1.msra.mxu0 0.0
        %1453 = vmatprep.subr.mxu0 0.0
        %1454 = vmatpush1.msra.mxu0 0.0
        %1455 = vmatprep.subr.mxu0 0.0
        %1456 = vmatpush1.msra.mxu0 0.0
        %1457 = vmatprep.subr.mxu0 0.0
        %1458 = vmatpush1.msra.mxu0 %v1422
        %1459 = vmatprep.subr.mxu0 0.0
        %1460 = vmatpush2.msra.mxu0 0.0
        %1461 = vmatprep.subr.mxu0 0.0
        %1462 = vmatpush2.msra.mxu0 0.0
        %1463 = vmatprep.subr.mxu0 0.0
        %1464 = vmatpush2.msra.mxu0 0.0
        %1465 = vmatprep.subr.mxu0 0.0
        %1466 = vmatpush2.msra.mxu0 0.0
        %1467 = vmatprep.subr.mxu0 0.0
        %1468 = vmatpush2.msra.mxu0 0.0
        %1469 = vmatprep.subr.mxu0 0.0
        %1470 = vmatpush2.msra.mxu0 0.0
        %1471 = vmatprep.subr.mxu0 0.0
        %1472 = vmatpush2.msra.mxu0 0.0
        %1473 = vmatprep.subr.mxu0 0.0
        %1474 = vmatpush2.msra.mxu0 0.0
        %1475 = vmatprep.subr.mxu0 0.0
        %1476 = vmatpush2.msra.mxu0 0.0
        %1477 = vmatprep.subr.mxu0 0.0
        %1478 = vmatpush2.msra.mxu0 0.0
        %1479 = vmatprep.subr.mxu0 0.0
        %1480 = vmatpush2.msra.mxu0 0.0
        %1481 = vmatprep.subr.mxu0 0.0
        %1482 = vmatpush2.msra.mxu0 0.0
        %1483 = vmatprep.subr.mxu0 0.0
        %1484 = vmatpush2.msra.mxu0 0.0
        %1485 = vmatprep.subr.mxu0 0.0
        %1486 = vmatpush2.msra.mxu0 0.0
        %1487 = vmatprep.subr.mxu0 0.0
        %1488 = vmatpush2.msra.mxu0 0.0
        %1489 = vmatprep.subr.mxu0 0.0
        %1490 = vmatpush2.msra.mxu0 0.0
        %1491 = vmatprep.mubr.f32.mxu0 0.0
        %1492 = vmatmul.mubr.f32.gmra.mxu0 %v1425
        %v1493 = vpop.f32.mrf.mxu0
        %v1494 = vadd.f32 0.0, %v1493
        %v1495 = vpop.f32.mrf.mxu0
        %1496 = vdwg.mxu0
        %1498 = vrot.lane.b32.xlu0 %v1494, 24
        %v1499 = vpop.permute.xlu0 %1498
        %vm1501 = vcmask 261312
        %1502 = vst.msk [vmem:[#allocation2] sm:$0xff] %vm1501, %v1499
        %v1503 = vld [vmem:[#allocation2] sm:$0xff]
        %v1504 = vpack.c.bf16 %v1503, %v1503
        %v1505 = vld [vmem:[%s9] sm:$0xf]
        %v1506 = vld [vmem:[%s9 + $0x4] sm:$0xf]
        %v1507 = vld [vmem:[%s9 + $0x8] sm:$0xf]
        %v1508 = vld [vmem:[%s9 + $0xc] sm:$0xf]
        %v1509 = vld [vmem:[%s10] sm:$0x1]
        %v1511 = vlaneseq
        %v1512 = vshrl.u32 %v1511, 7
        %v1513 = vsub.s32 0, %v1512
        %v1514 = vrot.slane %v1509, %v1513
        %v1520 = vunpack.c.l.b16 %v1505
        %v1521 = vunpack.c.l.b16 %v1506
        %v1522 = vunpack.c.l.b16 %v1507
        %v1523 = vunpack.c.l.b16 %v1508
        %v1524 = vpack.c.b16 %v1521, %v1520
        %v1525 = vpack.c.b16 %v1523, %v1522
        %v1529 = vsel %vm599, %v1504, 0
        %1531 = vmatprep.subr.bf16.mxu0 0
        %1532 = vmatpush1.bf16.msra.mxu0 0
        %1533 = vmatprep.subr.bf16.mxu0 0
        %1534 = vmatpush1.bf16.msra.mxu0 0
        %1535 = vmatprep.subr.bf16.mxu0 0
        %1536 = vmatpush1.bf16.msra.mxu0 0
        %1537 = vmatprep.subr.bf16.mxu0 0
        %1538 = vmatpush1.bf16.msra.mxu0 0
        %1539 = vmatprep.subr.bf16.mxu0 0
        %1540 = vmatpush1.bf16.msra.mxu0 0
        %1541 = vmatprep.subr.bf16.mxu0 0
        %1542 = vmatpush1.bf16.msra.mxu0 0
        %1543 = vmatprep.subr.bf16.mxu0 0
        %1544 = vmatpush1.bf16.msra.mxu0 %v1525
        %1545 = vmatprep.subr.bf16.mxu0 0
        %1546 = vmatpush1.bf16.msra.mxu0 %v1524
        %1547 = vmatprep.subr.bf16.mxu0 0
        %1548 = vmatpush2.bf16.msra.mxu0 0
        %1549 = vmatprep.subr.bf16.mxu0 0
        %1550 = vmatpush2.bf16.msra.mxu0 0
        %1551 = vmatprep.subr.bf16.mxu0 0
        %1552 = vmatpush2.bf16.msra.mxu0 0
        %1553 = vmatprep.subr.bf16.mxu0 0
        %1554 = vmatpush2.bf16.msra.mxu0 0
        %1555 = vmatprep.subr.bf16.mxu0 0
        %1556 = vmatpush2.bf16.msra.mxu0 0
        %1557 = vmatprep.subr.bf16.mxu0 0
        %1558 = vmatpush2.bf16.msra.mxu0 0
        %1559 = vmatprep.subr.bf16.mxu0 0
        %1560 = vmatpush2.bf16.msra.mxu0 0
        %1561 = vmatprep.subr.bf16.mxu0 0
        %1562 = vmatpush2.bf16.msra.mxu0 0
        %1563 = vmatprep.mubr.bf16.mxu0 0
        %1564 = vmatmul.mubr.bf16.gmra.mxu0 %v1529
        %v1565 = vpop.f32.mrf.mxu0
        %v1566 = vadd.f32 %v1514, %v1565
        %v1567 = vpop.f32.mrf.mxu0
        %v1568 = vpop.f32.mrf.mxu0
        %v1569 = vpop.f32.mrf.mxu0
        %1570 = vdwg.mxu0
        %v1571 = vadd.f32 %v598, %v1566
        %v1572 = vsel %vm599, %v1571, 0.0
        %1573 = vadd.xlane.f32.xlu0 %v1572
        %v1574 = vpop.xlane.xlu0 %1573
        %v1575 = vmul.f32 %v1574, %v603
        %v1576 = vsub.f32 %v1571, %v1575
        %v1577 = vmul.f32 %v1576, %v1576
        %v1578 = vsel %vm599, %v1577, 0.0
        %1579 = vadd.xlane.f32.xlu0 %v1578
        %v1580 = vpop.xlane.xlu0 %1579
        %v1581 = vmul.f32 %v1580, %v603
        %v1582 = vadd.f32 %v1581, 1e-05
        %v1583 = vrsqrt.pop %v1582
        %v1584 = vmul.f32 %v1576, %v1583
        %v1585 = vld [vmem:[%s11] sm:$0x1]
        %v1587 = vlaneseq
        %v1588 = vshrl.u32 %v1587, 7
        %v1589 = vsub.s32 0, %v1588
        %v1590 = vrot.slane %v1585, %v1589
        %v1592 = vmul.f32 %v1584, %v1590
        %v1593 = vld [vmem:[%s12] sm:$0x1]
        %v1595 = vlaneseq
        %v1596 = vshrl.u32 %v1595, 7
        %v1597 = vsub.s32 0, %v1596
        %v1598 = vrot.slane %v1593, %v1597
        %v1600 = vadd.f32 %v1592, %v1598
        %v1601 = vpack.c.bf16 %v1600, %v1600
        %v1602 = vld [vmem:[%s13] sm:$0xf]
        %v1603 = vld [vmem:[%s13 + $0x4] sm:$0xf]
        %v1604 = vld [vmem:[%s13 + $0x8] sm:$0xf]
        %v1605 = vld [vmem:[%s13 + $0xc] sm:$0xf]
        %v1606 = vld [vmem:[%s14] sm:$0x1]
        %v1608 = vlaneseq
        %v1609 = vshrl.u32 %v1608, 7
        %v1610 = vsub.s32 0, %v1609
        %v1611 = vrot.slane %v1606, %v1610
        %v1617 = vunpack.c.l.b16 %v1602
        %v1618 = vunpack.c.l.b16 %v1603
        %v1619 = vunpack.c.l.b16 %v1604
        %v1620 = vunpack.c.l.b16 %v1605
        %v1621 = vpack.c.b16 %v1618, %v1617
        %v1622 = vpack.c.b16 %v1620, %v1619
        %v1626 = vsel %vm599, %v1601, 0
        %1628 = vmatprep.subr.bf16.mxu0 0
        %1629 = vmatpush1.bf16.msra.mxu0 0
        %1630 = vmatprep.subr.bf16.mxu0 0
        %1631 = vmatpush1.bf16.msra.mxu0 0
        %1632 = vmatprep.subr.bf16.mxu0 0
        %1633 = vmatpush1.bf16.msra.mxu0 0
        %1634 = vmatprep.subr.bf16.mxu0 0
        %1635 = vmatpush1.bf16.msra.mxu0 0
        %1636 = vmatprep.subr.bf16.mxu0 0
        %1637 = vmatpush1.bf16.msra.mxu0 0
        %1638 = vmatprep.subr.bf16.mxu0 0
        %1639 = vmatpush1.bf16.msra.mxu0 0
        %1640 = vmatprep.subr.bf16.mxu0 0
        %1641 = vmatpush1.bf16.msra.mxu0 %v1622
        %1642 = vmatprep.subr.bf16.mxu0 0
        %1643 = vmatpush1.bf16.msra.mxu0 %v1621
        %1644 = vmatprep.subr.bf16.mxu0 0
        %1645 = vmatpush2.bf16.msra.mxu0 0
        %1646 = vmatprep.subr.bf16.mxu0 0
        %1647 = vmatpush2.bf16.msra.mxu0 0
        %1648 = vmatprep.subr.bf16.mxu0 0
        %1649 = vmatpush2.bf16.msra.mxu0 0
        %1650 = vmatprep.subr.bf16.mxu0 0
        %1651 = vmatpush2.bf16.msra.mxu0 0
        %1652 = vmatprep.subr.bf16.mxu0 0
        %1653 = vmatpush2.bf16.msra.mxu0 0
        %1654 = vmatprep.subr.bf16.mxu0 0
        %1655 = vmatpush2.bf16.msra.mxu0 0
        %1656 = vmatprep.subr.bf16.mxu0 0
        %1657 = vmatpush2.bf16.msra.mxu0 0
        %1658 = vmatprep.subr.bf16.mxu0 0
        %1659 = vmatpush2.bf16.msra.mxu0 0
        %1660 = vmatprep.mubr.bf16.mxu0 0
        %1661 = vmatmul.mubr.bf16.gmra.mxu0 %v1626
        %v1662 = vpop.f32.mrf.mxu0
        %v1663 = vadd.f32 %v1611, %v1662
        %v1664 = vpop.f32.mrf.mxu0
        %v1665 = vpop.f32.mrf.mxu0
        %v1666 = vpop.f32.mrf.mxu0
        %1667 = vdwg.mxu0
        %v1668 = vmul.f32 %v1663, %v1663
        %v1669 = vmul.f32 %v1663, %v1668
        %v1670 = vmul.f32 %v1669, 0.044715
        %v1671 = vadd.f32 %v1663, %v1670
        %v1672 = vmul.f32 %v1671, 0.7978846
        %v1673 = vtanh.pop %v1672
        %v1674 = vadd.f32 %v1673, 1.0
        %v1675 = vmul.f32 %v1674, 0.5
        %v1676 = vmul.f32 %v1663, %v1675
        %v1677 = vpack.c.bf16 %v1676, %v1676
        %v1678 = vld [vmem:[%s15] sm:$0xf]
        %v1679 = vld [vmem:[%s15 + $0x4] sm:$0xf]
        %v1680 = vld [vmem:[%s15 + $0x8] sm:$0xf]
        %v1681 = vld [vmem:[%s15 + $0xc] sm:$0xf]
        %v1682 = vld [vmem:[%s15 + $0x10] sm:$0xf]
        %v1683 = vld [vmem:[%s15 + $0x14] sm:$0xf]
        %v1684 = vld [vmem:[%s15 + $0x18] sm:$0xf]
        %v1685 = vld [vmem:[%s15 + $0x1c] sm:$0xf]
        %v1686 = vld [vmem:[%s15 + $0x20] sm:$0xf]
        %v1687 = vld [vmem:[%s15 + $0x24] sm:$0xf]
        %v1688 = vld [vmem:[%s15 + $0x28] sm:$0xf]
        %v1689 = vld [vmem:[%s15 + $0x2c] sm:$0xf]
        %v1690 = vld [vmem:[%s15 + $0x30] sm:$0xf]
        %v1691 = vld [vmem:[%s15 + $0x34] sm:$0xf]
        %v1692 = vld [vmem:[%s15 + $0x38] sm:$0xf]
        %v1693 = vld [vmem:[%s15 + $0x3c] sm:$0xf]
        %v1694 = vld [vmem:[%s16] sm:$0x1]
        %v1696 = vlaneseq
        %v1697 = vshrl.u32 %v1696, 7
        %v1698 = vsub.s32 0, %v1697
        %v1699 = vrot.slane %v1694, %v1698
        %v1717 = vunpack.c.l.b16 %v1678
        %v1718 = vunpack.c.l.b16 %v1679
        %v1719 = vunpack.c.l.b16 %v1680
        %v1720 = vunpack.c.l.b16 %v1681
        %v1721 = vunpack.c.l.b16 %v1682
        %v1722 = vunpack.c.l.b16 %v1683
        %v1723 = vunpack.c.l.b16 %v1684
        %v1724 = vunpack.c.l.b16 %v1685
        %v1725 = vunpack.c.l.b16 %v1686
        %v1726 = vunpack.c.l.b16 %v1687
        %v1727 = vunpack.c.l.b16 %v1688
        %v1728 = vunpack.c.l.b16 %v1689
        %v1729 = vunpack.c.l.b16 %v1690
        %v1730 = vunpack.c.l.b16 %v1691
        %v1731 = vunpack.c.l.b16 %v1692
        %v1732 = vunpack.c.l.b16 %v1693
        %v1733 = vpack.c.b16 %v1718, %v1717
        %v1734 = vpack.c.b16 %v1720, %v1719
        %v1735 = vpack.c.b16 %v1722, %v1721
        %v1736 = vpack.c.b16 %v1724, %v1723
        %v1737 = vpack.c.b16 %v1726, %v1725
        %v1738 = vpack.c.b16 %v1728, %v1727
        %v1739 = vpack.c.b16 %v1730, %v1729
        %v1740 = vpack.c.b16 %v1732, %v1731
        %1749 = vmatprep.subr.bf16.mxu0 0
        %1750 = vmatpush1.bf16.msra.mxu0 %v1740
        %1751 = vmatprep.subr.bf16.mxu0 0
        %1752 = vmatpush1.bf16.msra.mxu0 %v1739
        %1753 = vmatprep.subr.bf16.mxu0 0
        %1754 = vmatpush1.bf16.msra.mxu0 %v1738
        %1755 = vmatprep.subr.bf16.mxu0 0
        %1756 = vmatpush1.bf16.msra.mxu0 %v1737
        %1757 = vmatprep.subr.bf16.mxu0 0
        %1758 = vmatpush1.bf16.msra.mxu0 %v1736
        %1759 = vmatprep.subr.bf16.mxu0 0
        %1760 = vmatpush1.bf16.msra.mxu0 %v1735
        %1761 = vmatprep.subr.bf16.mxu0 0
        %1762 = vmatpush1.bf16.msra.mxu0 %v1734
        %1763 = vmatprep.subr.bf16.mxu0 0
        %1764 = vmatpush1.bf16.msra.mxu0 %v1733
        %1765 = vmatprep.subr.bf16.mxu0 0
        %1766 = vmatpush2.bf16.msra.mxu0 0
        %1767 = vmatprep.subr.bf16.mxu0 0
        %1768 = vmatpush2.bf16.msra.mxu0 0
        %1769 = vmatprep.subr.bf16.mxu0 0
        %1770 = vmatpush2.bf16.msra.mxu0 0
        %1771 = vmatprep.subr.bf16.mxu0 0
        %1772 = vmatpush2.bf16.msra.mxu0 0
        %1773 = vmatprep.subr.bf16.mxu0 0
        %1774 = vmatpush2.bf16.msra.mxu0 0
        %1775 = vmatprep.subr.bf16.mxu0 0
        %1776 = vmatpush2.bf16.msra.mxu0 0
        %1777 = vmatprep.subr.bf16.mxu0 0
        %1778 = vmatpush2.bf16.msra.mxu0 0
        %1779 = vmatprep.subr.bf16.mxu0 0
        %1780 = vmatpush2.bf16.msra.mxu0 0
        %1781 = vmatprep.mubr.bf16.mxu0 0
        %1782 = vmatmul.mubr.bf16.gmra.mxu0 %v1677
        %v1783 = vpop.f32.mrf.mxu0
        %v1784 = vadd.f32 %v1699, %v1783
        %v1785 = vpop.f32.mrf.mxu0
        %v1786 = vpop.f32.mrf.mxu0
        %v1787 = vpop.f32.mrf.mxu0
        %1788 = vdwg.mxu0
        %v1789 = vadd.f32 %v1571, %v1784
        %v1790 = vsel %vm599, %v1789, 0.0
        %v1791 = vrot.slane %v1790, 4
        %v1792 = vadd.f32 %v1790, %v1791
        %v1793 = vrot.slane %v1792, 2
        %v1794 = vadd.f32 %v1792, %v1793
        %v1795 = vrot.slane %v1794, 1
        %v1796 = vadd.f32 %v1794, %v1795
        %v1797 = vrcp.pop 8.0
        %v1798 = vmul.f32 %v1796, %v1797
        %v1799 = vpack.c.bf16 %v1798, %v1798
        %v1800 = vld [vmem:[%s17] sm:$0xf]
        %v1801 = vld [vmem:[%s17 + $0x4] sm:$0xf]
        %v1802 = vld [vmem:[%s17 + $0x8] sm:$0xf]
        %v1803 = vld [vmem:[%s17 + $0xc] sm:$0xf]
        %v1804 = vld [vmem:[%s18] sm:$0x1]
        %v1809 = vunpack.c.l.b16 %v1800
        %v1810 = vunpack.c.l.b16 %v1801
        %v1811 = vunpack.c.l.b16 %v1802
        %v1812 = vunpack.c.l.b16 %v1803
        %v1813 = vpack.c.b16 %v1810, %v1809
        %v1814 = vpack.c.b16 %v1812, %v1811
        %v1818 = vsel %vm599, %v1799, 0
        %1820 = vmatprep.subr.bf16.mxu0 0
        %1821 = vmatpush1.bf16.msra.mxu0 0
        %1822 = vmatprep.subr.bf16.mxu0 0
        %1823 = vmatpush1.bf16.msra.mxu0 0
        %1824 = vmatprep.subr.bf16.mxu0 0
        %1825 = vmatpush1.bf16.msra.mxu0 0
        %1826 = vmatprep.subr.bf16.mxu0 0
        %1827 = vmatpush1.bf16.msra.mxu0 0
        %1828 = vmatprep.subr.bf16.mxu0 0
        %1829 = vmatpush1.bf16.msra.mxu0 0
        %1830 = vmatprep.subr.bf16.mxu0 0
        %1831 = vmatpush1.bf16.msra.mxu0 0
        %1832 = vmatprep.subr.bf16.mxu0 0
        %1833 = vmatpush1.bf16.msra.mxu0 %v1814
        %1834 = vmatprep.subr.bf16.mxu0 0
        %1835 = vmatpush1.bf16.msra.mxu0 %v1813
        %1836 = vmatprep.subr.bf16.mxu0 0
        %1837 = vmatpush2.bf16.msra.mxu0 0
        %1838 = vmatprep.subr.bf16.mxu0 0
        %1839 = vmatpush2.bf16.msra.mxu0 0
        %1840 = vmatprep.subr.bf16.mxu0 0
        %1841 = vmatpush2.bf16.msra.mxu0 0
        %1842 = vmatprep.subr.bf16.mxu0 0
        %1843 = vmatpush2.bf16.msra.mxu0 0
        %1844 = vmatprep.subr.bf16.mxu0 0
        %1845 = vmatpush2.bf16.msra.mxu0 0
        %1846 = vmatprep.subr.bf16.mxu0 0
        %1847 = vmatpush2.bf16.msra.mxu0 0
        %1848 = vmatprep.subr.bf16.mxu0 0
        %1849 = vmatpush2.bf16.msra.mxu0 0
        %1850 = vmatprep.subr.bf16.mxu0 0
        %1851 = vmatpush2.bf16.msra.mxu0 0
        %1852 = vmatprep.mubr.bf16.mxu0 0
        %1853 = vmatmul.mubr.bf16.gmra.mxu0 %v1818
        %v1854 = vpop.f32.mrf.mxu0
        %v1855 = vadd.f32 %v1804, %v1854
        %v1856 = vpop.f32.mrf.mxu0
        %v1857 = vpop.f32.mrf.mxu0
        %v1858 = vpop.f32.mrf.mxu0
        %1859 = vdwg.mxu0
        %vm1860 = vcmask 73728
        %1861 = vst.msk [vmem:[%s592] sm:$0x1] %vm1860, %v1855
        %s1862 = sand.u32 %s445, 1
        %s1863 = scalar_lea.sflag [#allocation4], %s1862
        %s1864 = sand.u32 %s445, 1
        %s1865 = scalar_lea.vmem [#allocation3], %s1864
        // Predicated region
        $region97: #{cnn_transformer_forward.3} parent=95 // pred_check
          %p1866 = pneg %p455
        $region98: #{cnn_transformer_forward.3} parent=95 // pred_check_branch
          %1868 = sbr.rel (%p1866) target = $region100
        $region99: #{cnn_transformer_forward.3} parent=95 // pred_region
          %s1870 = ssub.s32 16, 16
          %1871 = vsyncadd %s1863, %s1870
          %s1872 = smul.addr %s33, 16
          %s1873 = scalar_lea.hbm %s19, %s1872
          %s1875 = sshll.u32 %s1865, 4
          %s1876 = int_to_ptr.vmem [resolvable:$true] %s1875
          %1878 = dma.vmem_to_hbm [thread:$0]  %s1876, 16, %s1873, %s1863
        $region100: #{cnn_transformer_forward.3} parent=95 // pred_fallthru
          _
      $region96: #{cnn_transformer_forward.3} parent=5 // pred_fallthru
        _
      %p1879 = scmp.le.s32.totalorder 2, %s28
      // Predicated region
      $region101: #{cnn_transformer_forward.3} parent=5 // pred_check
        %p1880 = pneg %p1879
      $region102: #{cnn_transformer_forward.3} parent=5 // pred_check_branch
        %1882 = sbr.rel (%p1880) target = $region104
      $region103: #{cnn_transformer_forward.3} parent=5 // pred_region
        %s1883 = ssub.s32 %s28, 2
        // Predicated region
        $region105: #{cnn_transformer_forward.3} parent=103 // pred_check
          %p1884 = pneg %p461
        $region106: #{cnn_transformer_forward.3} parent=103 // pred_check_branch
          %1886 = sbr.rel (%p1884) target = $region108
        $region107: #{cnn_transformer_forward.3} parent=103 // pred_region
          %s1887 = sand.u32 %s446, 1
          %s1888 = scalar_lea.sflag [#allocation4], %s1887
          %s1889 = sand.u32 %s446, 1
          %s1890 = scalar_lea.vmem [#allocation3], %s1889
          %1891 = dma.done %s1888, 16
        $region108: #{cnn_transformer_forward.3} parent=103 // pred_fallthru
          _
      $region104: #{cnn_transformer_forward.3} parent=5 // pred_fallthru
        _
    $region6: #{cnn_transformer_forward.3} parent=1 // loop_footer
      %s32 = sadd.s32 1, %s28
    $region7: #{cnn_transformer_forward.3} parent=1 // loop_footer_branch
      %27 = sbr.rel target = $region3
    $region8: #{cnn_transformer_forward.3} parent=1 // loop_exit
      _
    %1892 = vsyncpa [#allocation4], 1
    %s1893 = scalar_lea.sflag [#allocation4], 1
    %1894 = vsyncpa %s1893, 1

</llo_original>
